<compile_context>
chip_gen: v5e
topology: v5e:2x2
jax: 0.10.0
libtpu: 0.0.40
codegen_flags: <defaults>
</compile_context>

<pallas_src>
import numpy as np
import jax
import jax.numpy as jnp
from jax.experimental import pallas as pl
from jax.experimental.pallas import tpu as pltpu

NEG_SLOPE = 0.01     # torch F.leaky_relu default
BATCH_TILE = 128     # rows per grid step (multiple of 8)
N_ACTION = 36        # 6x6 board -> 36 action logits
VALUE_LANE = 64      # lane of the merged head output that carries the raw value


def _lrelu(v):
    return jnp.where(v >= 0, v, NEG_SLOPE * v)


def policy_kernel(x_ref, w1_ref, w2_ref, w12_ref, b12_ref, wh_ref, bh_ref, out_ref):
    x = x_ref[...]                                                  # (bt,128) bf16, lanes>=36 padded
    lane = jax.lax.broadcasted_iota(jnp.int32, x.shape, 1)
    action_lane = lane < N_ACTION
    avail = jnp.logical_and(jnp.abs(x) != 1.0, action_lane)        # legal-move mask (occupied / pad -> 0)
    is_value = lane == VALUE_LANE

    # conv1 + leaky_relu  (im2col folded):            (bt,128) @ (128,512)
    y1 = _lrelu(jnp.dot(x, w1_ref[...], preferred_element_type=jnp.float32))
    # conv2 + leaky_relu  (window gather folded):     (bt,512) @ (512,384)
    y2 = _lrelu(jnp.dot(y1.astype(jnp.bfloat16), w2_ref[...],
                        preferred_element_type=jnp.float32))
    # fc_action1 | fc_value1 fused:                   (bt,384) @ (384,128) + bias, leaky_relu
    h = _lrelu(jnp.dot(y2.astype(jnp.bfloat16), w12_ref[...],
                       preferred_element_type=jnp.float32) + b12_ref[...])
    # fc_action2 | fc_value2 fused into one matmul:   (bt,128) @ (128,128) + bias
    #   lanes 0:36 -> action logits, lane VALUE_LANE -> raw value
    a = jnp.dot(h.astype(jnp.bfloat16), wh_ref[...],
                preferred_element_type=jnp.float32) + bh_ref[...]

    # masked softmax over the 36 action lanes; max taken over the real action lanes only
    maxa = jnp.max(jnp.where(action_lane, a, -jnp.inf), axis=-1, keepdims=True)
    e = jnp.exp(jnp.where(avail, a - maxa, -jnp.inf))               # exp(-inf)=0 on masked lanes
    denom = jnp.sum(e, axis=-1, keepdims=True) + 1e-30              # guard fully-occupied boards
    prob = e * pl.reciprocal(denom, approx=False)

    # single output slab: softmax in action lanes, raw value in VALUE_LANE (tanh in wrapper)
    out_ref[...] = jnp.where(is_value, a, prob)


def init_params(key):
    """Deterministic init with PyTorch-default-like uniform bounds (torch layouts)."""
    ks = jax.random.split(key, 10)

    def uinit(k, shape, fan_in):
        bound = 1.0 / np.sqrt(fan_in)
        return jax.random.uniform(k, shape, jnp.float32, -bound, bound)

    p = {}
    p["conv1_w"] = uinit(ks[0], (16, 1, 2, 2), 1 * 2 * 2)      # Conv2d(1,16,2,bias=False)
    p["conv2_w"] = uinit(ks[1], (32, 16, 3, 3), 16 * 3 * 3)    # Conv2d(16,32,3,bias=False)
    p["fa1_w"] = uinit(ks[2], (72, 288), 288)
    p["fa1_b"] = uinit(ks[3], (72,), 288)
    p["fa2_w"] = uinit(ks[4], (36, 72), 72)
    p["fa2_b"] = uinit(ks[5], (36,), 72)
    p["fv1_w"] = uinit(ks[6], (48, 288), 288)
    p["fv1_b"] = uinit(ks[7], (48,), 288)
    p["fv2_w"] = uinit(ks[8], (1, 48), 48)
    p["fv2_b"] = uinit(ks[9], (1,), 48)
    return p


def prepare_kernel_params(p):
    """Fold convs / flattening into dense matmul weights, pad all dims to multiples of 128."""
    conv1_w = np.asarray(p["conv1_w"], np.float32)    # (16,1,2,2)
    conv2_w = np.asarray(p["conv2_w"], np.float32)    # (32,16,3,3)

    # conv1 folded with im2col:  x_flat[36] -> y1_flat[400], y1 index = (5*r+c)*16 + co
    W1 = np.zeros((128, 512), np.float32)             # rows 36:128 and cols 400:512 stay zero
    for co in range(16):
        for kh in range(2):
            for kw in range(2):
                w = conv1_w[co, 0, kh, kw]
                for r in range(5):
                    for c in range(5):
                        W1[6 * (r + kh) + (c + kw), (5 * r + c) * 16 + co] += w

    # conv2 folded:  y1_flat[400] -> y2_flat[288] in torch .view(-1,288) order (c2*9 + 3*i + j)
    W2 = np.zeros((512, 384), np.float32)             # rows 400:512 and cols 288:384 stay zero
    for c2 in range(32):
        for ci in range(16):
            for di in range(3):
                for dj in range(3):
                    w = conv2_w[c2, ci, di, dj]
                    for i in range(3):
                        for j in range(3):
                            W2[(5 * (i + di) + (j + dj)) * 16 + ci, c2 * 9 + 3 * i + j] += w

    # fc_action1 | fc_value1 fused, K/N padded:  (384, 128)
    W12 = np.zeros((384, 128), np.float32)
    W12[:288, :72] = np.asarray(p["fa1_w"], np.float32).T
    W12[:288, 72:120] = np.asarray(p["fv1_w"], np.float32).T
    b12 = np.zeros((1, 128), np.float32)
    b12[0, :72] = np.asarray(p["fa1_b"], np.float32)
    b12[0, 72:120] = np.asarray(p["fv1_b"], np.float32)

    # fc_action2 | fc_value2 fused into ONE (128,128) head; value column lands in VALUE_LANE
    Wh = np.zeros((128, 128), np.float32)
    Wh[:72, :36] = np.asarray(p["fa2_w"], np.float32).T
    Wh[72:120, VALUE_LANE] = np.asarray(p["fv2_w"], np.float32).reshape(48)
    bh = np.zeros((1, 128), np.float32)
    bh[0, :36] = np.asarray(p["fa2_b"], np.float32)
    bh[0, VALUE_LANE] = float(np.asarray(p["fv2_b"], np.float32)[0])

    return {
        "W1": jnp.asarray(W1, jnp.bfloat16),
        "W2": jnp.asarray(W2, jnp.bfloat16),
        "W12": jnp.asarray(W12, jnp.bfloat16),
        "b12": jnp.asarray(b12, jnp.float32),
        "Wh": jnp.asarray(Wh, jnp.bfloat16),
        "bh": jnp.asarray(bh, jnp.float32),
    }


def policy_forward(x_nchw, kp, batch_tile=BATCH_TILE):
    """x_nchw: (B, 1, 6, 6) boards with values in {-1,0,1}. Returns (prob (B,6,6), value (B,1))."""
    B = x_nchw.shape[0]
    x_flat = x_nchw.reshape(B, 36).astype(jnp.bfloat16)            # {-1,0,1} exact in bf16
    Bp = ((B + batch_tile - 1) // batch_tile) * batch_tile
    # lane-dense + batch-padded input (zero pad: W1 rows 36:128 are zero, lanes>=36 are masked)
    x_pad = jnp.pad(x_flat, ((0, Bp - B), (0, 128 - 36)))

    grid = (Bp // batch_tile,)
    in_specs = [
        pl.BlockSpec((batch_tile, 128), lambda i: (i, 0)),   # x (batch-tiled)
        pl.BlockSpec((128, 512), lambda i: (0, 0)),          # W1eff  (grid-invariant -> DMA'd once)
        pl.BlockSpec((512, 384), lambda i: (0, 0)),          # W2eff
        pl.BlockSpec((384, 128), lambda i: (0, 0)),          # W12
        pl.BlockSpec((1, 128), lambda i: (0, 0)),            # b12
        pl.BlockSpec((128, 128), lambda i: (0, 0)),          # Whead (fused action|value)
        pl.BlockSpec((1, 128), lambda i: (0, 0)),            # bhead
    ]
    out_specs = pl.BlockSpec((batch_tile, 128), lambda i: (i, 0))

    out = pl.pallas_call(
        policy_kernel,
        grid=grid,
        in_specs=in_specs,
        out_specs=out_specs,
        out_shape=jax.ShapeDtypeStruct((Bp, 128), jnp.float32),
        compiler_params=pltpu.CompilerParams(
            dimension_semantics=("parallel",)),   # batch tiles shard across TCs on multi-core parts
    )(x_pad, kp["W1"], kp["W2"], kp["W12"], kp["b12"], kp["Wh"], kp["bh"])

    prob = out[:B, :N_ACTION].reshape(B, 6, 6)
    value = jnp.tanh(out[:B, VALUE_LANE:VALUE_LANE + 1])            # tanh on (B,1), not 128 lanes
    return prob, value


def policy_reference(x_nchw, p):
    """Pure-JAX f32 reference of the torch module (batched, per-row softmax)."""
    B = x_nchw.shape[0]
    dn = ("NCHW", "OIHW", "NCHW")
    y = jax.lax.conv_general_dilated(x_nchw, p["conv1_w"], (1, 1), "VALID", dimension_numbers=dn)
    y = _lrelu(y)
    y = jax.lax.conv_general_dilated(y, p["conv2_w"], (1, 1), "VALID", dimension_numbers=dn)
    y = _lrelu(y).reshape(B, 288)
    a = _lrelu(y @ p["fa1_w"].T + p["fa1_b"]) @ p["fa2_w"].T + p["fa2_b"]
    avail = (jnp.abs(x_nchw.reshape(B, 36)) != 1.0).astype(jnp.float32)
    maxa = jnp.max(a, axis=-1, keepdims=True)
    e = avail * jnp.exp(a - maxa)
    prob = e / jnp.sum(e, axis=-1, keepdims=True)
    v = jnp.tanh(_lrelu(y @ p["fv1_w"].T + p["fv1_b"]) @ p["fv2_w"].T + p["fv2_b"])
    return prob.reshape(B, 6, 6), v


if __name__ == "__main__":
    key = jax.random.PRNGKey(0)
    k_x, k_params = jax.random.split(key)

    # Batch of boards with values in {-1, 0, 1} (occupied squares are +/-1, empty squares 0).
    B = 256
    boards = jax.random.randint(k_x, (B, 6, 6), -1, 2).astype(jnp.float32)
    x = boards.reshape(B, 1, 6, 6)                 # NCHW, like the PyTorch module

    params = init_params(k_params)
    kparams = prepare_kernel_params(params)

    prob, value = jax.jit(policy_forward)(x, kparams)
    prob = jax.block_until_ready(prob)
    value = jax.block_until_ready(value)

    assert prob.shape == (B, 6, 6) and value.shape == (B, 1)
    assert bool(jnp.isfinite(prob).all()) and bool(jnp.isfinite(value).all())
    assert bool(jnp.all(jnp.abs(value) <= 1.0 + 1e-5))

    # masked softmax sanity: probabilities sum to 1 (boards with >=1 empty square) and are
    # exactly zero on occupied squares.
    flat = boards.reshape(B, 36)
    sums = jnp.sum(prob.reshape(B, 36), axis=-1)
    has_empty = jnp.any(jnp.abs(flat) != 1.0, axis=-1)
    assert float(jnp.max(jnp.where(has_empty, jnp.abs(sums - 1.0), 0.0))) < 1e-3
    assert float(jnp.max(jnp.where(jnp.abs(boards) == 1.0, prob, 0.0))) < 1e-6

    # loose end-to-end check against the f32 reference (bf16 weights => small tolerance)
    prob_ref, value_ref = policy_reference(x, params)
    perr = float(jnp.max(jnp.where(has_empty[:, None, None], jnp.abs(prob - prob_ref), 0.0)))
    verr = float(jnp.max(jnp.abs(value - value_ref)))
    assert perr < 2e-2 and verr < 2e-2

    print("KERNEL_OK")
</pallas_src>

<mosaic_0001>
module attributes {stable_mosaic.version = 11 : i64} {
  func.func @policy_kernel(%arg0: i32, %arg1: memref<128x128xbf16, #tpu.memory_space<vmem>>, %arg2: memref<128x512xbf16, #tpu.memory_space<vmem>>, %arg3: memref<512x384xbf16, #tpu.memory_space<vmem>>, %arg4: memref<384x128xbf16, #tpu.memory_space<vmem>>, %arg5: memref<1x128xf32, #tpu.memory_space<vmem>>, %arg6: memref<128x128xbf16, #tpu.memory_space<vmem>>, %arg7: memref<1x128xf32, #tpu.memory_space<vmem>>, %arg8: memref<128x128xf32, #tpu.memory_space<vmem>>) attributes {dimension_semantics = [#tpu.dimension_semantics<parallel>], iteration_bounds = array<i64: 2>, scalar_prefetch = 0 : i64, scratch_operands = 0 : i64, tpu.core_type = #tpu.core_type<tc>, window_params = [{transform_indices = @transform_0, window_bounds = array<i64: 128, 128>}, {pipeline_mode = #tpu.pipeline_mode<synchronous>, transform_indices = @transform_1, window_bounds = array<i64: 128, 512>}, {pipeline_mode = #tpu.pipeline_mode<synchronous>, transform_indices = @transform_2, window_bounds = array<i64: 512, 384>}, {pipeline_mode = #tpu.pipeline_mode<synchronous>, transform_indices = @transform_3, window_bounds = array<i64: 384, 128>}, {pipeline_mode = #tpu.pipeline_mode<synchronous>, transform_indices = @transform_4, window_bounds = array<i64: 1, 128>}, {pipeline_mode = #tpu.pipeline_mode<synchronous>, transform_indices = @transform_5, window_bounds = array<i64: 128, 128>}, {pipeline_mode = #tpu.pipeline_mode<synchronous>, transform_indices = @transform_6, window_bounds = array<i64: 1, 128>}, {transform_indices = @transform_7, window_bounds = array<i64: 128, 128>}]} {
    %c0 = arith.constant 0 : index
    %c0_0 = arith.constant 0 : index
    %0 = vector.load %arg1[%c0, %c0_0] : memref<128x128xbf16, #tpu.memory_space<vmem>>, vector<128x128xbf16>
    %1 = tpu.iota {dimensions = array<i32: 1>} : vector<128x128xi32>
    %c36_i32 = arith.constant 36 : i32
    %2 = vector.broadcast %c36_i32 : i32 to vector<128x128xi32>
    %3 = arith.cmpi slt, %1, %2 : vector<128x128xi32>
    %4 = math.absf %0 : vector<128x128xbf16>
    %cst = arith.constant 1.000000e+00 : bf16
    %5 = vector.broadcast %cst : bf16 to vector<128x128xbf16>
    %6 = arith.cmpf one, %4, %5 : vector<128x128xbf16>
    %7 = arith.andi %6, %3 : vector<128x128xi1>
    %c64_i32 = arith.constant 64 : i32
    %8 = vector.broadcast %c64_i32 : i32 to vector<128x128xi32>
    %9 = arith.cmpi eq, %1, %8 : vector<128x128xi32>
    %c0_1 = arith.constant 0 : index
    %c0_2 = arith.constant 0 : index
    %10 = vector.load %arg2[%c0_1, %c0_2] : memref<128x512xbf16, #tpu.memory_space<vmem>>, vector<128x512xbf16>
    %cst_3 = arith.constant dense<0.000000e+00> : vector<128x512xf32>
    %11 = tpu.matmul %0, %10, %cst_3 {dimension_numbers = #tpu.dot_dimension_numbers<[1], [0], [0], [1], [0, 0, 1, 1], [], []>} : vector<128x128xbf16>, vector<128x512xbf16>, vector<128x512xf32> -> vector<128x512xf32>
    %cst_4 = arith.constant 0.000000e+00 : f32
    %12 = vector.broadcast %cst_4 : f32 to vector<128x512xf32>
    %13 = arith.cmpf oge, %11, %12 : vector<128x512xf32>
    %cst_5 = arith.constant 0.00999999977 : f32
    %14 = vector.broadcast %cst_5 : f32 to vector<128x512xf32>
    %15 = arith.mulf %14, %11 : vector<128x512xf32>
    %16 = arith.select %13, %11, %15 : vector<128x512xi1>, vector<128x512xf32>
    %17 = arith.truncf %16 : vector<128x512xf32> to vector<128x512xbf16>
    %c0_6 = arith.constant 0 : index
    %c0_7 = arith.constant 0 : index
    %18 = vector.load %arg3[%c0_6, %c0_7] : memref<512x384xbf16, #tpu.memory_space<vmem>>, vector<512x384xbf16>
    %cst_8 = arith.constant dense<0.000000e+00> : vector<128x384xf32>
    %19 = tpu.matmul %17, %18, %cst_8 {dimension_numbers = #tpu.dot_dimension_numbers<[1], [0], [0], [1], [0, 0, 1, 1], [], []>} : vector<128x512xbf16>, vector<512x384xbf16>, vector<128x384xf32> -> vector<128x384xf32>
    %cst_9 = arith.constant 0.000000e+00 : f32
    %20 = vector.broadcast %cst_9 : f32 to vector<128x384xf32>
    %21 = arith.cmpf oge, %19, %20 : vector<128x384xf32>
    %cst_10 = arith.constant 0.00999999977 : f32
    %22 = vector.broadcast %cst_10 : f32 to vector<128x384xf32>
    %23 = arith.mulf %22, %19 : vector<128x384xf32>
    %24 = arith.select %21, %19, %23 : vector<128x384xi1>, vector<128x384xf32>
    %25 = arith.truncf %24 : vector<128x384xf32> to vector<128x384xbf16>
    %c0_11 = arith.constant 0 : index
    %c0_12 = arith.constant 0 : index
    %26 = vector.load %arg4[%c0_11, %c0_12] : memref<384x128xbf16, #tpu.memory_space<vmem>>, vector<384x128xbf16>
    %cst_13 = arith.constant dense<0.000000e+00> : vector<128x128xf32>
    %27 = tpu.matmul %25, %26, %cst_13 {dimension_numbers = #tpu.dot_dimension_numbers<[1], [0], [0], [1], [0, 0, 1, 1], [], []>} : vector<128x384xbf16>, vector<384x128xbf16>, vector<128x128xf32> -> vector<128x128xf32>
    %c0_14 = arith.constant 0 : index
    %c0_15 = arith.constant 0 : index
    %28 = vector.load %arg5[%c0_14, %c0_15] : memref<1x128xf32, #tpu.memory_space<vmem>>, vector<1x128xf32>
    %29 = vector.broadcast %28 : vector<1x128xf32> to vector<128x128xf32>
    %30 = arith.addf %27, %29 : vector<128x128xf32>
    %cst_16 = arith.constant 0.000000e+00 : f32
    %31 = vector.broadcast %cst_16 : f32 to vector<128x128xf32>
    %32 = arith.cmpf oge, %30, %31 : vector<128x128xf32>
    %cst_17 = arith.constant 0.00999999977 : f32
    %33 = vector.broadcast %cst_17 : f32 to vector<128x128xf32>
    %34 = arith.mulf %33, %30 : vector<128x128xf32>
    %35 = arith.select %32, %30, %34 : vector<128x128xi1>, vector<128x128xf32>
    %36 = arith.truncf %35 : vector<128x128xf32> to vector<128x128xbf16>
    %c0_18 = arith.constant 0 : index
    %c0_19 = arith.constant 0 : index
    %37 = vector.load %arg6[%c0_18, %c0_19] : memref<128x128xbf16, #tpu.memory_space<vmem>>, vector<128x128xbf16>
    %cst_20 = arith.constant dense<0.000000e+00> : vector<128x128xf32>
    %38 = tpu.matmul %36, %37, %cst_20 {dimension_numbers = #tpu.dot_dimension_numbers<[1], [0], [0], [1], [0, 0, 1, 1], [], []>} : vector<128x128xbf16>, vector<128x128xbf16>, vector<128x128xf32> -> vector<128x128xf32>
    %c0_21 = arith.constant 0 : index
    %c0_22 = arith.constant 0 : index
    %39 = vector.load %arg7[%c0_21, %c0_22] : memref<1x128xf32, #tpu.memory_space<vmem>>, vector<1x128xf32>
    %40 = vector.broadcast %39 : vector<1x128xf32> to vector<128x128xf32>
    %41 = arith.addf %38, %40 : vector<128x128xf32>
    %cst_23 = arith.constant 0xFF800000 : f32
    %42 = vector.broadcast %cst_23 : f32 to vector<128x128xf32>
    %43 = arith.select %3, %41, %42 : vector<128x128xi1>, vector<128x128xf32>
    %cst_24 = arith.constant dense<0xFF800000> : vector<128xf32>
    %44 = vector.multi_reduction <maximumf>, %43, %cst_24 [1] : vector<128x128xf32> to vector<128xf32>
    %45 = vector.shape_cast %44 : vector<128xf32> to vector<128x1xf32>
    %46 = vector.broadcast %45 : vector<128x1xf32> to vector<128x128xf32>
    %47 = arith.subf %41, %46 : vector<128x128xf32>
    %cst_25 = arith.constant 0xFF800000 : f32
    %48 = vector.broadcast %cst_25 : f32 to vector<128x128xf32>
    %49 = arith.select %7, %47, %48 : vector<128x128xi1>, vector<128x128xf32>
    %50 = math.exp %49 : vector<128x128xf32>
    %cst_26 = arith.constant dense<0.000000e+00> : vector<128xf32>
    %51 = vector.multi_reduction <add>, %50, %cst_26 [1] : vector<128x128xf32> to vector<128xf32>
    %52 = vector.shape_cast %51 : vector<128xf32> to vector<128x1xf32>
    %cst_27 = arith.constant 1.000000e-30 : f32
    %53 = vector.broadcast %cst_27 : f32 to vector<128x1xf32>
    %54 = arith.addf %52, %53 : vector<128x1xf32>
    %55 = tpu.reciprocal %54 : vector<128x1xf32> -> vector<128x1xf32>
    %56 = vector.broadcast %55 : vector<128x1xf32> to vector<128x128xf32>
    %57 = arith.mulf %50, %56 : vector<128x128xf32>
    %58 = arith.select %9, %41, %57 : vector<128x128xi1>, vector<128x128xf32>
    %c0_28 = arith.constant 0 : index
    %c0_29 = arith.constant 0 : index
    %59 = vector.load %arg8[%c0_28, %c0_29] : memref<128x128xf32, #tpu.memory_space<vmem>>, vector<128x128xf32>
    tpu.vector_store %arg8[%c0_28, %c0_29], %58 {strides = array<i32>} : memref<128x128xf32, #tpu.memory_space<vmem>>, vector<128x128xf32>,
    return
  }
  func.func @transform_0(%arg0: i32) -> (i32, i32) {
    %c0_i32 = arith.constant 0 : i32
    %c0_i32_0 = arith.constant 0 : i32
    return %arg0, %c0_i32 : i32, i32
  }
  func.func @transform_1(%arg0: i32) -> (i32, i32) {
    %c0_i32 = arith.constant 0 : i32
    %c0_i32_0 = arith.constant 0 : i32
    %c0_i32_1 = arith.constant 0 : i32
    return %c0_i32, %c0_i32_0 : i32, i32
  }
  func.func @transform_2(%arg0: i32) -> (i32, i32) {
    %c0_i32 = arith.constant 0 : i32
    %c0_i32_0 = arith.constant 0 : i32
    %c0_i32_1 = arith.constant 0 : i32
    return %c0_i32, %c0_i32_0 : i32, i32
  }
  func.func @transform_3(%arg0: i32) -> (i32, i32) {
    %c0_i32 = arith.constant 0 : i32
    %c0_i32_0 = arith.constant 0 : i32
    %c0_i32_1 = arith.constant 0 : i32
    return %c0_i32, %c0_i32_0 : i32, i32
  }
  func.func @transform_4(%arg0: i32) -> (i32, i32) {
    %c0_i32 = arith.constant 0 : i32
    %c0_i32_0 = arith.constant 0 : i32
    %c0_i32_1 = arith.constant 0 : i32
    return %c0_i32, %c0_i32_0 : i32, i32
  }
  func.func @transform_5(%arg0: i32) -> (i32, i32) {
    %c0_i32 = arith.constant 0 : i32
    %c0_i32_0 = arith.constant 0 : i32
    %c0_i32_1 = arith.constant 0 : i32
    return %c0_i32, %c0_i32_0 : i32, i32
  }
  func.func @transform_6(%arg0: i32) -> (i32, i32) {
    %c0_i32 = arith.constant 0 : i32
    %c0_i32_0 = arith.constant 0 : i32
    %c0_i32_1 = arith.constant 0 : i32
    return %c0_i32, %c0_i32_0 : i32, i32
  }
  func.func @transform_7(%arg0: i32) -> (i32, i32) {
    %c0_i32 = arith.constant 0 : i32
    %c0_i32_0 = arith.constant 0 : i32
    return %arg0, %c0_i32 : i32, i32
  }
}

</mosaic_0001>

<llo_original>
// kernel: policy_forward.1
$region0: #{policy_forward.1}
  #allocation0 [shape = 'u32[]', space=smem, size = 0x4, offset = 0x4, fixed_abs, tag = 'smem constant byte address 0x4 - core index']
  #allocation1 [shape = 'u32[72,128]{1,0:T(1,128)}', space=vmem, size = 0x9000, scoped, tag = 'internal scratch']
  %s0 = inlined_call_operand.vmem [shape: bf16[256,128], index: 0, kind: input, shape index: {}]
  %s1 = inlined_call_operand.vmem [shape: bf16[128,512], index: 1, kind: input, shape index: {}]
  %s2 = inlined_call_operand.hbm [shape: bf16[512,384], index: 2, kind: input, shape index: {}]
  %s3 = inlined_call_operand.vmem [shape: bf16[384,128], index: 3, kind: input, shape index: {}]
  %s4 = inlined_call_operand.vmem [shape: f32[1,128], index: 4, kind: input, shape index: {}]
  %s5 = inlined_call_operand.vmem [shape: bf16[128,128], index: 5, kind: input, shape index: {}]
  %s6 = inlined_call_operand.vmem [shape: f32[1,128], index: 6, kind: input, shape index: {}]
  %s7 = inlined_call_operand.vmem [shape: f32[256,128], index: 7, kind: output, shape index: {}]
  %s8 = sld [smem:[#allocation0]]
  $region65: #{policy_forward.1} parent=0
    _
  %s10 = ssub.s32 1, %s8
  %s11 = scalar_select 0, %s10, %s8
  $region1: #{policy_forward.1} parent=0
    #allocation2 [shape = 'u8[393216]{0}', space=vmem, size = 0x60000, scoped, tag = 'input window, operand 2, single buffered']
    #allocation3 [shape = 's32[2]{0}', space=sflag, size = 0x8, scoped, tag = 'scoped memory for policy_forward.1']
    %12 = vsyncpa [#allocation3], 0
    loop: start=0, step=1, limit=4
    $region2: #{policy_forward.1} parent=1 // loop_pre_header
      _
    $region3: #{policy_forward.1} parent=1 // loop_header
      %s14 = sphi 0, %s18
      %p15 = scmp.ge.s32.totalorder %s14, 4
      %s24 = sphi 0, %s26
      %s27 = sphi 0, %s24
      %s28 = sphi 0, %s27
      %s44 = sphi 0, %s28
      %s48 = sphi 0, %s48
      %s50 = sphi 0, %s48
      %s51 = sphi 0, %s50
      %s65 = sphi 0, %s51
      %s69 = sphi 0, %s69
      %s71 = sphi 0, %s69
      %s72 = sphi 0, %s71
      %s86 = sphi 0, %s72
      %s90 = sphi 0, %s90
      %s92 = sphi 0, %s90
      %s93 = sphi 0, %s92
      %s107 = sphi 0, %s93
      %s111 = sphi 0, %s111
      %s113 = sphi 0, %s111
      %s114 = sphi 0, %s113
      %s128 = sphi 0, %s114
      %s132 = sphi 0, %s132
      %s134 = sphi 0, %s132
      %s135 = sphi 0, %s134
      %s149 = sphi 0, %s135
      %s153 = sphi 0, %s153
      %s155 = sphi 0, %s153
      %s156 = sphi 0, %s155
      %s170 = sphi 0, %s156
      %s176 = sphi 0, %s178
      %s179 = sphi 0, %s176
      %s180 = sphi 0, %s179
      %s196 = sphi 0, %s180
    $region4: #{policy_forward.1} parent=1 // loop_header_branch
      %17 = sbr.rel (%p15) target = $region8
    $region5: #{policy_forward.1} parent=1 // loop_body
      %s19 = ssub.s32 %s14, 1
      %s20 = ssub.s32 %s14, 2
      %s21 = sadd.s32 %s14, 1
      %s22 = ssub.s32 %s14, %s21
      %p23 = scmp.eq.s32.totalorder %s22, 0
      %s25 = sadd.s32 %s24, 1
      %s26 = scalar_select %p23, %s24, %s25
      %p29 = pneg %p23
      %p30 = scmp.eq.s32.totalorder %s14, 1
      %p31 = por %p29, %p30
      %p32 = scmp.ne.s32.totalorder %s24, %s27
      %p33 = scmp.eq.s32.totalorder %s14, 0
      %p34 = por %p32, %p33
      %p35 = scmp.ne.s32.totalorder %s24, %s27
      %p36 = scmp.eq.s32.totalorder %s19, 1
      %p37 = por %p35, %p36
      %p38 = scmp.ne.s32.totalorder %s27, %s28
      %p39 = scmp.eq.s32.totalorder %s19, 0
      %p40 = por %p38, %p39
      %p41 = scmp.ne.s32.totalorder %s27, %s28
      %p42 = scmp.eq.s32.totalorder %s20, 1
      %p43 = por %p41, %p42
      %p45 = scmp.ne.s32.totalorder %s28, %s44
      %p46 = scmp.eq.s32.totalorder %s20, 0
      %p47 = por %p45, %p46
      %s49 = sadd.s32 %s48, 1
      %p52 = scmp.eq.s32.totalorder %s14, 1
      %p53 = scmp.ne.s32.totalorder %s48, %s50
      %p54 = scmp.eq.s32.totalorder %s14, 0
      %p55 = por %p53, %p54
      %p56 = scmp.ne.s32.totalorder %s48, %s50
      %p57 = scmp.eq.s32.totalorder %s19, 1
      %p58 = por %p56, %p57
      %p59 = scmp.ne.s32.totalorder %s50, %s51
      %p60 = scmp.eq.s32.totalorder %s19, 0
      %p61 = por %p59, %p60
      %p62 = scmp.ne.s32.totalorder %s50, %s51
      %p63 = scmp.eq.s32.totalorder %s20, 1
      %p64 = por %p62, %p63
      %p66 = scmp.ne.s32.totalorder %s51, %s65
      %p67 = scmp.eq.s32.totalorder %s20, 0
      %p68 = por %p66, %p67
      %s70 = sadd.s32 %s69, 1
      %p73 = scmp.eq.s32.totalorder %s14, 1
      %p74 = scmp.ne.s32.totalorder %s69, %s71
      %p75 = scmp.eq.s32.totalorder %s14, 0
      %p76 = por %p74, %p75
      %p77 = scmp.ne.s32.totalorder %s69, %s71
      %p78 = scmp.eq.s32.totalorder %s19, 1
      %p79 = por %p77, %p78
      %p80 = scmp.ne.s32.totalorder %s71, %s72
      %p81 = scmp.eq.s32.totalorder %s19, 0
      %p82 = por %p80, %p81
      %p83 = scmp.ne.s32.totalorder %s71, %s72
      %p84 = scmp.eq.s32.totalorder %s20, 1
      %p85 = por %p83, %p84
      %p87 = scmp.ne.s32.totalorder %s72, %s86
      %p88 = scmp.eq.s32.totalorder %s20, 0
      %p89 = por %p87, %p88
      %s91 = sadd.s32 %s90, 1
      %p94 = scmp.eq.s32.totalorder %s14, 1
      %p95 = scmp.ne.s32.totalorder %s90, %s92
      %p96 = scmp.eq.s32.totalorder %s14, 0
      %p97 = por %p95, %p96
      %p98 = scmp.ne.s32.totalorder %s90, %s92
      %p99 = scmp.eq.s32.totalorder %s19, 1
      %p100 = por %p98, %p99
      %p101 = scmp.ne.s32.totalorder %s92, %s93
      %p102 = scmp.eq.s32.totalorder %s19, 0
      %p103 = por %p101, %p102
      %p104 = scmp.ne.s32.totalorder %s92, %s93
      %p105 = scmp.eq.s32.totalorder %s20, 1
      %p106 = por %p104, %p105
      %p108 = scmp.ne.s32.totalorder %s93, %s107
      %p109 = scmp.eq.s32.totalorder %s20, 0
      %p110 = por %p108, %p109
      %s112 = sadd.s32 %s111, 1
      %p115 = scmp.eq.s32.totalorder %s14, 1
      %p116 = scmp.ne.s32.totalorder %s111, %s113
      %p117 = scmp.eq.s32.totalorder %s14, 0
      %p118 = por %p116, %p117
      %p119 = scmp.ne.s32.totalorder %s111, %s113
      %p120 = scmp.eq.s32.totalorder %s19, 1
      %p121 = por %p119, %p120
      %p122 = scmp.ne.s32.totalorder %s113, %s114
      %p123 = scmp.eq.s32.totalorder %s19, 0
      %p124 = por %p122, %p123
      %p125 = scmp.ne.s32.totalorder %s113, %s114
      %p126 = scmp.eq.s32.totalorder %s20, 1
      %p127 = por %p125, %p126
      %p129 = scmp.ne.s32.totalorder %s114, %s128
      %p130 = scmp.eq.s32.totalorder %s20, 0
      %p131 = por %p129, %p130
      %s133 = sadd.s32 %s132, 1
      %p136 = scmp.eq.s32.totalorder %s14, 1
      %p137 = scmp.ne.s32.totalorder %s132, %s134
      %p138 = scmp.eq.s32.totalorder %s14, 0
      %p139 = por %p137, %p138
      %p140 = scmp.ne.s32.totalorder %s132, %s134
      %p141 = scmp.eq.s32.totalorder %s19, 1
      %p142 = por %p140, %p141
      %p143 = scmp.ne.s32.totalorder %s134, %s135
      %p144 = scmp.eq.s32.totalorder %s19, 0
      %p145 = por %p143, %p144
      %p146 = scmp.ne.s32.totalorder %s134, %s135
      %p147 = scmp.eq.s32.totalorder %s20, 1
      %p148 = por %p146, %p147
      %p150 = scmp.ne.s32.totalorder %s135, %s149
      %p151 = scmp.eq.s32.totalorder %s20, 0
      %p152 = por %p150, %p151
      %s154 = sadd.s32 %s153, 1
      %p157 = scmp.eq.s32.totalorder %s14, 1
      %p158 = scmp.ne.s32.totalorder %s153, %s155
      %p159 = scmp.eq.s32.totalorder %s14, 0
      %p160 = por %p158, %p159
      %p161 = scmp.ne.s32.totalorder %s153, %s155
      %p162 = scmp.eq.s32.totalorder %s19, 1
      %p163 = por %p161, %p162
      %p164 = scmp.ne.s32.totalorder %s155, %s156
      %p165 = scmp.eq.s32.totalorder %s19, 0
      %p166 = por %p164, %p165
      %p167 = scmp.ne.s32.totalorder %s155, %s156
      %p168 = scmp.eq.s32.totalorder %s20, 1
      %p169 = por %p167, %p168
      %p171 = scmp.ne.s32.totalorder %s156, %s170
      %p172 = scmp.eq.s32.totalorder %s20, 0
      %p173 = por %p171, %p172
      %s174 = ssub.s32 %s14, %s21
      %p175 = scmp.eq.s32.totalorder %s174, 0
      %s177 = sadd.s32 %s176, 1
      %s178 = scalar_select %p175, %s176, %s177
      %p181 = pneg %p175
      %p182 = scmp.eq.s32.totalorder %s14, 1
      %p183 = por %p181, %p182
      %p184 = scmp.ne.s32.totalorder %s176, %s179
      %p185 = scmp.eq.s32.totalorder %s14, 0
      %p186 = por %p184, %p185
      %p187 = scmp.ne.s32.totalorder %s176, %s179
      %p188 = scmp.eq.s32.totalorder %s19, 1
      %p189 = por %p187, %p188
      %p190 = scmp.ne.s32.totalorder %s179, %s180
      %p191 = scmp.eq.s32.totalorder %s19, 0
      %p192 = por %p190, %p191
      %p193 = scmp.ne.s32.totalorder %s179, %s180
      %p194 = scmp.eq.s32.totalorder %s20, 1
      %p195 = por %p193, %p194
      %p197 = scmp.ne.s32.totalorder %s180, %s196
      %p198 = scmp.eq.s32.totalorder %s20, 0
      %p199 = por %p197, %p198
      %p200 = scmp.le.s32.totalorder 1, %s14
      %p201 = scmp.lt.s32.totalorder %s14, 3
      %p202 = pnand %p200, %p201
      %p203 = pneg %p202
      // Predicated region
      $region9: #{policy_forward.1} parent=5 // pred_check
        _
      $region10: #{policy_forward.1} parent=5 // pred_check_branch
        %205 = sbr.rel (%p202) target = $region12
      $region11: #{policy_forward.1} parent=5 // pred_region
        %s206 = ssub.s32 %s14, 1
        // Predicated region
        $region13: #{policy_forward.1} parent=11 // pred_check
          %p207 = pneg %p61
        $region14: #{policy_forward.1} parent=11 // pred_check_branch
          %209 = sbr.rel (%p207) target = $region16
        $region15: #{policy_forward.1} parent=11 // pred_region
          _
        $region16: #{policy_forward.1} parent=11 // pred_fallthru
          _
        // Predicated region
        $region17: #{policy_forward.1} parent=11 // pred_check
          %p210 = pneg %p82
        $region18: #{policy_forward.1} parent=11 // pred_check_branch
          %212 = sbr.rel (%p210) target = $region20
        $region19: #{policy_forward.1} parent=11 // pred_region
          %214 = vsyncadd [#allocation3], 0
          %s215 = sshll.u32 %s2, 4
          %s216 = int_to_ptr.hbm [resolvable:$true] %s215
          %s217 = sshll.u32 [#allocation2], 4
          %s218 = int_to_ptr.vmem [resolvable:$true] %s217
          %223 = dma.hbm_to_vmem [thread:$0]  %s216, 12288, %s218, [#allocation3], 192, 192, 12
        $region20: #{policy_forward.1} parent=11 // pred_fallthru
          _
        // Predicated region
        $region21: #{policy_forward.1} parent=11 // pred_check
          %p224 = pneg %p103
        $region22: #{policy_forward.1} parent=11 // pred_check_branch
          %226 = sbr.rel (%p224) target = $region24
        $region23: #{policy_forward.1} parent=11 // pred_region
          _
        $region24: #{policy_forward.1} parent=11 // pred_fallthru
          _
        // Predicated region
        $region25: #{policy_forward.1} parent=11 // pred_check
          %p227 = pneg %p124
        $region26: #{policy_forward.1} parent=11 // pred_check_branch
          %229 = sbr.rel (%p227) target = $region28
        $region27: #{policy_forward.1} parent=11 // pred_region
          _
        $region28: #{policy_forward.1} parent=11 // pred_fallthru
          _
        // Predicated region
        $region29: #{policy_forward.1} parent=11 // pred_check
          %p230 = pneg %p145
        $region30: #{policy_forward.1} parent=11 // pred_check_branch
          %232 = sbr.rel (%p230) target = $region32
        $region31: #{policy_forward.1} parent=11 // pred_region
          _
        $region32: #{policy_forward.1} parent=11 // pred_fallthru
          _
        // Predicated region
        $region33: #{policy_forward.1} parent=11 // pred_check
          %p233 = pneg %p166
        $region34: #{policy_forward.1} parent=11 // pred_check_branch
          %235 = sbr.rel (%p233) target = $region36
        $region35: #{policy_forward.1} parent=11 // pred_region
          _
        $region36: #{policy_forward.1} parent=11 // pred_fallthru
          _
      $region12: #{policy_forward.1} parent=5 // pred_fallthru
        _
      %p236 = scmp.lt.s32.totalorder %s14, 2
      // Predicated region
      $region37: #{policy_forward.1} parent=5 // pred_check
        %p237 = pneg %p236
      $region38: #{policy_forward.1} parent=5 // pred_check_branch
        %239 = sbr.rel (%p237) target = $region40
      $region39: #{policy_forward.1} parent=5 // pred_region
        // Predicated region
        $region41: #{policy_forward.1} parent=39 // pred_check
          %p240 = pneg %p34
        $region42: #{policy_forward.1} parent=39 // pred_check_branch
          %242 = sbr.rel (%p240) target = $region44
        $region43: #{policy_forward.1} parent=39 // pred_region
          %s243 = smul.u32 16, %s14
          %p244 = scmp.lt.s32.totalorder %s243, 31
          %s245 = scalar_select %p244, %s243, 31
          %s246 = smul.addr %s245, 4
          %s247 = scalar_lea.vmem %s0, %s246
          %s248 = smul.u32 16, %s14
        $region44: #{policy_forward.1} parent=39 // pred_fallthru
          _
      $region40: #{policy_forward.1} parent=5 // pred_fallthru
        _
      %p249 = scmp.le.s32.totalorder 1, %s14
      %p250 = scmp.lt.s32.totalorder %s14, 3
      %p251 = pnand %p249, %p250
      %p252 = pneg %p251
      // Predicated region
      $region45: #{policy_forward.1} parent=5 // pred_check
        _
      $region46: #{policy_forward.1} parent=5 // pred_check_branch
        %254 = sbr.rel (%p251) target = $region48
      $region47: #{policy_forward.1} parent=5 // pred_region
        %s255 = ssub.s32 %s14, 1
        // Predicated region
        $region49: #{policy_forward.1} parent=47 // pred_check
          %p256 = pneg %p82
        $region50: #{policy_forward.1} parent=47 // pred_check_branch
          %258 = sbr.rel (%p256) target = $region52
        $region51: #{policy_forward.1} parent=47 // pred_region
          %260 = dma.done [#allocation3], 12288
        $region52: #{policy_forward.1} parent=47 // pred_fallthru
          _
        %s261 = smul.u32 16, %s19
        %p262 = scmp.lt.s32.totalorder %s261, 31
        %s263 = scalar_select %p262, %s261, 31
        %s264 = smul.addr %s263, 4
        %s265 = scalar_lea.vmem %s0, %s264
        %p266 = pneg %p40
        %p267 = pneg %p37
        %p268 = pneg %p61
        %p269 = pneg %p58
        %p270 = pneg %p82
        %p271 = pneg %p79
        %p272 = pneg %p103
        %p273 = pneg %p100
        %p274 = pneg %p124
        %p275 = pneg %p121
        %p276 = pneg %p145
        %p277 = pneg %p142
        %p278 = pneg %p166
        %p279 = pneg %p163
        %p280 = pneg %p192
        %p281 = pneg %p189
        %s282 = smul.u32 16, %s19
        %p283 = scmp.lt.s32.totalorder %s282, 31
        %s284 = scalar_select %p283, %s282, 31
        %s285 = smul.addr %s284, 8
        %s286 = scalar_lea.vmem %s7, %s285
        %s287 = smul.u32 16, %s19
        %p288 = scmp.lt.s32.totalorder %s287, 31
        %s289 = scalar_select %p288, %s287, 31
        %s290 = smul.addr %s289, 4
        %s291 = scalar_lea.vmem %s0, %s290
        %s292 = smul.u32 16, %s19
        %s293 = smul.u32 16, %s19
        %p294 = scmp.lt.s32.totalorder %s293, 31
        %s295 = scalar_select %p294, %s293, 31
        %s296 = smul.addr %s295, 8
        %s297 = scalar_lea.vmem %s7, %s296
        %s298 = smul.u32 16, %s19
        %v299 = vld [vmem:[%s291] sm:$0xf]
        %v300 = vld [vmem:[%s291 + $0x4] sm:$0xf]
        %v301 = vld [vmem:[%s291 + $0x8] sm:$0xf]
        %v302 = vld [vmem:[%s291 + $0xc] sm:$0xf]
        %v303 = vld [vmem:[%s291 + $0x10] sm:$0xf]
        %v304 = vld [vmem:[%s291 + $0x14] sm:$0xf]
        %v305 = vld [vmem:[%s291 + $0x18] sm:$0xf]
        %v306 = vld [vmem:[%s291 + $0x1c] sm:$0xf]
        %v307 = vld [vmem:[%s291 + $0x20] sm:$0xf]
        %v308 = vld [vmem:[%s291 + $0x24] sm:$0xf]
        %v309 = vld [vmem:[%s291 + $0x28] sm:$0xf]
        %v310 = vld [vmem:[%s291 + $0x2c] sm:$0xf]
        %v311 = vld [vmem:[%s291 + $0x30] sm:$0xf]
        %v312 = vld [vmem:[%s291 + $0x34] sm:$0xf]
        %v313 = vld [vmem:[%s291 + $0x38] sm:$0xf]
        %v314 = vld [vmem:[%s291 + $0x3c] sm:$0xf]
        %v315 = vlaneseq
        %v316 = vand.u32 %v315, 127
        %vm317 = vcmp.lt.s32.totalorder %v316, 36
        %v318 = vand.u32 2147450879, %v299
        %v319 = vand.u32 2147450879, %v300
        %v320 = vand.u32 2147450879, %v301
        %v321 = vand.u32 2147450879, %v302
        %v322 = vand.u32 2147450879, %v303
        %v323 = vand.u32 2147450879, %v304
        %v324 = vand.u32 2147450879, %v305
        %v325 = vand.u32 2147450879, %v306
        %v326 = vand.u32 2147450879, %v307
        %v327 = vand.u32 2147450879, %v308
        %v328 = vand.u32 2147450879, %v309
        %v329 = vand.u32 2147450879, %v310
        %v330 = vand.u32 2147450879, %v311
        %v331 = vand.u32 2147450879, %v312
        %v332 = vand.u32 2147450879, %v313
        %v333 = vand.u32 2147450879, %v314
        %v334 = vunpack.c.l.bf16 %v318
        %v335 = vunpack.c.l.bf16 %v319
        %v336 = vunpack.c.l.bf16 %v320
        %v337 = vunpack.c.l.bf16 %v321
        %v338 = vunpack.c.l.bf16 %v322
        %v339 = vunpack.c.l.bf16 %v323
        %v340 = vunpack.c.l.bf16 %v324
        %v341 = vunpack.c.l.bf16 %v325
        %v342 = vunpack.c.l.bf16 %v326
        %v343 = vunpack.c.l.bf16 %v327
        %v344 = vunpack.c.l.bf16 %v328
        %v345 = vunpack.c.l.bf16 %v329
        %v346 = vunpack.c.l.bf16 %v330
        %v347 = vunpack.c.l.bf16 %v331
        %v348 = vunpack.c.l.bf16 %v332
        %v349 = vunpack.c.l.bf16 %v333
        %vm350 = vcmp.ne.f32.partialorder %v334, 1.0
        %vm351 = vcmp.ne.f32.partialorder %v335, 1.0
        %vm352 = vcmp.ne.f32.partialorder %v336, 1.0
        %vm353 = vcmp.ne.f32.partialorder %v337, 1.0
        %vm354 = vcmp.ne.f32.partialorder %v338, 1.0
        %vm355 = vcmp.ne.f32.partialorder %v339, 1.0
        %vm356 = vcmp.ne.f32.partialorder %v340, 1.0
        %vm357 = vcmp.ne.f32.partialorder %v341, 1.0
        %vm358 = vcmp.ne.f32.partialorder %v342, 1.0
        %vm359 = vcmp.ne.f32.partialorder %v343, 1.0
        %vm360 = vcmp.ne.f32.partialorder %v344, 1.0
        %vm361 = vcmp.ne.f32.partialorder %v345, 1.0
        %vm362 = vcmp.ne.f32.partialorder %v346, 1.0
        %vm363 = vcmp.ne.f32.partialorder %v347, 1.0
        %vm364 = vcmp.ne.f32.partialorder %v348, 1.0
        %vm365 = vcmp.ne.f32.partialorder %v349, 1.0
        %vm366 = vmand %vm350, %vm317
        %vm367 = vmand %vm351, %vm317
        %vm368 = vmand %vm352, %vm317
        %vm369 = vmand %vm353, %vm317
        %vm370 = vmand %vm354, %vm317
        %vm371 = vmand %vm355, %vm317
        %vm372 = vmand %vm356, %vm317
        %vm373 = vmand %vm357, %vm317
        %vm374 = vmand %vm358, %vm317
        %vm375 = vmand %vm359, %vm317
        %vm376 = vmand %vm360, %vm317
        %vm377 = vmand %vm361, %vm317
        %vm378 = vmand %vm362, %vm317
        %vm379 = vmand %vm363, %vm317
        %vm380 = vmand %vm364, %vm317
        %vm381 = vmand %vm365, %vm317
        %vm382 = vcmp.eq.s32.totalorder %v316, 64
        %v383 = vld [vmem:[%s1] sm:$0xff]
        %v384 = vld [vmem:[%s1 + $0x8] sm:$0xff]
        %v385 = vld [vmem:[%s1 + $0x10] sm:$0xff]
        %v386 = vld [vmem:[%s1 + $0x18] sm:$0xff]
        %v387 = vld [vmem:[%s1 + $0x20] sm:$0xff]
        %v388 = vld [vmem:[%s1 + $0x28] sm:$0xff]
        %v389 = vld [vmem:[%s1 + $0x30] sm:$0xff]
        %v390 = vld [vmem:[%s1 + $0x38] sm:$0xff]
        %v391 = vld [vmem:[%s1 + $0x40] sm:$0xff]
        %v392 = vld [vmem:[%s1 + $0x48] sm:$0xff]
        %v393 = vld [vmem:[%s1 + $0x50] sm:$0xff]
        %v394 = vld [vmem:[%s1 + $0x58] sm:$0xff]
        %v395 = vld [vmem:[%s1 + $0x60] sm:$0xff]
        %v396 = vld [vmem:[%s1 + $0x68] sm:$0xff]
        %v397 = vld [vmem:[%s1 + $0x70] sm:$0xff]
        %v398 = vld [vmem:[%s1 + $0x78] sm:$0xff]
        %v399 = vld [vmem:[%s1 + $0x80] sm:$0xff]
        %v400 = vld [vmem:[%s1 + $0x88] sm:$0xff]
        %v401 = vld [vmem:[%s1 + $0x90] sm:$0xff]
        %v402 = vld [vmem:[%s1 + $0x98] sm:$0xff]
        %v403 = vld [vmem:[%s1 + $0xa0] sm:$0xff]
        %v404 = vld [vmem:[%s1 + $0xa8] sm:$0xff]
        %v405 = vld [vmem:[%s1 + $0xb0] sm:$0xff]
        %v406 = vld [vmem:[%s1 + $0xb8] sm:$0xff]
        %v407 = vld [vmem:[%s1 + $0xc0] sm:$0xff]
        %v408 = vld [vmem:[%s1 + $0xc8] sm:$0xff]
        %v409 = vld [vmem:[%s1 + $0xd0] sm:$0xff]
        %v410 = vld [vmem:[%s1 + $0xd8] sm:$0xff]
        %v411 = vld [vmem:[%s1 + $0xe0] sm:$0xff]
        %v412 = vld [vmem:[%s1 + $0xe8] sm:$0xff]
        %v413 = vld [vmem:[%s1 + $0xf0] sm:$0xff]
        %v414 = vld [vmem:[%s1 + $0xf8] sm:$0xff]
        %v431 = vunpack.c.l.b16 %v299
        %v432 = vunpack.c.l.b16 %v300
        %v433 = vunpack.c.l.b16 %v301
        %v434 = vunpack.c.l.b16 %v302
        %v435 = vunpack.c.l.b16 %v303
        %v436 = vunpack.c.l.b16 %v304
        %v437 = vunpack.c.l.b16 %v305
        %v438 = vunpack.c.l.b16 %v306
        %v439 = vunpack.c.l.b16 %v307
        %v440 = vunpack.c.l.b16 %v308
        %v441 = vunpack.c.l.b16 %v309
        %v442 = vunpack.c.l.b16 %v310
        %v443 = vunpack.c.l.b16 %v311
        %v444 = vunpack.c.l.b16 %v312
        %v445 = vunpack.c.l.b16 %v313
        %v446 = vunpack.c.l.b16 %v314
        %v447 = vpack.c.b16 %v432, %v431
        %v448 = vpack.c.b16 %v434, %v433
        %v449 = vpack.c.b16 %v436, %v435
        %v450 = vpack.c.b16 %v438, %v437
        %v451 = vpack.c.b16 %v440, %v439
        %v452 = vpack.c.b16 %v442, %v441
        %v453 = vpack.c.b16 %v444, %v443
        %v454 = vpack.c.b16 %v446, %v445
        %v495 = vunpack.c.l.b16 %v383
        %v496 = vunpack.c.h.b16 %v383
        %v497 = vunpack.c.l.b16 %v384
        %v498 = vunpack.c.h.b16 %v384
        %v499 = vunpack.c.l.b16 %v385
        %v500 = vunpack.c.h.b16 %v385
        %v501 = vunpack.c.l.b16 %v386
        %v502 = vunpack.c.h.b16 %v386
        %v503 = vunpack.c.l.b16 %v387
        %v504 = vunpack.c.h.b16 %v387
        %v505 = vunpack.c.l.b16 %v388
        %v506 = vunpack.c.h.b16 %v388
        %v507 = vunpack.c.l.b16 %v389
        %v508 = vunpack.c.h.b16 %v389
        %v509 = vunpack.c.l.b16 %v390
        %v510 = vunpack.c.h.b16 %v390
        %v511 = vunpack.c.l.b16 %v391
        %v512 = vunpack.c.h.b16 %v391
        %v513 = vunpack.c.l.b16 %v392
        %v514 = vunpack.c.h.b16 %v392
        %v515 = vunpack.c.l.b16 %v393
        %v516 = vunpack.c.h.b16 %v393
        %v517 = vunpack.c.l.b16 %v394
        %v518 = vunpack.c.h.b16 %v394
        %v519 = vunpack.c.l.b16 %v395
        %v520 = vunpack.c.h.b16 %v395
        %v521 = vunpack.c.l.b16 %v396
        %v522 = vunpack.c.h.b16 %v396
        %v523 = vunpack.c.l.b16 %v397
        %v524 = vunpack.c.h.b16 %v397
        %v525 = vunpack.c.l.b16 %v398
        %v526 = vunpack.c.h.b16 %v398
        %v527 = vunpack.c.l.b16 %v399
        %v528 = vunpack.c.h.b16 %v399
        %v529 = vunpack.c.l.b16 %v400
        %v530 = vunpack.c.h.b16 %v400
        %v531 = vunpack.c.l.b16 %v401
        %v532 = vunpack.c.h.b16 %v401
        %v533 = vunpack.c.l.b16 %v402
        %v534 = vunpack.c.h.b16 %v402
        %v535 = vunpack.c.l.b16 %v403
        %v536 = vunpack.c.h.b16 %v403
        %v537 = vunpack.c.l.b16 %v404
        %v538 = vunpack.c.h.b16 %v404
        %v539 = vunpack.c.l.b16 %v405
        %v540 = vunpack.c.h.b16 %v405
        %v541 = vunpack.c.l.b16 %v406
        %v542 = vunpack.c.h.b16 %v406
        %v543 = vunpack.c.l.b16 %v407
        %v544 = vunpack.c.h.b16 %v407
        %v545 = vunpack.c.l.b16 %v408
        %v546 = vunpack.c.h.b16 %v408
        %v547 = vunpack.c.l.b16 %v409
        %v548 = vunpack.c.h.b16 %v409
        %v549 = vunpack.c.l.b16 %v410
        %v550 = vunpack.c.h.b16 %v410
        %v551 = vunpack.c.l.b16 %v411
        %v552 = vunpack.c.h.b16 %v411
        %v553 = vunpack.c.l.b16 %v412
        %v554 = vunpack.c.h.b16 %v412
        %v555 = vunpack.c.l.b16 %v413
        %v556 = vunpack.c.h.b16 %v413
        %v557 = vunpack.c.l.b16 %v414
        %v558 = vunpack.c.h.b16 %v414
        %v559 = vpack.c.b16 %v499, %v495
        %v560 = vpack.c.b16 %v500, %v496
        %v561 = vpack.c.b16 %v501, %v497
        %v562 = vpack.c.b16 %v502, %v498
        %v563 = vpack.c.b16 %v507, %v503
        %v564 = vpack.c.b16 %v508, %v504
        %v565 = vpack.c.b16 %v509, %v505
        %v566 = vpack.c.b16 %v510, %v506
        %v567 = vpack.c.b16 %v515, %v511
        %v568 = vpack.c.b16 %v516, %v512
        %v569 = vpack.c.b16 %v517, %v513
        %v570 = vpack.c.b16 %v518, %v514
        %v571 = vpack.c.b16 %v523, %v519
        %v572 = vpack.c.b16 %v524, %v520
        %v573 = vpack.c.b16 %v525, %v521
        %v574 = vpack.c.b16 %v526, %v522
        %v575 = vpack.c.b16 %v531, %v527
        %v576 = vpack.c.b16 %v532, %v528
        %v577 = vpack.c.b16 %v533, %v529
        %v578 = vpack.c.b16 %v534, %v530
        %v579 = vpack.c.b16 %v539, %v535
        %v580 = vpack.c.b16 %v540, %v536
        %v581 = vpack.c.b16 %v541, %v537
        %v582 = vpack.c.b16 %v542, %v538
        %v583 = vpack.c.b16 %v547, %v543
        %v584 = vpack.c.b16 %v548, %v544
        %v585 = vpack.c.b16 %v549, %v545
        %v586 = vpack.c.b16 %v550, %v546
        %v587 = vpack.c.b16 %v555, %v551
        %v588 = vpack.c.b16 %v556, %v552
        %v589 = vpack.c.b16 %v557, %v553
        %v590 = vpack.c.b16 %v558, %v554
        %623 = vmatpush.bf16.msra.mxu0 %v587
        %624 = vmatpush.bf16.msra.mxu0 %v583
        %625 = vmatpush.bf16.msra.mxu0 %v579
        %626 = vmatpush.bf16.msra.mxu0 %v575
        %627 = vmatpush.bf16.msra.mxu0 %v571
        %628 = vmatpush.bf16.msra.mxu0 %v567
        %629 = vmatpush.bf16.msra.mxu0 %v563
        %630 = vmatpush.bf16.msra.mxu0 %v559
        %631 = vmatmul.bf16.gmra.mxu0 %v447
        %v632 = vpop.f32.mrf.mxu0
        %v633 = vadd.f32 0.0, %v632
        %v634 = vpop.f32.mrf.mxu0
        %v635 = vadd.f32 0.0, %v634
        %636 = vmatmul.bf16.gmra.mxu0 %v448
        %v637 = vpop.f32.mrf.mxu0
        %v638 = vadd.f32 0.0, %v637
        %v639 = vpop.f32.mrf.mxu0
        %v640 = vadd.f32 0.0, %v639
        %641 = vmatmul.bf16.gmra.mxu0 %v449
        %v642 = vpop.f32.mrf.mxu0
        %v643 = vadd.f32 0.0, %v642
        %v644 = vpop.f32.mrf.mxu0
        %v645 = vadd.f32 0.0, %v644
        %646 = vmatmul.bf16.gmra.mxu0 %v450
        %v647 = vpop.f32.mrf.mxu0
        %v648 = vadd.f32 0.0, %v647
        %v649 = vpop.f32.mrf.mxu0
        %v650 = vadd.f32 0.0, %v649
        %651 = vmatmul.bf16.gmra.mxu0 %v451
        %v652 = vpop.f32.mrf.mxu0
        %v653 = vadd.f32 0.0, %v652
        %v654 = vpop.f32.mrf.mxu0
        %v655 = vadd.f32 0.0, %v654
        %656 = vmatmul.bf16.gmra.mxu0 %v452
        %v657 = vpop.f32.mrf.mxu0
        %v658 = vadd.f32 0.0, %v657
        %v659 = vpop.f32.mrf.mxu0
        %v660 = vadd.f32 0.0, %v659
        %661 = vmatmul.bf16.gmra.mxu0 %v453
        %v662 = vpop.f32.mrf.mxu0
        %v663 = vadd.f32 0.0, %v662
        %v664 = vpop.f32.mrf.mxu0
        %v665 = vadd.f32 0.0, %v664
        %666 = vmatmul.bf16.gmra.mxu0 %v454
        %v667 = vpop.f32.mrf.mxu0
        %v668 = vadd.f32 0.0, %v667
        %v669 = vpop.f32.mrf.mxu0
        %v670 = vadd.f32 0.0, %v669
        %671 = vdwg.mxu0
        %672 = vmatpush.bf16.msra.mxu0 %v588
        %673 = vmatpush.bf16.msra.mxu0 %v584
        %674 = vmatpush.bf16.msra.mxu0 %v580
        %675 = vmatpush.bf16.msra.mxu0 %v576
        %676 = vmatpush.bf16.msra.mxu0 %v572
        %677 = vmatpush.bf16.msra.mxu0 %v568
        %678 = vmatpush.bf16.msra.mxu0 %v564
        %679 = vmatpush.bf16.msra.mxu0 %v560
        %680 = vmatmul.bf16.gmra.mxu0 %v447
        %v681 = vpop.f32.mrf.mxu0
        %v682 = vadd.f32 0.0, %v681
        %v683 = vpop.f32.mrf.mxu0
        %v684 = vadd.f32 0.0, %v683
        %685 = vmatmul.bf16.gmra.mxu0 %v448
        %v686 = vpop.f32.mrf.mxu0
        %v687 = vadd.f32 0.0, %v686
        %v688 = vpop.f32.mrf.mxu0
        %v689 = vadd.f32 0.0, %v688
        %690 = vmatmul.bf16.gmra.mxu0 %v449
        %v691 = vpop.f32.mrf.mxu0
        %v692 = vadd.f32 0.0, %v691
        %v693 = vpop.f32.mrf.mxu0
        %v694 = vadd.f32 0.0, %v693
        %695 = vmatmul.bf16.gmra.mxu0 %v450
        %v696 = vpop.f32.mrf.mxu0
        %v697 = vadd.f32 0.0, %v696
        %v698 = vpop.f32.mrf.mxu0
        %v699 = vadd.f32 0.0, %v698
        %700 = vmatmul.bf16.gmra.mxu0 %v451
        %v701 = vpop.f32.mrf.mxu0
        %v702 = vadd.f32 0.0, %v701
        %v703 = vpop.f32.mrf.mxu0
        %v704 = vadd.f32 0.0, %v703
        %705 = vmatmul.bf16.gmra.mxu0 %v452
        %v706 = vpop.f32.mrf.mxu0
        %v707 = vadd.f32 0.0, %v706
        %v708 = vpop.f32.mrf.mxu0
        %v709 = vadd.f32 0.0, %v708
        %710 = vmatmul.bf16.gmra.mxu0 %v453
        %v711 = vpop.f32.mrf.mxu0
        %v712 = vadd.f32 0.0, %v711
        %v713 = vpop.f32.mrf.mxu0
        %v714 = vadd.f32 0.0, %v713
        %715 = vmatmul.bf16.gmra.mxu0 %v454
        %v716 = vpop.f32.mrf.mxu0
        %v717 = vadd.f32 0.0, %v716
        %v718 = vpop.f32.mrf.mxu0
        %v719 = vadd.f32 0.0, %v718
        %720 = vdwg.mxu0
        %721 = vmatpush.bf16.msra.mxu0 %v589
        %722 = vmatpush.bf16.msra.mxu0 %v585
        %723 = vmatpush.bf16.msra.mxu0 %v581
        %724 = vmatpush.bf16.msra.mxu0 %v577
        %725 = vmatpush.bf16.msra.mxu0 %v573
        %726 = vmatpush.bf16.msra.mxu0 %v569
        %727 = vmatpush.bf16.msra.mxu0 %v565
        %728 = vmatpush.bf16.msra.mxu0 %v561
        %729 = vmatmul.bf16.gmra.mxu0 %v447
        %v730 = vpop.f32.mrf.mxu0
        %v731 = vadd.f32 0.0, %v730
        %v732 = vpop.f32.mrf.mxu0
        %v733 = vadd.f32 0.0, %v732
        %734 = vmatmul.bf16.gmra.mxu0 %v448
        %v735 = vpop.f32.mrf.mxu0
        %v736 = vadd.f32 0.0, %v735
        %v737 = vpop.f32.mrf.mxu0
        %v738 = vadd.f32 0.0, %v737
        %739 = vmatmul.bf16.gmra.mxu0 %v449
        %v740 = vpop.f32.mrf.mxu0
        %v741 = vadd.f32 0.0, %v740
        %v742 = vpop.f32.mrf.mxu0
        %v743 = vadd.f32 0.0, %v742
        %744 = vmatmul.bf16.gmra.mxu0 %v450
        %v745 = vpop.f32.mrf.mxu0
        %v746 = vadd.f32 0.0, %v745
        %v747 = vpop.f32.mrf.mxu0
        %v748 = vadd.f32 0.0, %v747
        %749 = vmatmul.bf16.gmra.mxu0 %v451
        %v750 = vpop.f32.mrf.mxu0
        %v751 = vadd.f32 0.0, %v750
        %v752 = vpop.f32.mrf.mxu0
        %v753 = vadd.f32 0.0, %v752
        %754 = vmatmul.bf16.gmra.mxu0 %v452
        %v755 = vpop.f32.mrf.mxu0
        %v756 = vadd.f32 0.0, %v755
        %v757 = vpop.f32.mrf.mxu0
        %v758 = vadd.f32 0.0, %v757
        %759 = vmatmul.bf16.gmra.mxu0 %v453
        %v760 = vpop.f32.mrf.mxu0
        %v761 = vadd.f32 0.0, %v760
        %v762 = vpop.f32.mrf.mxu0
        %v763 = vadd.f32 0.0, %v762
        %764 = vmatmul.bf16.gmra.mxu0 %v454
        %v765 = vpop.f32.mrf.mxu0
        %v766 = vadd.f32 0.0, %v765
        %v767 = vpop.f32.mrf.mxu0
        %v768 = vadd.f32 0.0, %v767
        %769 = vdwg.mxu0
        %770 = vmatpush.bf16.msra.mxu0 %v590
        %771 = vmatpush.bf16.msra.mxu0 %v586
        %772 = vmatpush.bf16.msra.mxu0 %v582
        %773 = vmatpush.bf16.msra.mxu0 %v578
        %774 = vmatpush.bf16.msra.mxu0 %v574
        %775 = vmatpush.bf16.msra.mxu0 %v570
        %776 = vmatpush.bf16.msra.mxu0 %v566
        %777 = vmatpush.bf16.msra.mxu0 %v562
        %778 = vmatmul.bf16.gmra.mxu0 %v447
        %v779 = vpop.f32.mrf.mxu0
        %v780 = vadd.f32 0.0, %v779
        %v781 = vpop.f32.mrf.mxu0
        %v782 = vadd.f32 0.0, %v781
        %783 = vmatmul.bf16.gmra.mxu0 %v448
        %v784 = vpop.f32.mrf.mxu0
        %v785 = vadd.f32 0.0, %v784
        %v786 = vpop.f32.mrf.mxu0
        %v787 = vadd.f32 0.0, %v786
        %788 = vmatmul.bf16.gmra.mxu0 %v449
        %v789 = vpop.f32.mrf.mxu0
        %v790 = vadd.f32 0.0, %v789
        %v791 = vpop.f32.mrf.mxu0
        %v792 = vadd.f32 0.0, %v791
        %793 = vmatmul.bf16.gmra.mxu0 %v450
        %v794 = vpop.f32.mrf.mxu0
        %v795 = vadd.f32 0.0, %v794
        %v796 = vpop.f32.mrf.mxu0
        %v797 = vadd.f32 0.0, %v796
        %798 = vmatmul.bf16.gmra.mxu0 %v451
        %v799 = vpop.f32.mrf.mxu0
        %v800 = vadd.f32 0.0, %v799
        %v801 = vpop.f32.mrf.mxu0
        %v802 = vadd.f32 0.0, %v801
        %803 = vmatmul.bf16.gmra.mxu0 %v452
        %v804 = vpop.f32.mrf.mxu0
        %v805 = vadd.f32 0.0, %v804
        %v806 = vpop.f32.mrf.mxu0
        %v807 = vadd.f32 0.0, %v806
        %808 = vmatmul.bf16.gmra.mxu0 %v453
        %v809 = vpop.f32.mrf.mxu0
        %v810 = vadd.f32 0.0, %v809
        %v811 = vpop.f32.mrf.mxu0
        %v812 = vadd.f32 0.0, %v811
        %813 = vmatmul.bf16.gmra.mxu0 %v454
        %v814 = vpop.f32.mrf.mxu0
        %v815 = vadd.f32 0.0, %v814
        %v816 = vpop.f32.mrf.mxu0
        %v817 = vadd.f32 0.0, %v816
        %818 = vdwg.mxu0
        %vm819 = vcmp.ge.f32.partialorder %v633, 0.0
        %vm820 = vcmp.ge.f32.partialorder %v682, 0.0
        %vm821 = vcmp.ge.f32.partialorder %v731, 0.0
        %vm822 = vcmp.ge.f32.partialorder %v780, 0.0
        %vm823 = vcmp.ge.f32.partialorder %v635, 0.0
        %vm824 = vcmp.ge.f32.partialorder %v684, 0.0
        %vm825 = vcmp.ge.f32.partialorder %v733, 0.0
        %vm826 = vcmp.ge.f32.partialorder %v782, 0.0
        %vm827 = vcmp.ge.f32.partialorder %v638, 0.0
        %vm828 = vcmp.ge.f32.partialorder %v687, 0.0
        %vm829 = vcmp.ge.f32.partialorder %v736, 0.0
        %vm830 = vcmp.ge.f32.partialorder %v785, 0.0
        %vm831 = vcmp.ge.f32.partialorder %v640, 0.0
        %vm832 = vcmp.ge.f32.partialorder %v689, 0.0
        %vm833 = vcmp.ge.f32.partialorder %v738, 0.0
        %vm834 = vcmp.ge.f32.partialorder %v787, 0.0
        %vm835 = vcmp.ge.f32.partialorder %v643, 0.0
        %vm836 = vcmp.ge.f32.partialorder %v692, 0.0
        %vm837 = vcmp.ge.f32.partialorder %v741, 0.0
        %vm838 = vcmp.ge.f32.partialorder %v790, 0.0
        %vm839 = vcmp.ge.f32.partialorder %v645, 0.0
        %vm840 = vcmp.ge.f32.partialorder %v694, 0.0
        %vm841 = vcmp.ge.f32.partialorder %v743, 0.0
        %vm842 = vcmp.ge.f32.partialorder %v792, 0.0
        %vm843 = vcmp.ge.f32.partialorder %v648, 0.0
        %vm844 = vcmp.ge.f32.partialorder %v697, 0.0
        %vm845 = vcmp.ge.f32.partialorder %v746, 0.0
        %vm846 = vcmp.ge.f32.partialorder %v795, 0.0
        %vm847 = vcmp.ge.f32.partialorder %v650, 0.0
        %vm848 = vcmp.ge.f32.partialorder %v699, 0.0
        %vm849 = vcmp.ge.f32.partialorder %v748, 0.0
        %vm850 = vcmp.ge.f32.partialorder %v797, 0.0
        %vm851 = vcmp.ge.f32.partialorder %v653, 0.0
        %vm852 = vcmp.ge.f32.partialorder %v702, 0.0
        %vm853 = vcmp.ge.f32.partialorder %v751, 0.0
        %vm854 = vcmp.ge.f32.partialorder %v800, 0.0
        %vm855 = vcmp.ge.f32.partialorder %v655, 0.0
        %vm856 = vcmp.ge.f32.partialorder %v704, 0.0
        %vm857 = vcmp.ge.f32.partialorder %v753, 0.0
        %vm858 = vcmp.ge.f32.partialorder %v802, 0.0
        %vm859 = vcmp.ge.f32.partialorder %v658, 0.0
        %vm860 = vcmp.ge.f32.partialorder %v707, 0.0
        %vm861 = vcmp.ge.f32.partialorder %v756, 0.0
        %vm862 = vcmp.ge.f32.partialorder %v805, 0.0
        %vm863 = vcmp.ge.f32.partialorder %v660, 0.0
        %vm864 = vcmp.ge.f32.partialorder %v709, 0.0
        %vm865 = vcmp.ge.f32.partialorder %v758, 0.0
        %vm866 = vcmp.ge.f32.partialorder %v807, 0.0
        %vm867 = vcmp.ge.f32.partialorder %v663, 0.0
        %vm868 = vcmp.ge.f32.partialorder %v712, 0.0
        %vm869 = vcmp.ge.f32.partialorder %v761, 0.0
        %vm870 = vcmp.ge.f32.partialorder %v810, 0.0
        %vm871 = vcmp.ge.f32.partialorder %v665, 0.0
        %vm872 = vcmp.ge.f32.partialorder %v714, 0.0
        %vm873 = vcmp.ge.f32.partialorder %v763, 0.0
        %vm874 = vcmp.ge.f32.partialorder %v812, 0.0
        %vm875 = vcmp.ge.f32.partialorder %v668, 0.0
        %vm876 = vcmp.ge.f32.partialorder %v717, 0.0
        %vm877 = vcmp.ge.f32.partialorder %v766, 0.0
        %vm878 = vcmp.ge.f32.partialorder %v815, 0.0
        %vm879 = vcmp.ge.f32.partialorder %v670, 0.0
        %vm880 = vcmp.ge.f32.partialorder %v719, 0.0
        %vm881 = vcmp.ge.f32.partialorder %v768, 0.0
        %vm882 = vcmp.ge.f32.partialorder %v817, 0.0
        %v883 = vmul.f32 %v633, 0.01
        %v884 = vmul.f32 %v682, 0.01
        %v885 = vmul.f32 %v731, 0.01
        %v886 = vmul.f32 %v780, 0.01
        %v887 = vmul.f32 %v635, 0.01
        %v888 = vmul.f32 %v684, 0.01
        %v889 = vmul.f32 %v733, 0.01
        %v890 = vmul.f32 %v782, 0.01
        %v891 = vmul.f32 %v638, 0.01
        %v892 = vmul.f32 %v687, 0.01
        %v893 = vmul.f32 %v736, 0.01
        %v894 = vmul.f32 %v785, 0.01
        %v895 = vmul.f32 %v640, 0.01
        %v896 = vmul.f32 %v689, 0.01
        %v897 = vmul.f32 %v738, 0.01
        %v898 = vmul.f32 %v787, 0.01
        %v899 = vmul.f32 %v643, 0.01
        %v900 = vmul.f32 %v692, 0.01
        %v901 = vmul.f32 %v741, 0.01
        %v902 = vmul.f32 %v790, 0.01
        %v903 = vmul.f32 %v645, 0.01
        %v904 = vmul.f32 %v694, 0.01
        %v905 = vmul.f32 %v743, 0.01
        %v906 = vmul.f32 %v792, 0.01
        %v907 = vmul.f32 %v648, 0.01
        %v908 = vmul.f32 %v697, 0.01
        %v909 = vmul.f32 %v746, 0.01
        %v910 = vmul.f32 %v795, 0.01
        %v911 = vmul.f32 %v650, 0.01
        %v912 = vmul.f32 %v699, 0.01
        %v913 = vmul.f32 %v748, 0.01
        %v914 = vmul.f32 %v797, 0.01
        %v915 = vmul.f32 %v653, 0.01
        %v916 = vmul.f32 %v702, 0.01
        %v917 = vmul.f32 %v751, 0.01
        %v918 = vmul.f32 %v800, 0.01
        %v919 = vmul.f32 %v655, 0.01
        %v920 = vmul.f32 %v704, 0.01
        %v921 = vmul.f32 %v753, 0.01
        %v922 = vmul.f32 %v802, 0.01
        %v923 = vmul.f32 %v658, 0.01
        %v924 = vmul.f32 %v707, 0.01
        %v925 = vmul.f32 %v756, 0.01
        %v926 = vmul.f32 %v805, 0.01
        %v927 = vmul.f32 %v660, 0.01
        %v928 = vmul.f32 %v709, 0.01
        %v929 = vmul.f32 %v758, 0.01
        %v930 = vmul.f32 %v807, 0.01
        %v931 = vmul.f32 %v663, 0.01
        %v932 = vmul.f32 %v712, 0.01
        %v933 = vmul.f32 %v761, 0.01
        %v934 = vmul.f32 %v810, 0.01
        %v935 = vmul.f32 %v665, 0.01
        %v936 = vmul.f32 %v714, 0.01
        %v937 = vmul.f32 %v763, 0.01
        %v938 = vmul.f32 %v812, 0.01
        %v939 = vmul.f32 %v668, 0.01
        %v940 = vmul.f32 %v717, 0.01
        %v941 = vmul.f32 %v766, 0.01
        %v942 = vmul.f32 %v815, 0.01
        %v943 = vmul.f32 %v670, 0.01
        %v944 = vmul.f32 %v719, 0.01
        %v945 = vmul.f32 %v768, 0.01
        %v946 = vmul.f32 %v817, 0.01
        %v947 = vsel %vm819, %v633, %v883
        %v948 = vsel %vm820, %v682, %v884
        %v949 = vsel %vm821, %v731, %v885
        %v950 = vsel %vm822, %v780, %v886
        %v951 = vsel %vm823, %v635, %v887
        %v952 = vsel %vm824, %v684, %v888
        %v953 = vsel %vm825, %v733, %v889
        %v954 = vsel %vm826, %v782, %v890
        %v955 = vsel %vm827, %v638, %v891
        %v956 = vsel %vm828, %v687, %v892
        %v957 = vsel %vm829, %v736, %v893
        %v958 = vsel %vm830, %v785, %v894
        %v959 = vsel %vm831, %v640, %v895
        %v960 = vsel %vm832, %v689, %v896
        %v961 = vsel %vm833, %v738, %v897
        %v962 = vsel %vm834, %v787, %v898
        %v963 = vsel %vm835, %v643, %v899
        %v964 = vsel %vm836, %v692, %v900
        %v965 = vsel %vm837, %v741, %v901
        %v966 = vsel %vm838, %v790, %v902
        %v967 = vsel %vm839, %v645, %v903
        %v968 = vsel %vm840, %v694, %v904
        %v969 = vsel %vm841, %v743, %v905
        %v970 = vsel %vm842, %v792, %v906
        %v971 = vsel %vm843, %v648, %v907
        %v972 = vsel %vm844, %v697, %v908
        %v973 = vsel %vm845, %v746, %v909
        %v974 = vsel %vm846, %v795, %v910
        %v975 = vsel %vm847, %v650, %v911
        %v976 = vsel %vm848, %v699, %v912
        %v977 = vsel %vm849, %v748, %v913
        %v978 = vsel %vm850, %v797, %v914
        %v979 = vsel %vm851, %v653, %v915
        %v980 = vsel %vm852, %v702, %v916
        %v981 = vsel %vm853, %v751, %v917
        %v982 = vsel %vm854, %v800, %v918
        %v983 = vsel %vm855, %v655, %v919
        %v984 = vsel %vm856, %v704, %v920
        %v985 = vsel %vm857, %v753, %v921
        %v986 = vsel %vm858, %v802, %v922
        %v987 = vsel %vm859, %v658, %v923
        %v988 = vsel %vm860, %v707, %v924
        %v989 = vsel %vm861, %v756, %v925
        %v990 = vsel %vm862, %v805, %v926
        %v991 = vsel %vm863, %v660, %v927
        %v992 = vsel %vm864, %v709, %v928
        %v993 = vsel %vm865, %v758, %v929
        %v994 = vsel %vm866, %v807, %v930
        %v995 = vsel %vm867, %v663, %v931
        %v996 = vsel %vm868, %v712, %v932
        %v997 = vsel %vm869, %v761, %v933
        %v998 = vsel %vm870, %v810, %v934
        %v999 = vsel %vm871, %v665, %v935
        %v1000 = vsel %vm872, %v714, %v936
        %v1001 = vsel %vm873, %v763, %v937
        %v1002 = vsel %vm874, %v812, %v938
        %v1003 = vsel %vm875, %v668, %v939
        %v1004 = vsel %vm876, %v717, %v940
        %v1005 = vsel %vm877, %v766, %v941
        %v1006 = vsel %vm878, %v815, %v942
        %v1007 = vsel %vm879, %v670, %v943
        %v1008 = vsel %vm880, %v719, %v944
        %v1009 = vsel %vm881, %v768, %v945
        %v1010 = vsel %vm882, %v817, %v946
        %v1011 = vpack.c.bf16 %v951, %v947
        %v1012 = vpack.c.bf16 %v952, %v948
        %v1013 = vpack.c.bf16 %v953, %v949
        %v1014 = vpack.c.bf16 %v954, %v950
        %v1015 = vpack.c.bf16 %v959, %v955
        %v1016 = vpack.c.bf16 %v960, %v956
        %v1017 = vpack.c.bf16 %v961, %v957
        %v1018 = vpack.c.bf16 %v962, %v958
        %v1019 = vpack.c.bf16 %v967, %v963
        %v1020 = vpack.c.bf16 %v968, %v964
        %v1021 = vpack.c.bf16 %v969, %v965
        %v1022 = vpack.c.bf16 %v970, %v966
        %v1023 = vpack.c.bf16 %v975, %v971
        %v1024 = vpack.c.bf16 %v976, %v972
        %v1025 = vpack.c.bf16 %v977, %v973
        %v1026 = vpack.c.bf16 %v978, %v974
        %v1027 = vpack.c.bf16 %v983, %v979
        %v1028 = vpack.c.bf16 %v984, %v980
        %v1029 = vpack.c.bf16 %v985, %v981
        %v1030 = vpack.c.bf16 %v986, %v982
        %v1031 = vpack.c.bf16 %v991, %v987
        %v1032 = vpack.c.bf16 %v992, %v988
        %v1033 = vpack.c.bf16 %v993, %v989
        %v1034 = vpack.c.bf16 %v994, %v990
        %v1035 = vpack.c.bf16 %v999, %v995
        %v1036 = vpack.c.bf16 %v1000, %v996
        %v1037 = vpack.c.bf16 %v1001, %v997
        %v1038 = vpack.c.bf16 %v1002, %v998
        %v1039 = vpack.c.bf16 %v1007, %v1003
        %v1040 = vpack.c.bf16 %v1008, %v1004
        %v1041 = vpack.c.bf16 %v1009, %v1005
        %v1042 = vpack.c.bf16 %v1010, %v1006
        %v1043 = vld [vmem:[#allocation2] sm:$0xff]
        %v1044 = vld [vmem:[#allocation2 + $0x8] sm:$0xf]
        %v1045 = vld [vmem:[#allocation2 + $0xc] sm:$0xff]
        %v1046 = vld [vmem:[#allocation2 + $0x14] sm:$0xf]
        %v1047 = vld [vmem:[#allocation2 + $0x18] sm:$0xff]
        %v1048 = vld [vmem:[#allocation2 + $0x20] sm:$0xf]
        %v1049 = vld [vmem:[#allocation2 + $0x24] sm:$0xff]
        %v1050 = vld [vmem:[#allocation2 + $0x2c] sm:$0xf]
        %v1051 = vld [vmem:[#allocation2 + $0x30] sm:$0xff]
        %v1052 = vld [vmem:[#allocation2 + $0x38] sm:$0xf]
        %v1053 = vld [vmem:[#allocation2 + $0x3c] sm:$0xff]
        %v1054 = vld [vmem:[#allocation2 + $0x44] sm:$0xf]
        %v1055 = vld [vmem:[#allocation2 + $0x48] sm:$0xff]
        %v1056 = vld [vmem:[#allocation2 + $0x50] sm:$0xf]
        %v1057 = vld [vmem:[#allocation2 + $0x54] sm:$0xff]
        %v1058 = vld [vmem:[#allocation2 + $0x5c] sm:$0xf]
        %v1059 = vld [vmem:[#allocation2 + $0x60] sm:$0xff]
        %v1060 = vld [vmem:[#allocation2 + $0x68] sm:$0xf]
        %v1061 = vld [vmem:[#allocation2 + $0x6c] sm:$0xff]
        %v1062 = vld [vmem:[#allocation2 + $0x74] sm:$0xf]
        %v1063 = vld [vmem:[#allocation2 + $0x78] sm:$0xff]
        %v1064 = vld [vmem:[#allocation2 + $0x80] sm:$0xf]
        %v1065 = vld [vmem:[#allocation2 + $0x84] sm:$0xff]
        %v1066 = vld [vmem:[#allocation2 + $0x8c] sm:$0xf]
        %v1067 = vld [vmem:[#allocation2 + $0x90] sm:$0xff]
        %v1068 = vld [vmem:[#allocation2 + $0x98] sm:$0xf]
        %v1069 = vld [vmem:[#allocation2 + $0x9c] sm:$0xff]
        %v1070 = vld [vmem:[#allocation2 + $0xa4] sm:$0xf]
        %v1071 = vld [vmem:[#allocation2 + $0xa8] sm:$0xff]
        %v1072 = vld [vmem:[#allocation2 + $0xb0] sm:$0xf]
        %v1073 = vld [vmem:[#allocation2 + $0xb4] sm:$0xff]
        %v1074 = vld [vmem:[#allocation2 + $0xbc] sm:$0xf]
        %v1075 = vld [vmem:[#allocation2 + $0xc0] sm:$0xff]
        %v1076 = vld [vmem:[#allocation2 + $0xc8] sm:$0xf]
        %v1077 = vld [vmem:[#allocation2 + $0xcc] sm:$0xff]
        %v1078 = vld [vmem:[#allocation2 + $0xd4] sm:$0xf]
        %v1079 = vld [vmem:[#allocation2 + $0xd8] sm:$0xff]
        %v1080 = vld [vmem:[#allocation2 + $0xe0] sm:$0xf]
        %v1081 = vld [vmem:[#allocation2 + $0xe4] sm:$0xff]
        %v1082 = vld [vmem:[#allocation2 + $0xec] sm:$0xf]
        %v1083 = vld [vmem:[#allocation2 + $0xf0] sm:$0xff]
        %v1084 = vld [vmem:[#allocation2 + $0xf8] sm:$0xf]
        %v1085 = vld [vmem:[#allocation2 + $0xfc] sm:$0xff]
        %v1086 = vld [vmem:[#allocation2 + $0x104] sm:$0xf]
        %v1087 = vld [vmem:[#allocation2 + $0x108] sm:$0xff]
        %v1088 = vld [vmem:[#allocation2 + $0x110] sm:$0xf]
        %v1089 = vld [vmem:[#allocation2 + $0x114] sm:$0xff]
        %v1090 = vld [vmem:[#allocation2 + $0x11c] sm:$0xf]
        %v1091 = vld [vmem:[#allocation2 + $0x120] sm:$0xff]
        %v1092 = vld [vmem:[#allocation2 + $0x128] sm:$0xf]
        %v1093 = vld [vmem:[#allocation2 + $0x12c] sm:$0xff]
        %v1094 = vld [vmem:[#allocation2 + $0x134] sm:$0xf]
        %v1095 = vld [vmem:[#allocation2 + $0x138] sm:$0xff]
        %v1096 = vld [vmem:[#allocation2 + $0x140] sm:$0xf]
        %v1097 = vld [vmem:[#allocation2 + $0x144] sm:$0xff]
        %v1098 = vld [vmem:[#allocation2 + $0x14c] sm:$0xf]
        %v1099 = vld [vmem:[#allocation2 + $0x150] sm:$0xff]
        %v1100 = vld [vmem:[#allocation2 + $0x158] sm:$0xf]
        %v1101 = vld [vmem:[#allocation2 + $0x15c] sm:$0xff]
        %v1102 = vld [vmem:[#allocation2 + $0x164] sm:$0xf]
        %v1103 = vld [vmem:[#allocation2 + $0x168] sm:$0xff]
        %v1104 = vld [vmem:[#allocation2 + $0x170] sm:$0xf]
        %v1105 = vld [vmem:[#allocation2 + $0x174] sm:$0xff]
        %v1106 = vld [vmem:[#allocation2 + $0x17c] sm:$0xf]
        %v1107 = vld [vmem:[#allocation2 + $0x180] sm:$0xff]
        %v1108 = vld [vmem:[#allocation2 + $0x188] sm:$0xf]
        %v1109 = vld [vmem:[#allocation2 + $0x18c] sm:$0xff]
        %v1110 = vld [vmem:[#allocation2 + $0x194] sm:$0xf]
        %v1111 = vld [vmem:[#allocation2 + $0x198] sm:$0xff]
        %v1112 = vld [vmem:[#allocation2 + $0x1a0] sm:$0xf]
        %v1113 = vld [vmem:[#allocation2 + $0x1a4] sm:$0xff]
        %v1114 = vld [vmem:[#allocation2 + $0x1ac] sm:$0xf]
        %v1115 = vld [vmem:[#allocation2 + $0x1b0] sm:$0xff]
        %v1116 = vld [vmem:[#allocation2 + $0x1b8] sm:$0xf]
        %v1117 = vld [vmem:[#allocation2 + $0x1bc] sm:$0xff]
        %v1118 = vld [vmem:[#allocation2 + $0x1c4] sm:$0xf]
        %v1119 = vld [vmem:[#allocation2 + $0x1c8] sm:$0xff]
        %v1120 = vld [vmem:[#allocation2 + $0x1d0] sm:$0xf]
        %v1121 = vld [vmem:[#allocation2 + $0x1d4] sm:$0xff]
        %v1122 = vld [vmem:[#allocation2 + $0x1dc] sm:$0xf]
        %v1123 = vld [vmem:[#allocation2 + $0x1e0] sm:$0xff]
        %v1124 = vld [vmem:[#allocation2 + $0x1e8] sm:$0xf]
        %v1125 = vld [vmem:[#allocation2 + $0x1ec] sm:$0xff]
        %v1126 = vld [vmem:[#allocation2 + $0x1f4] sm:$0xf]
        %v1127 = vld [vmem:[#allocation2 + $0x1f8] sm:$0xff]
        %v1128 = vld [vmem:[#allocation2 + $0x200] sm:$0xf]
        %v1129 = vld [vmem:[#allocation2 + $0x204] sm:$0xff]
        %v1130 = vld [vmem:[#allocation2 + $0x20c] sm:$0xf]
        %v1131 = vld [vmem:[#allocation2 + $0x210] sm:$0xff]
        %v1132 = vld [vmem:[#allocation2 + $0x218] sm:$0xf]
        %v1133 = vld [vmem:[#allocation2 + $0x21c] sm:$0xff]
        %v1134 = vld [vmem:[#allocation2 + $0x224] sm:$0xf]
        %v1135 = vld [vmem:[#allocation2 + $0x228] sm:$0xff]
        %v1136 = vld [vmem:[#allocation2 + $0x230] sm:$0xf]
        %v1137 = vld [vmem:[#allocation2 + $0x234] sm:$0xff]
        %v1138 = vld [vmem:[#allocation2 + $0x23c] sm:$0xf]
        %v1139 = vld [vmem:[#allocation2 + $0x240] sm:$0xff]
        %v1140 = vld [vmem:[#allocation2 + $0x248] sm:$0xf]
        %v1141 = vld [vmem:[#allocation2 + $0x24c] sm:$0xff]
        %v1142 = vld [vmem:[#allocation2 + $0x254] sm:$0xf]
        %v1143 = vld [vmem:[#allocation2 + $0x258] sm:$0xff]
        %v1144 = vld [vmem:[#allocation2 + $0x260] sm:$0xf]
        %v1145 = vld [vmem:[#allocation2 + $0x264] sm:$0xff]
        %v1146 = vld [vmem:[#allocation2 + $0x26c] sm:$0xf]
        %v1147 = vld [vmem:[#allocation2 + $0x270] sm:$0xff]
        %v1148 = vld [vmem:[#allocation2 + $0x278] sm:$0xf]
        %v1149 = vld [vmem:[#allocation2 + $0x27c] sm:$0xff]
        %v1150 = vld [vmem:[#allocation2 + $0x284] sm:$0xf]
        %v1151 = vld [vmem:[#allocation2 + $0x288] sm:$0xff]
        %v1152 = vld [vmem:[#allocation2 + $0x290] sm:$0xf]
        %v1153 = vld [vmem:[#allocation2 + $0x294] sm:$0xff]
        %v1154 = vld [vmem:[#allocation2 + $0x29c] sm:$0xf]
        %v1155 = vld [vmem:[#allocation2 + $0x2a0] sm:$0xff]
        %v1156 = vld [vmem:[#allocation2 + $0x2a8] sm:$0xf]
        %v1157 = vld [vmem:[#allocation2 + $0x2ac] sm:$0xff]
        %v1158 = vld [vmem:[#allocation2 + $0x2b4] sm:$0xf]
        %v1159 = vld [vmem:[#allocation2 + $0x2b8] sm:$0xff]
        %v1160 = vld [vmem:[#allocation2 + $0x2c0] sm:$0xf]
        %v1161 = vld [vmem:[#allocation2 + $0x2c4] sm:$0xff]
        %v1162 = vld [vmem:[#allocation2 + $0x2cc] sm:$0xf]
        %v1163 = vld [vmem:[#allocation2 + $0x2d0] sm:$0xff]
        %v1164 = vld [vmem:[#allocation2 + $0x2d8] sm:$0xf]
        %v1165 = vld [vmem:[#allocation2 + $0x2dc] sm:$0xff]
        %v1166 = vld [vmem:[#allocation2 + $0x2e4] sm:$0xf]
        %v1167 = vld [vmem:[#allocation2 + $0x2e8] sm:$0xff]
        %v1168 = vld [vmem:[#allocation2 + $0x2f0] sm:$0xf]
        %v1169 = vld [vmem:[#allocation2 + $0x2f4] sm:$0xff]
        %v1170 = vld [vmem:[#allocation2 + $0x2fc] sm:$0xf]
        %v1299 = vunpack.c.l.b16 %v1043
        %v1300 = vunpack.c.h.b16 %v1043
        %v1301 = vunpack.c.l.b16 %v1044
        %v1302 = vunpack.c.l.b16 %v1045
        %v1303 = vunpack.c.h.b16 %v1045
        %v1304 = vunpack.c.l.b16 %v1046
        %v1305 = vunpack.c.l.b16 %v1047
        %v1306 = vunpack.c.h.b16 %v1047
        %v1307 = vunpack.c.l.b16 %v1048
        %v1308 = vunpack.c.l.b16 %v1049
        %v1309 = vunpack.c.h.b16 %v1049
        %v1310 = vunpack.c.l.b16 %v1050
        %v1311 = vunpack.c.l.b16 %v1051
        %v1312 = vunpack.c.h.b16 %v1051
        %v1313 = vunpack.c.l.b16 %v1052
        %v1314 = vunpack.c.l.b16 %v1053
        %v1315 = vunpack.c.h.b16 %v1053
        %v1316 = vunpack.c.l.b16 %v1054
        %v1317 = vunpack.c.l.b16 %v1055
        %v1318 = vunpack.c.h.b16 %v1055
        %v1319 = vunpack.c.l.b16 %v1056
        %v1320 = vunpack.c.l.b16 %v1057
        %v1321 = vunpack.c.h.b16 %v1057
        %v1322 = vunpack.c.l.b16 %v1058
        %v1323 = vunpack.c.l.b16 %v1059
        %v1324 = vunpack.c.h.b16 %v1059
        %v1325 = vunpack.c.l.b16 %v1060
        %v1326 = vunpack.c.l.b16 %v1061
        %v1327 = vunpack.c.h.b16 %v1061
        %v1328 = vunpack.c.l.b16 %v1062
        %v1329 = vunpack.c.l.b16 %v1063
        %v1330 = vunpack.c.h.b16 %v1063
        %v1331 = vunpack.c.l.b16 %v1064
        %v1332 = vunpack.c.l.b16 %v1065
        %v1333 = vunpack.c.h.b16 %v1065
        %v1334 = vunpack.c.l.b16 %v1066
        %v1335 = vunpack.c.l.b16 %v1067
        %v1336 = vunpack.c.h.b16 %v1067
        %v1337 = vunpack.c.l.b16 %v1068
        %v1338 = vunpack.c.l.b16 %v1069
        %v1339 = vunpack.c.h.b16 %v1069
        %v1340 = vunpack.c.l.b16 %v1070
        %v1341 = vunpack.c.l.b16 %v1071
        %v1342 = vunpack.c.h.b16 %v1071
        %v1343 = vunpack.c.l.b16 %v1072
        %v1344 = vunpack.c.l.b16 %v1073
        %v1345 = vunpack.c.h.b16 %v1073
        %v1346 = vunpack.c.l.b16 %v1074
        %v1347 = vunpack.c.l.b16 %v1075
        %v1348 = vunpack.c.h.b16 %v1075
        %v1349 = vunpack.c.l.b16 %v1076
        %v1350 = vunpack.c.l.b16 %v1077
        %v1351 = vunpack.c.h.b16 %v1077
        %v1352 = vunpack.c.l.b16 %v1078
        %v1353 = vunpack.c.l.b16 %v1079
        %v1354 = vunpack.c.h.b16 %v1079
        %v1355 = vunpack.c.l.b16 %v1080
        %v1356 = vunpack.c.l.b16 %v1081
        %v1357 = vunpack.c.h.b16 %v1081
        %v1358 = vunpack.c.l.b16 %v1082
        %v1359 = vunpack.c.l.b16 %v1083
        %v1360 = vunpack.c.h.b16 %v1083
        %v1361 = vunpack.c.l.b16 %v1084
        %v1362 = vunpack.c.l.b16 %v1085
        %v1363 = vunpack.c.h.b16 %v1085
        %v1364 = vunpack.c.l.b16 %v1086
        %v1365 = vunpack.c.l.b16 %v1087
        %v1366 = vunpack.c.h.b16 %v1087
        %v1367 = vunpack.c.l.b16 %v1088
        %v1368 = vunpack.c.l.b16 %v1089
        %v1369 = vunpack.c.h.b16 %v1089
        %v1370 = vunpack.c.l.b16 %v1090
        %v1371 = vunpack.c.l.b16 %v1091
        %v1372 = vunpack.c.h.b16 %v1091
        %v1373 = vunpack.c.l.b16 %v1092
        %v1374 = vunpack.c.l.b16 %v1093
        %v1375 = vunpack.c.h.b16 %v1093
        %v1376 = vunpack.c.l.b16 %v1094
        %v1377 = vunpack.c.l.b16 %v1095
        %v1378 = vunpack.c.h.b16 %v1095
        %v1379 = vunpack.c.l.b16 %v1096
        %v1380 = vunpack.c.l.b16 %v1097
        %v1381 = vunpack.c.h.b16 %v1097
        %v1382 = vunpack.c.l.b16 %v1098
        %v1383 = vunpack.c.l.b16 %v1099
        %v1384 = vunpack.c.h.b16 %v1099
        %v1385 = vunpack.c.l.b16 %v1100
        %v1386 = vunpack.c.l.b16 %v1101
        %v1387 = vunpack.c.h.b16 %v1101
        %v1388 = vunpack.c.l.b16 %v1102
        %v1389 = vunpack.c.l.b16 %v1103
        %v1390 = vunpack.c.h.b16 %v1103
        %v1391 = vunpack.c.l.b16 %v1104
        %v1392 = vunpack.c.l.b16 %v1105
        %v1393 = vunpack.c.h.b16 %v1105
        %v1394 = vunpack.c.l.b16 %v1106
        %v1395 = vunpack.c.l.b16 %v1107
        %v1396 = vunpack.c.h.b16 %v1107
        %v1397 = vunpack.c.l.b16 %v1108
        %v1398 = vunpack.c.l.b16 %v1109
        %v1399 = vunpack.c.h.b16 %v1109
        %v1400 = vunpack.c.l.b16 %v1110
        %v1401 = vunpack.c.l.b16 %v1111
        %v1402 = vunpack.c.h.b16 %v1111
        %v1403 = vunpack.c.l.b16 %v1112
        %v1404 = vunpack.c.l.b16 %v1113
        %v1405 = vunpack.c.h.b16 %v1113
        %v1406 = vunpack.c.l.b16 %v1114
        %v1407 = vunpack.c.l.b16 %v1115
        %v1408 = vunpack.c.h.b16 %v1115
        %v1409 = vunpack.c.l.b16 %v1116
        %v1410 = vunpack.c.l.b16 %v1117
        %v1411 = vunpack.c.h.b16 %v1117
        %v1412 = vunpack.c.l.b16 %v1118
        %v1413 = vunpack.c.l.b16 %v1119
        %v1414 = vunpack.c.h.b16 %v1119
        %v1415 = vunpack.c.l.b16 %v1120
        %v1416 = vunpack.c.l.b16 %v1121
        %v1417 = vunpack.c.h.b16 %v1121
        %v1418 = vunpack.c.l.b16 %v1122
        %v1419 = vunpack.c.l.b16 %v1123
        %v1420 = vunpack.c.h.b16 %v1123
        %v1421 = vunpack.c.l.b16 %v1124
        %v1422 = vunpack.c.l.b16 %v1125
        %v1423 = vunpack.c.h.b16 %v1125
        %v1424 = vunpack.c.l.b16 %v1126
        %v1425 = vunpack.c.l.b16 %v1127
        %v1426 = vunpack.c.h.b16 %v1127
        %v1427 = vunpack.c.l.b16 %v1128
        %v1428 = vunpack.c.l.b16 %v1129
        %v1429 = vunpack.c.h.b16 %v1129
        %v1430 = vunpack.c.l.b16 %v1130
        %v1431 = vunpack.c.l.b16 %v1131
        %v1432 = vunpack.c.h.b16 %v1131
        %v1433 = vunpack.c.l.b16 %v1132
        %v1434 = vunpack.c.l.b16 %v1133
        %v1435 = vunpack.c.h.b16 %v1133
        %v1436 = vunpack.c.l.b16 %v1134
        %v1437 = vunpack.c.l.b16 %v1135
        %v1438 = vunpack.c.h.b16 %v1135
        %v1439 = vunpack.c.l.b16 %v1136
        %v1440 = vunpack.c.l.b16 %v1137
        %v1441 = vunpack.c.h.b16 %v1137
        %v1442 = vunpack.c.l.b16 %v1138
        %v1443 = vunpack.c.l.b16 %v1139
        %v1444 = vunpack.c.h.b16 %v1139
        %v1445 = vunpack.c.l.b16 %v1140
        %v1446 = vunpack.c.l.b16 %v1141
        %v1447 = vunpack.c.h.b16 %v1141
        %v1448 = vunpack.c.l.b16 %v1142
        %v1449 = vunpack.c.l.b16 %v1143
        %v1450 = vunpack.c.h.b16 %v1143
        %v1451 = vunpack.c.l.b16 %v1144
        %v1452 = vunpack.c.l.b16 %v1145
        %v1453 = vunpack.c.h.b16 %v1145
        %v1454 = vunpack.c.l.b16 %v1146
        %v1455 = vunpack.c.l.b16 %v1147
        %v1456 = vunpack.c.h.b16 %v1147
        %v1457 = vunpack.c.l.b16 %v1148
        %v1458 = vunpack.c.l.b16 %v1149
        %v1459 = vunpack.c.h.b16 %v1149
        %v1460 = vunpack.c.l.b16 %v1150
        %v1461 = vunpack.c.l.b16 %v1151
        %v1462 = vunpack.c.h.b16 %v1151
        %v1463 = vunpack.c.l.b16 %v1152
        %v1464 = vunpack.c.l.b16 %v1153
        %v1465 = vunpack.c.h.b16 %v1153
        %v1466 = vunpack.c.l.b16 %v1154
        %v1467 = vunpack.c.l.b16 %v1155
        %v1468 = vunpack.c.h.b16 %v1155
        %v1469 = vunpack.c.l.b16 %v1156
        %v1470 = vunpack.c.l.b16 %v1157
        %v1471 = vunpack.c.h.b16 %v1157
        %v1472 = vunpack.c.l.b16 %v1158
        %v1473 = vunpack.c.l.b16 %v1159
        %v1474 = vunpack.c.h.b16 %v1159
        %v1475 = vunpack.c.l.b16 %v1160
        %v1476 = vunpack.c.l.b16 %v1161
        %v1477 = vunpack.c.h.b16 %v1161
        %v1478 = vunpack.c.l.b16 %v1162
        %v1479 = vunpack.c.l.b16 %v1163
        %v1480 = vunpack.c.h.b16 %v1163
        %v1481 = vunpack.c.l.b16 %v1164
        %v1482 = vunpack.c.l.b16 %v1165
        %v1483 = vunpack.c.h.b16 %v1165
        %v1484 = vunpack.c.l.b16 %v1166
        %v1485 = vunpack.c.l.b16 %v1167
        %v1486 = vunpack.c.h.b16 %v1167
        %v1487 = vunpack.c.l.b16 %v1168
        %v1488 = vunpack.c.l.b16 %v1169
        %v1489 = vunpack.c.h.b16 %v1169
        %v1490 = vunpack.c.l.b16 %v1170
        %v1491 = vpack.c.b16 %v1302, %v1299
        %v1492 = vpack.c.b16 %v1303, %v1300
        %v1493 = vpack.c.b16 %v1304, %v1301
        %v1494 = vpack.c.b16 %v1308, %v1305
        %v1495 = vpack.c.b16 %v1309, %v1306
        %v1496 = vpack.c.b16 %v1310, %v1307
        %v1497 = vpack.c.b16 %v1314, %v1311
        %v1498 = vpack.c.b16 %v1315, %v1312
        %v1499 = vpack.c.b16 %v1316, %v1313
        %v1500 = vpack.c.b16 %v1320, %v1317
        %v1501 = vpack.c.b16 %v1321, %v1318
        %v1502 = vpack.c.b16 %v1322, %v1319
        %v1503 = vpack.c.b16 %v1326, %v1323
        %v1504 = vpack.c.b16 %v1327, %v1324
        %v1505 = vpack.c.b16 %v1328, %v1325
        %v1506 = vpack.c.b16 %v1332, %v1329
        %v1507 = vpack.c.b16 %v1333, %v1330
        %v1508 = vpack.c.b16 %v1334, %v1331
        %v1509 = vpack.c.b16 %v1338, %v1335
        %v1510 = vpack.c.b16 %v1339, %v1336
        %v1511 = vpack.c.b16 %v1340, %v1337
        %v1512 = vpack.c.b16 %v1344, %v1341
        %v1513 = vpack.c.b16 %v1345, %v1342
        %v1514 = vpack.c.b16 %v1346, %v1343
        %v1515 = vpack.c.b16 %v1350, %v1347
        %v1516 = vpack.c.b16 %v1351, %v1348
        %v1517 = vpack.c.b16 %v1352, %v1349
        %v1518 = vpack.c.b16 %v1356, %v1353
        %v1519 = vpack.c.b16 %v1357, %v1354
        %v1520 = vpack.c.b16 %v1358, %v1355
        %v1521 = vpack.c.b16 %v1362, %v1359
        %v1522 = vpack.c.b16 %v1363, %v1360
        %v1523 = vpack.c.b16 %v1364, %v1361
        %v1524 = vpack.c.b16 %v1368, %v1365
        %v1525 = vpack.c.b16 %v1369, %v1366
        %v1526 = vpack.c.b16 %v1370, %v1367
        %v1527 = vpack.c.b16 %v1374, %v1371
        %v1528 = vpack.c.b16 %v1375, %v1372
        %v1529 = vpack.c.b16 %v1376, %v1373
        %v1530 = vpack.c.b16 %v1380, %v1377
        %v1531 = vpack.c.b16 %v1381, %v1378
        %v1532 = vpack.c.b16 %v1382, %v1379
        %v1533 = vpack.c.b16 %v1386, %v1383
        %v1534 = vpack.c.b16 %v1387, %v1384
        %v1535 = vpack.c.b16 %v1388, %v1385
        %v1536 = vpack.c.b16 %v1392, %v1389
        %v1537 = vpack.c.b16 %v1393, %v1390
        %v1538 = vpack.c.b16 %v1394, %v1391
        %v1539 = vpack.c.b16 %v1398, %v1395
        %v1540 = vpack.c.b16 %v1399, %v1396
        %v1541 = vpack.c.b16 %v1400, %v1397
        %v1542 = vpack.c.b16 %v1404, %v1401
        %v1543 = vpack.c.b16 %v1405, %v1402
        %v1544 = vpack.c.b16 %v1406, %v1403
        %v1545 = vpack.c.b16 %v1410, %v1407
        %v1546 = vpack.c.b16 %v1411, %v1408
        %v1547 = vpack.c.b16 %v1412, %v1409
        %v1548 = vpack.c.b16 %v1416, %v1413
        %v1549 = vpack.c.b16 %v1417, %v1414
        %v1550 = vpack.c.b16 %v1418, %v1415
        %v1551 = vpack.c.b16 %v1422, %v1419
        %v1552 = vpack.c.b16 %v1423, %v1420
        %v1553 = vpack.c.b16 %v1424, %v1421
        %v1554 = vpack.c.b16 %v1428, %v1425
        %v1555 = vpack.c.b16 %v1429, %v1426
        %v1556 = vpack.c.b16 %v1430, %v1427
        %v1557 = vpack.c.b16 %v1434, %v1431
        %v1558 = vpack.c.b16 %v1435, %v1432
        %v1559 = vpack.c.b16 %v1436, %v1433
        %v1560 = vpack.c.b16 %v1440, %v1437
        %v1561 = vpack.c.b16 %v1441, %v1438
        %v1562 = vpack.c.b16 %v1442, %v1439
        %v1563 = vpack.c.b16 %v1446, %v1443
        %v1564 = vpack.c.b16 %v1447, %v1444
        %v1565 = vpack.c.b16 %v1448, %v1445
        %v1566 = vpack.c.b16 %v1452, %v1449
        %v1567 = vpack.c.b16 %v1453, %v1450
        %v1568 = vpack.c.b16 %v1454, %v1451
        %v1569 = vpack.c.b16 %v1458, %v1455
        %v1570 = vpack.c.b16 %v1459, %v1456
        %v1571 = vpack.c.b16 %v1460, %v1457
        %v1572 = vpack.c.b16 %v1464, %v1461
        %v1573 = vpack.c.b16 %v1465, %v1462
        %v1574 = vpack.c.b16 %v1466, %v1463
        %v1575 = vpack.c.b16 %v1470, %v1467
        %v1576 = vpack.c.b16 %v1471, %v1468
        %v1577 = vpack.c.b16 %v1472, %v1469
        %v1578 = vpack.c.b16 %v1476, %v1473
        %v1579 = vpack.c.b16 %v1477, %v1474
        %v1580 = vpack.c.b16 %v1478, %v1475
        %v1581 = vpack.c.b16 %v1482, %v1479
        %v1582 = vpack.c.b16 %v1483, %v1480
        %v1583 = vpack.c.b16 %v1484, %v1481
        %v1584 = vpack.c.b16 %v1488, %v1485
        %v1585 = vpack.c.b16 %v1489, %v1486
        %v1586 = vpack.c.b16 %v1490, %v1487
        %1683 = vmatpush.bf16.msra.mxu0 %v1512
        %1684 = vmatpush.bf16.msra.mxu0 %v1509
        %1685 = vmatpush.bf16.msra.mxu0 %v1506
        %1686 = vmatpush.bf16.msra.mxu0 %v1503
        %1687 = vmatpush.bf16.msra.mxu0 %v1500
        %1688 = vmatpush.bf16.msra.mxu0 %v1497
        %1689 = vmatpush.bf16.msra.mxu0 %v1494
        %1690 = vmatpush.bf16.msra.mxu0 %v1491
        %1691 = vmatmul.bf16.gmra.mxu0 %v1011
        %v1692 = vpop.f32.mrf.mxu0
        %v1693 = vadd.f32 0.0, %v1692
        %v1694 = vpop.f32.mrf.mxu0
        %v1695 = vadd.f32 0.0, %v1694
        %1696 = vmatmul.bf16.gmra.mxu0 %v1015
        %v1697 = vpop.f32.mrf.mxu0
        %v1698 = vadd.f32 0.0, %v1697
        %v1699 = vpop.f32.mrf.mxu0
        %v1700 = vadd.f32 0.0, %v1699
        %1701 = vmatmul.bf16.gmra.mxu0 %v1019
        %v1702 = vpop.f32.mrf.mxu0
        %v1703 = vadd.f32 0.0, %v1702
        %v1704 = vpop.f32.mrf.mxu0
        %v1705 = vadd.f32 0.0, %v1704
        %1706 = vmatmul.bf16.gmra.mxu0 %v1023
        %v1707 = vpop.f32.mrf.mxu0
        %v1708 = vadd.f32 0.0, %v1707
        %v1709 = vpop.f32.mrf.mxu0
        %v1710 = vadd.f32 0.0, %v1709
        %1711 = vmatmul.bf16.gmra.mxu0 %v1027
        %v1712 = vpop.f32.mrf.mxu0
        %v1713 = vadd.f32 0.0, %v1712
        %v1714 = vpop.f32.mrf.mxu0
        %v1715 = vadd.f32 0.0, %v1714
        %1716 = vmatmul.bf16.gmra.mxu0 %v1031
        %v1717 = vpop.f32.mrf.mxu0
        %v1718 = vadd.f32 0.0, %v1717
        %v1719 = vpop.f32.mrf.mxu0
        %v1720 = vadd.f32 0.0, %v1719
        %1721 = vmatmul.bf16.gmra.mxu0 %v1035
        %v1722 = vpop.f32.mrf.mxu0
        %v1723 = vadd.f32 0.0, %v1722
        %v1724 = vpop.f32.mrf.mxu0
        %v1725 = vadd.f32 0.0, %v1724
        %1726 = vmatmul.bf16.gmra.mxu0 %v1039
        %v1727 = vpop.f32.mrf.mxu0
        %v1728 = vadd.f32 0.0, %v1727
        %v1729 = vpop.f32.mrf.mxu0
        %v1730 = vadd.f32 0.0, %v1729
        %1731 = vdwg.mxu0
        %1732 = vmatpush.bf16.msra.mxu0 %v1536
        %1733 = vmatpush.bf16.msra.mxu0 %v1533
        %1734 = vmatpush.bf16.msra.mxu0 %v1530
        %1735 = vmatpush.bf16.msra.mxu0 %v1527
        %1736 = vmatpush.bf16.msra.mxu0 %v1524
        %1737 = vmatpush.bf16.msra.mxu0 %v1521
        %1738 = vmatpush.bf16.msra.mxu0 %v1518
        %1739 = vmatpush.bf16.msra.mxu0 %v1515
        %1740 = vmatmul.bf16.gmra.mxu0 %v1012
        %v1741 = vpop.f32.mrf.mxu0
        %v1742 = vadd.f32 %v1693, %v1741
        %v1743 = vpop.f32.mrf.mxu0
        %v1744 = vadd.f32 %v1695, %v1743
        %1745 = vmatmul.bf16.gmra.mxu0 %v1016
        %v1746 = vpop.f32.mrf.mxu0
        %v1747 = vadd.f32 %v1698, %v1746
        %v1748 = vpop.f32.mrf.mxu0
        %v1749 = vadd.f32 %v1700, %v1748
        %1750 = vmatmul.bf16.gmra.mxu0 %v1020
        %v1751 = vpop.f32.mrf.mxu0
        %v1752 = vadd.f32 %v1703, %v1751
        %v1753 = vpop.f32.mrf.mxu0
        %v1754 = vadd.f32 %v1705, %v1753
        %1755 = vmatmul.bf16.gmra.mxu0 %v1024
        %v1756 = vpop.f32.mrf.mxu0
        %v1757 = vadd.f32 %v1708, %v1756
        %v1758 = vpop.f32.mrf.mxu0
        %v1759 = vadd.f32 %v1710, %v1758
        %1760 = vmatmul.bf16.gmra.mxu0 %v1028
        %v1761 = vpop.f32.mrf.mxu0
        %v1762 = vadd.f32 %v1713, %v1761
        %v1763 = vpop.f32.mrf.mxu0
        %v1764 = vadd.f32 %v1715, %v1763
        %1765 = vmatmul.bf16.gmra.mxu0 %v1032
        %v1766 = vpop.f32.mrf.mxu0
        %v1767 = vadd.f32 %v1718, %v1766
        %v1768 = vpop.f32.mrf.mxu0
        %v1769 = vadd.f32 %v1720, %v1768
        %1770 = vmatmul.bf16.gmra.mxu0 %v1036
        %v1771 = vpop.f32.mrf.mxu0
        %v1772 = vadd.f32 %v1723, %v1771
        %v1773 = vpop.f32.mrf.mxu0
        %v1774 = vadd.f32 %v1725, %v1773
        %1775 = vmatmul.bf16.gmra.mxu0 %v1040
        %v1776 = vpop.f32.mrf.mxu0
        %v1777 = vadd.f32 %v1728, %v1776
        %v1778 = vpop.f32.mrf.mxu0
        %v1779 = vadd.f32 %v1730, %v1778
        %1780 = vdwg.mxu0
        %1781 = vmatpush.bf16.msra.mxu0 %v1560
        %1782 = vmatpush.bf16.msra.mxu0 %v1557
        %1783 = vmatpush.bf16.msra.mxu0 %v1554
        %1784 = vmatpush.bf16.msra.mxu0 %v1551
        %1785 = vmatpush.bf16.msra.mxu0 %v1548
        %1786 = vmatpush.bf16.msra.mxu0 %v1545
        %1787 = vmatpush.bf16.msra.mxu0 %v1542
        %1788 = vmatpush.bf16.msra.mxu0 %v1539
        %1789 = vmatmul.bf16.gmra.mxu0 %v1013
        %v1790 = vpop.f32.mrf.mxu0
        %v1791 = vadd.f32 %v1742, %v1790
        %v1792 = vpop.f32.mrf.mxu0
        %v1793 = vadd.f32 %v1744, %v1792
        %1794 = vmatmul.bf16.gmra.mxu0 %v1017
        %v1795 = vpop.f32.mrf.mxu0
        %v1796 = vadd.f32 %v1747, %v1795
        %v1797 = vpop.f32.mrf.mxu0
        %v1798 = vadd.f32 %v1749, %v1797
        %1799 = vmatmul.bf16.gmra.mxu0 %v1021
        %v1800 = vpop.f32.mrf.mxu0
        %v1801 = vadd.f32 %v1752, %v1800
        %v1802 = vpop.f32.mrf.mxu0
        %v1803 = vadd.f32 %v1754, %v1802
        %1804 = vmatmul.bf16.gmra.mxu0 %v1025
        %v1805 = vpop.f32.mrf.mxu0
        %v1806 = vadd.f32 %v1757, %v1805
        %v1807 = vpop.f32.mrf.mxu0
        %v1808 = vadd.f32 %v1759, %v1807
        %1809 = vmatmul.bf16.gmra.mxu0 %v1029
        %v1810 = vpop.f32.mrf.mxu0
        %v1811 = vadd.f32 %v1762, %v1810
        %v1812 = vpop.f32.mrf.mxu0
        %v1813 = vadd.f32 %v1764, %v1812
        %1814 = vmatmul.bf16.gmra.mxu0 %v1033
        %v1815 = vpop.f32.mrf.mxu0
        %v1816 = vadd.f32 %v1767, %v1815
        %v1817 = vpop.f32.mrf.mxu0
        %v1818 = vadd.f32 %v1769, %v1817
        %1819 = vmatmul.bf16.gmra.mxu0 %v1037
        %v1820 = vpop.f32.mrf.mxu0
        %v1821 = vadd.f32 %v1772, %v1820
        %v1822 = vpop.f32.mrf.mxu0
        %v1823 = vadd.f32 %v1774, %v1822
        %1824 = vmatmul.bf16.gmra.mxu0 %v1041
        %v1825 = vpop.f32.mrf.mxu0
        %v1826 = vadd.f32 %v1777, %v1825
        %v1827 = vpop.f32.mrf.mxu0
        %v1828 = vadd.f32 %v1779, %v1827
        %1829 = vdwg.mxu0
        %1830 = vmatpush.bf16.msra.mxu0 %v1584
        %1831 = vmatpush.bf16.msra.mxu0 %v1581
        %1832 = vmatpush.bf16.msra.mxu0 %v1578
        %1833 = vmatpush.bf16.msra.mxu0 %v1575
        %1834 = vmatpush.bf16.msra.mxu0 %v1572
        %1835 = vmatpush.bf16.msra.mxu0 %v1569
        %1836 = vmatpush.bf16.msra.mxu0 %v1566
        %1837 = vmatpush.bf16.msra.mxu0 %v1563
        %1838 = vmatmul.bf16.gmra.mxu0 %v1014
        %v1839 = vpop.f32.mrf.mxu0
        %v1840 = vadd.f32 %v1791, %v1839
        %v1841 = vpop.f32.mrf.mxu0
        %v1842 = vadd.f32 %v1793, %v1841
        %1843 = vmatmul.bf16.gmra.mxu0 %v1018
        %v1844 = vpop.f32.mrf.mxu0
        %v1845 = vadd.f32 %v1796, %v1844
        %v1846 = vpop.f32.mrf.mxu0
        %v1847 = vadd.f32 %v1798, %v1846
        %1848 = vmatmul.bf16.gmra.mxu0 %v1022
        %v1849 = vpop.f32.mrf.mxu0
        %v1850 = vadd.f32 %v1801, %v1849
        %v1851 = vpop.f32.mrf.mxu0
        %v1852 = vadd.f32 %v1803, %v1851
        %1853 = vmatmul.bf16.gmra.mxu0 %v1026
        %v1854 = vpop.f32.mrf.mxu0
        %v1855 = vadd.f32 %v1806, %v1854
        %v1856 = vpop.f32.mrf.mxu0
        %v1857 = vadd.f32 %v1808, %v1856
        %1858 = vmatmul.bf16.gmra.mxu0 %v1030
        %v1859 = vpop.f32.mrf.mxu0
        %v1860 = vadd.f32 %v1811, %v1859
        %v1861 = vpop.f32.mrf.mxu0
        %v1862 = vadd.f32 %v1813, %v1861
        %1863 = vmatmul.bf16.gmra.mxu0 %v1034
        %v1864 = vpop.f32.mrf.mxu0
        %v1865 = vadd.f32 %v1816, %v1864
        %v1866 = vpop.f32.mrf.mxu0
        %v1867 = vadd.f32 %v1818, %v1866
        %1868 = vmatmul.bf16.gmra.mxu0 %v1038
        %v1869 = vpop.f32.mrf.mxu0
        %v1870 = vadd.f32 %v1821, %v1869
        %v1871 = vpop.f32.mrf.mxu0
        %v1872 = vadd.f32 %v1823, %v1871
        %1873 = vmatmul.bf16.gmra.mxu0 %v1042
        %v1874 = vpop.f32.mrf.mxu0
        %v1875 = vadd.f32 %v1826, %v1874
        %v1876 = vpop.f32.mrf.mxu0
        %v1877 = vadd.f32 %v1828, %v1876
        %1878 = vdwg.mxu0
        %1879 = vmatpush.bf16.msra.mxu0 %v1513
        %1880 = vmatpush.bf16.msra.mxu0 %v1510
        %1881 = vmatpush.bf16.msra.mxu0 %v1507
        %1882 = vmatpush.bf16.msra.mxu0 %v1504
        %1883 = vmatpush.bf16.msra.mxu0 %v1501
        %1884 = vmatpush.bf16.msra.mxu0 %v1498
        %1885 = vmatpush.bf16.msra.mxu0 %v1495
        %1886 = vmatpush.bf16.msra.mxu0 %v1492
        %1887 = vmatmul.bf16.gmra.mxu0 %v1011
        %v1888 = vpop.f32.mrf.mxu0
        %v1889 = vadd.f32 0.0, %v1888
        %v1890 = vpop.f32.mrf.mxu0
        %v1891 = vadd.f32 0.0, %v1890
        %1892 = vmatmul.bf16.gmra.mxu0 %v1015
        %v1893 = vpop.f32.mrf.mxu0
        %v1894 = vadd.f32 0.0, %v1893
        %v1895 = vpop.f32.mrf.mxu0
        %v1896 = vadd.f32 0.0, %v1895
        %1897 = vmatmul.bf16.gmra.mxu0 %v1019
        %v1898 = vpop.f32.mrf.mxu0
        %v1899 = vadd.f32 0.0, %v1898
        %v1900 = vpop.f32.mrf.mxu0
        %v1901 = vadd.f32 0.0, %v1900
        %1902 = vmatmul.bf16.gmra.mxu0 %v1023
        %v1903 = vpop.f32.mrf.mxu0
        %v1904 = vadd.f32 0.0, %v1903
        %v1905 = vpop.f32.mrf.mxu0
        %v1906 = vadd.f32 0.0, %v1905
        %1907 = vmatmul.bf16.gmra.mxu0 %v1027
        %v1908 = vpop.f32.mrf.mxu0
        %v1909 = vadd.f32 0.0, %v1908
        %v1910 = vpop.f32.mrf.mxu0
        %v1911 = vadd.f32 0.0, %v1910
        %1912 = vmatmul.bf16.gmra.mxu0 %v1031
        %v1913 = vpop.f32.mrf.mxu0
        %v1914 = vadd.f32 0.0, %v1913
        %v1915 = vpop.f32.mrf.mxu0
        %v1916 = vadd.f32 0.0, %v1915
        %1917 = vmatmul.bf16.gmra.mxu0 %v1035
        %v1918 = vpop.f32.mrf.mxu0
        %v1919 = vadd.f32 0.0, %v1918
        %v1920 = vpop.f32.mrf.mxu0
        %v1921 = vadd.f32 0.0, %v1920
        %1922 = vmatmul.bf16.gmra.mxu0 %v1039
        %v1923 = vpop.f32.mrf.mxu0
        %v1924 = vadd.f32 0.0, %v1923
        %v1925 = vpop.f32.mrf.mxu0
        %v1926 = vadd.f32 0.0, %v1925
        %1927 = vdwg.mxu0
        %1928 = vmatpush.bf16.msra.mxu0 %v1537
        %1929 = vmatpush.bf16.msra.mxu0 %v1534
        %1930 = vmatpush.bf16.msra.mxu0 %v1531
        %1931 = vmatpush.bf16.msra.mxu0 %v1528
        %1932 = vmatpush.bf16.msra.mxu0 %v1525
        %1933 = vmatpush.bf16.msra.mxu0 %v1522
        %1934 = vmatpush.bf16.msra.mxu0 %v1519
        %1935 = vmatpush.bf16.msra.mxu0 %v1516
        %1936 = vmatmul.bf16.gmra.mxu0 %v1012
        %v1937 = vpop.f32.mrf.mxu0
        %v1938 = vadd.f32 %v1889, %v1937
        %v1939 = vpop.f32.mrf.mxu0
        %v1940 = vadd.f32 %v1891, %v1939
        %1941 = vmatmul.bf16.gmra.mxu0 %v1016
        %v1942 = vpop.f32.mrf.mxu0
        %v1943 = vadd.f32 %v1894, %v1942
        %v1944 = vpop.f32.mrf.mxu0
        %v1945 = vadd.f32 %v1896, %v1944
        %1946 = vmatmul.bf16.gmra.mxu0 %v1020
        %v1947 = vpop.f32.mrf.mxu0
        %v1948 = vadd.f32 %v1899, %v1947
        %v1949 = vpop.f32.mrf.mxu0
        %v1950 = vadd.f32 %v1901, %v1949
        %1951 = vmatmul.bf16.gmra.mxu0 %v1024
        %v1952 = vpop.f32.mrf.mxu0
        %v1953 = vadd.f32 %v1904, %v1952
        %v1954 = vpop.f32.mrf.mxu0
        %v1955 = vadd.f32 %v1906, %v1954
        %1956 = vmatmul.bf16.gmra.mxu0 %v1028
        %v1957 = vpop.f32.mrf.mxu0
        %v1958 = vadd.f32 %v1909, %v1957
        %v1959 = vpop.f32.mrf.mxu0
        %v1960 = vadd.f32 %v1911, %v1959
        %1961 = vmatmul.bf16.gmra.mxu0 %v1032
        %v1962 = vpop.f32.mrf.mxu0
        %v1963 = vadd.f32 %v1914, %v1962
        %v1964 = vpop.f32.mrf.mxu0
        %v1965 = vadd.f32 %v1916, %v1964
        %1966 = vmatmul.bf16.gmra.mxu0 %v1036
        %v1967 = vpop.f32.mrf.mxu0
        %v1968 = vadd.f32 %v1919, %v1967
        %v1969 = vpop.f32.mrf.mxu0
        %v1970 = vadd.f32 %v1921, %v1969
        %1971 = vmatmul.bf16.gmra.mxu0 %v1040
        %v1972 = vpop.f32.mrf.mxu0
        %v1973 = vadd.f32 %v1924, %v1972
        %v1974 = vpop.f32.mrf.mxu0
        %v1975 = vadd.f32 %v1926, %v1974
        %1976 = vdwg.mxu0
        %1977 = vmatpush.bf16.msra.mxu0 %v1561
        %1978 = vmatpush.bf16.msra.mxu0 %v1558
        %1979 = vmatpush.bf16.msra.mxu0 %v1555
        %1980 = vmatpush.bf16.msra.mxu0 %v1552
        %1981 = vmatpush.bf16.msra.mxu0 %v1549
        %1982 = vmatpush.bf16.msra.mxu0 %v1546
        %1983 = vmatpush.bf16.msra.mxu0 %v1543
        %1984 = vmatpush.bf16.msra.mxu0 %v1540
        %1985 = vmatmul.bf16.gmra.mxu0 %v1013
        %v1986 = vpop.f32.mrf.mxu0
        %v1987 = vadd.f32 %v1938, %v1986
        %v1988 = vpop.f32.mrf.mxu0
        %v1989 = vadd.f32 %v1940, %v1988
        %1990 = vmatmul.bf16.gmra.mxu0 %v1017
        %v1991 = vpop.f32.mrf.mxu0
        %v1992 = vadd.f32 %v1943, %v1991
        %v1993 = vpop.f32.mrf.mxu0
        %v1994 = vadd.f32 %v1945, %v1993
        %1995 = vmatmul.bf16.gmra.mxu0 %v1021
        %v1996 = vpop.f32.mrf.mxu0
        %v1997 = vadd.f32 %v1948, %v1996
        %v1998 = vpop.f32.mrf.mxu0
        %v1999 = vadd.f32 %v1950, %v1998
        %2000 = vmatmul.bf16.gmra.mxu0 %v1025
        %v2001 = vpop.f32.mrf.mxu0
        %v2002 = vadd.f32 %v1953, %v2001
        %v2003 = vpop.f32.mrf.mxu0
        %v2004 = vadd.f32 %v1955, %v2003
        %2005 = vmatmul.bf16.gmra.mxu0 %v1029
        %v2006 = vpop.f32.mrf.mxu0
        %v2007 = vadd.f32 %v1958, %v2006
        %v2008 = vpop.f32.mrf.mxu0
        %v2009 = vadd.f32 %v1960, %v2008
        %2010 = vmatmul.bf16.gmra.mxu0 %v1033
        %v2011 = vpop.f32.mrf.mxu0
        %v2012 = vadd.f32 %v1963, %v2011
        %v2013 = vpop.f32.mrf.mxu0
        %v2014 = vadd.f32 %v1965, %v2013
        %2015 = vmatmul.bf16.gmra.mxu0 %v1037
        %v2016 = vpop.f32.mrf.mxu0
        %v2017 = vadd.f32 %v1968, %v2016
        %v2018 = vpop.f32.mrf.mxu0
        %v2019 = vadd.f32 %v1970, %v2018
        %2020 = vmatmul.bf16.gmra.mxu0 %v1041
        %v2021 = vpop.f32.mrf.mxu0
        %v2022 = vadd.f32 %v1973, %v2021
        %v2023 = vpop.f32.mrf.mxu0
        %v2024 = vadd.f32 %v1975, %v2023
        %2025 = vdwg.mxu0
        %2026 = vmatpush.bf16.msra.mxu0 %v1585
        %2027 = vmatpush.bf16.msra.mxu0 %v1582
        %2028 = vmatpush.bf16.msra.mxu0 %v1579
        %2029 = vmatpush.bf16.msra.mxu0 %v1576
        %2030 = vmatpush.bf16.msra.mxu0 %v1573
        %2031 = vmatpush.bf16.msra.mxu0 %v1570
        %2032 = vmatpush.bf16.msra.mxu0 %v1567
        %2033 = vmatpush.bf16.msra.mxu0 %v1564
        %2034 = vmatmul.bf16.gmra.mxu0 %v1014
        %v2035 = vpop.f32.mrf.mxu0
        %v2036 = vadd.f32 %v1987, %v2035
        %v2037 = vpop.f32.mrf.mxu0
        %v2038 = vadd.f32 %v1989, %v2037
        %2039 = vmatmul.bf16.gmra.mxu0 %v1018
        %v2040 = vpop.f32.mrf.mxu0
        %v2041 = vadd.f32 %v1992, %v2040
        %v2042 = vpop.f32.mrf.mxu0
        %v2043 = vadd.f32 %v1994, %v2042
        %2044 = vmatmul.bf16.gmra.mxu0 %v1022
        %v2045 = vpop.f32.mrf.mxu0
        %v2046 = vadd.f32 %v1997, %v2045
        %v2047 = vpop.f32.mrf.mxu0
        %v2048 = vadd.f32 %v1999, %v2047
        %2049 = vmatmul.bf16.gmra.mxu0 %v1026
        %v2050 = vpop.f32.mrf.mxu0
        %v2051 = vadd.f32 %v2002, %v2050
        %v2052 = vpop.f32.mrf.mxu0
        %v2053 = vadd.f32 %v2004, %v2052
        %2054 = vmatmul.bf16.gmra.mxu0 %v1030
        %v2055 = vpop.f32.mrf.mxu0
        %v2056 = vadd.f32 %v2007, %v2055
        %v2057 = vpop.f32.mrf.mxu0
        %v2058 = vadd.f32 %v2009, %v2057
        %2059 = vmatmul.bf16.gmra.mxu0 %v1034
        %v2060 = vpop.f32.mrf.mxu0
        %v2061 = vadd.f32 %v2012, %v2060
        %v2062 = vpop.f32.mrf.mxu0
        %v2063 = vadd.f32 %v2014, %v2062
        %2064 = vmatmul.bf16.gmra.mxu0 %v1038
        %v2065 = vpop.f32.mrf.mxu0
        %v2066 = vadd.f32 %v2017, %v2065
        %v2067 = vpop.f32.mrf.mxu0
        %v2068 = vadd.f32 %v2019, %v2067
        %2069 = vmatmul.bf16.gmra.mxu0 %v1042
        %v2070 = vpop.f32.mrf.mxu0
        %v2071 = vadd.f32 %v2022, %v2070
        %v2072 = vpop.f32.mrf.mxu0
        %v2073 = vadd.f32 %v2024, %v2072
        %2074 = vdwg.mxu0
        %2075 = vmatpush.bf16.msra.mxu0 %v1514
        %2076 = vmatpush.bf16.msra.mxu0 %v1511
        %2077 = vmatpush.bf16.msra.mxu0 %v1508
        %2078 = vmatpush.bf16.msra.mxu0 %v1505
        %2079 = vmatpush.bf16.msra.mxu0 %v1502
        %2080 = vmatpush.bf16.msra.mxu0 %v1499
        %2081 = vmatpush.bf16.msra.mxu0 %v1496
        %2082 = vmatpush.bf16.msra.mxu0 %v1493
        %2083 = vmatmul.bf16.gmra.mxu0 %v1011
        %v2084 = vpop.f32.mrf.mxu0
        %v2085 = vadd.f32 0.0, %v2084
        %v2086 = vpop.f32.mrf.mxu0
        %v2087 = vadd.f32 0.0, %v2086
        %2088 = vmatmul.bf16.gmra.mxu0 %v1015
        %v2089 = vpop.f32.mrf.mxu0
        %v2090 = vadd.f32 0.0, %v2089
        %v2091 = vpop.f32.mrf.mxu0
        %v2092 = vadd.f32 0.0, %v2091
        %2093 = vmatmul.bf16.gmra.mxu0 %v1019
        %v2094 = vpop.f32.mrf.mxu0
        %v2095 = vadd.f32 0.0, %v2094
        %v2096 = vpop.f32.mrf.mxu0
        %v2097 = vadd.f32 0.0, %v2096
        %2098 = vmatmul.bf16.gmra.mxu0 %v1023
        %v2099 = vpop.f32.mrf.mxu0
        %v2100 = vadd.f32 0.0, %v2099
        %v2101 = vpop.f32.mrf.mxu0
        %v2102 = vadd.f32 0.0, %v2101
        %2103 = vmatmul.bf16.gmra.mxu0 %v1027
        %v2104 = vpop.f32.mrf.mxu0
        %v2105 = vadd.f32 0.0, %v2104
        %v2106 = vpop.f32.mrf.mxu0
        %v2107 = vadd.f32 0.0, %v2106
        %2108 = vmatmul.bf16.gmra.mxu0 %v1031
        %v2109 = vpop.f32.mrf.mxu0
        %v2110 = vadd.f32 0.0, %v2109
        %v2111 = vpop.f32.mrf.mxu0
        %v2112 = vadd.f32 0.0, %v2111
        %2113 = vmatmul.bf16.gmra.mxu0 %v1035
        %v2114 = vpop.f32.mrf.mxu0
        %v2115 = vadd.f32 0.0, %v2114
        %v2116 = vpop.f32.mrf.mxu0
        %v2117 = vadd.f32 0.0, %v2116
        %2118 = vmatmul.bf16.gmra.mxu0 %v1039
        %v2119 = vpop.f32.mrf.mxu0
        %v2120 = vadd.f32 0.0, %v2119
        %v2121 = vpop.f32.mrf.mxu0
        %v2122 = vadd.f32 0.0, %v2121
        %2123 = vdwg.mxu0
        %2124 = vmatpush.bf16.msra.mxu0 %v1538
        %2125 = vmatpush.bf16.msra.mxu0 %v1535
        %2126 = vmatpush.bf16.msra.mxu0 %v1532
        %2127 = vmatpush.bf16.msra.mxu0 %v1529
        %2128 = vmatpush.bf16.msra.mxu0 %v1526
        %2129 = vmatpush.bf16.msra.mxu0 %v1523
        %2130 = vmatpush.bf16.msra.mxu0 %v1520
        %2131 = vmatpush.bf16.msra.mxu0 %v1517
        %2132 = vmatmul.bf16.gmra.mxu0 %v1012
        %v2133 = vpop.f32.mrf.mxu0
        %v2134 = vadd.f32 %v2085, %v2133
        %v2135 = vpop.f32.mrf.mxu0
        %v2136 = vadd.f32 %v2087, %v2135
        %2137 = vmatmul.bf16.gmra.mxu0 %v1016
        %v2138 = vpop.f32.mrf.mxu0
        %v2139 = vadd.f32 %v2090, %v2138
        %v2140 = vpop.f32.mrf.mxu0
        %v2141 = vadd.f32 %v2092, %v2140
        %2142 = vmatmul.bf16.gmra.mxu0 %v1020
        %v2143 = vpop.f32.mrf.mxu0
        %v2144 = vadd.f32 %v2095, %v2143
        %v2145 = vpop.f32.mrf.mxu0
        %v2146 = vadd.f32 %v2097, %v2145
        %2147 = vmatmul.bf16.gmra.mxu0 %v1024
        %v2148 = vpop.f32.mrf.mxu0
        %v2149 = vadd.f32 %v2100, %v2148
        %v2150 = vpop.f32.mrf.mxu0
        %v2151 = vadd.f32 %v2102, %v2150
        %2152 = vmatmul.bf16.gmra.mxu0 %v1028
        %v2153 = vpop.f32.mrf.mxu0
        %v2154 = vadd.f32 %v2105, %v2153
        %v2155 = vpop.f32.mrf.mxu0
        %v2156 = vadd.f32 %v2107, %v2155
        %2157 = vmatmul.bf16.gmra.mxu0 %v1032
        %v2158 = vpop.f32.mrf.mxu0
        %v2159 = vadd.f32 %v2110, %v2158
        %v2160 = vpop.f32.mrf.mxu0
        %v2161 = vadd.f32 %v2112, %v2160
        %2162 = vmatmul.bf16.gmra.mxu0 %v1036
        %v2163 = vpop.f32.mrf.mxu0
        %v2164 = vadd.f32 %v2115, %v2163
        %v2165 = vpop.f32.mrf.mxu0
        %v2166 = vadd.f32 %v2117, %v2165
        %2167 = vmatmul.bf16.gmra.mxu0 %v1040
        %v2168 = vpop.f32.mrf.mxu0
        %v2169 = vadd.f32 %v2120, %v2168
        %v2170 = vpop.f32.mrf.mxu0
        %v2171 = vadd.f32 %v2122, %v2170
        %2172 = vdwg.mxu0
        %2173 = vmatpush.bf16.msra.mxu0 %v1562
        %2174 = vmatpush.bf16.msra.mxu0 %v1559
        %2175 = vmatpush.bf16.msra.mxu0 %v1556
        %2176 = vmatpush.bf16.msra.mxu0 %v1553
        %2177 = vmatpush.bf16.msra.mxu0 %v1550
        %2178 = vmatpush.bf16.msra.mxu0 %v1547
        %2179 = vmatpush.bf16.msra.mxu0 %v1544
        %2180 = vmatpush.bf16.msra.mxu0 %v1541
        %2181 = vmatmul.bf16.gmra.mxu0 %v1013
        %v2182 = vpop.f32.mrf.mxu0
        %v2183 = vadd.f32 %v2134, %v2182
        %v2184 = vpop.f32.mrf.mxu0
        %v2185 = vadd.f32 %v2136, %v2184
        %2186 = vmatmul.bf16.gmra.mxu0 %v1017
        %v2187 = vpop.f32.mrf.mxu0
        %v2188 = vadd.f32 %v2139, %v2187
        %v2189 = vpop.f32.mrf.mxu0
        %v2190 = vadd.f32 %v2141, %v2189
        %2191 = vmatmul.bf16.gmra.mxu0 %v1021
        %v2192 = vpop.f32.mrf.mxu0
        %v2193 = vadd.f32 %v2144, %v2192
        %v2194 = vpop.f32.mrf.mxu0
        %v2195 = vadd.f32 %v2146, %v2194
        %2196 = vmatmul.bf16.gmra.mxu0 %v1025
        %v2197 = vpop.f32.mrf.mxu0
        %v2198 = vadd.f32 %v2149, %v2197
        %v2199 = vpop.f32.mrf.mxu0
        %v2200 = vadd.f32 %v2151, %v2199
        %2201 = vmatmul.bf16.gmra.mxu0 %v1029
        %v2202 = vpop.f32.mrf.mxu0
        %v2203 = vadd.f32 %v2154, %v2202
        %v2204 = vpop.f32.mrf.mxu0
        %v2205 = vadd.f32 %v2156, %v2204
        %2206 = vmatmul.bf16.gmra.mxu0 %v1033
        %v2207 = vpop.f32.mrf.mxu0
        %v2208 = vadd.f32 %v2159, %v2207
        %v2209 = vpop.f32.mrf.mxu0
        %v2210 = vadd.f32 %v2161, %v2209
        %2211 = vmatmul.bf16.gmra.mxu0 %v1037
        %v2212 = vpop.f32.mrf.mxu0
        %v2213 = vadd.f32 %v2164, %v2212
        %v2214 = vpop.f32.mrf.mxu0
        %v2215 = vadd.f32 %v2166, %v2214
        %2216 = vmatmul.bf16.gmra.mxu0 %v1041
        %v2217 = vpop.f32.mrf.mxu0
        %v2218 = vadd.f32 %v2169, %v2217
        %v2219 = vpop.f32.mrf.mxu0
        %v2220 = vadd.f32 %v2171, %v2219
        %2221 = vdwg.mxu0
        %2222 = vmatpush.bf16.msra.mxu0 %v1586
        %2223 = vmatpush.bf16.msra.mxu0 %v1583
        %2224 = vmatpush.bf16.msra.mxu0 %v1580
        %2225 = vmatpush.bf16.msra.mxu0 %v1577
        %2226 = vmatpush.bf16.msra.mxu0 %v1574
        %2227 = vmatpush.bf16.msra.mxu0 %v1571
        %2228 = vmatpush.bf16.msra.mxu0 %v1568
        %2229 = vmatpush.bf16.msra.mxu0 %v1565
        %2230 = vmatmul.bf16.gmra.mxu0 %v1014
        %v2231 = vpop.f32.mrf.mxu0
        %v2232 = vadd.f32 %v2183, %v2231
        %v2233 = vpop.f32.mrf.mxu0
        %v2234 = vadd.f32 %v2185, %v2233
        %2235 = vmatmul.bf16.gmra.mxu0 %v1018
        %v2236 = vpop.f32.mrf.mxu0
        %v2237 = vadd.f32 %v2188, %v2236
        %v2238 = vpop.f32.mrf.mxu0
        %v2239 = vadd.f32 %v2190, %v2238
        %2240 = vmatmul.bf16.gmra.mxu0 %v1022
        %v2241 = vpop.f32.mrf.mxu0
        %v2242 = vadd.f32 %v2193, %v2241
        %v2243 = vpop.f32.mrf.mxu0
        %v2244 = vadd.f32 %v2195, %v2243
        %2245 = vmatmul.bf16.gmra.mxu0 %v1026
        %v2246 = vpop.f32.mrf.mxu0
        %v2247 = vadd.f32 %v2198, %v2246
        %v2248 = vpop.f32.mrf.mxu0
        %v2249 = vadd.f32 %v2200, %v2248
        %2250 = vmatmul.bf16.gmra.mxu0 %v1030
        %v2251 = vpop.f32.mrf.mxu0
        %v2252 = vadd.f32 %v2203, %v2251
        %v2253 = vpop.f32.mrf.mxu0
        %v2254 = vadd.f32 %v2205, %v2253
        %2255 = vmatmul.bf16.gmra.mxu0 %v1034
        %v2256 = vpop.f32.mrf.mxu0
        %v2257 = vadd.f32 %v2208, %v2256
        %v2258 = vpop.f32.mrf.mxu0
        %v2259 = vadd.f32 %v2210, %v2258
        %2260 = vmatmul.bf16.gmra.mxu0 %v1038
        %v2261 = vpop.f32.mrf.mxu0
        %v2262 = vadd.f32 %v2213, %v2261
        %v2263 = vpop.f32.mrf.mxu0
        %v2264 = vadd.f32 %v2215, %v2263
        %2265 = vmatmul.bf16.gmra.mxu0 %v1042
        %v2266 = vpop.f32.mrf.mxu0
        %v2267 = vadd.f32 %v2218, %v2266
        %v2268 = vpop.f32.mrf.mxu0
        %v2269 = vadd.f32 %v2220, %v2268
        %2270 = vdwg.mxu0
        %vm2271 = vcmp.ge.f32.partialorder %v1840, 0.0
        %vm2272 = vcmp.ge.f32.partialorder %v2036, 0.0
        %vm2273 = vcmp.ge.f32.partialorder %v2232, 0.0
        %vm2274 = vcmp.ge.f32.partialorder %v1842, 0.0
        %vm2275 = vcmp.ge.f32.partialorder %v2038, 0.0
        %vm2276 = vcmp.ge.f32.partialorder %v2234, 0.0
        %vm2277 = vcmp.ge.f32.partialorder %v1845, 0.0
        %vm2278 = vcmp.ge.f32.partialorder %v2041, 0.0
        %vm2279 = vcmp.ge.f32.partialorder %v2237, 0.0
        %vm2280 = vcmp.ge.f32.partialorder %v1847, 0.0
        %vm2281 = vcmp.ge.f32.partialorder %v2043, 0.0
        %vm2282 = vcmp.ge.f32.partialorder %v2239, 0.0
        %vm2283 = vcmp.ge.f32.partialorder %v1850, 0.0
        %vm2284 = vcmp.ge.f32.partialorder %v2046, 0.0
        %vm2285 = vcmp.ge.f32.partialorder %v2242, 0.0
        %vm2286 = vcmp.ge.f32.partialorder %v1852, 0.0
        %vm2287 = vcmp.ge.f32.partialorder %v2048, 0.0
        %vm2288 = vcmp.ge.f32.partialorder %v2244, 0.0
        %vm2289 = vcmp.ge.f32.partialorder %v1855, 0.0
        %vm2290 = vcmp.ge.f32.partialorder %v2051, 0.0
        %vm2291 = vcmp.ge.f32.partialorder %v2247, 0.0
        %vm2292 = vcmp.ge.f32.partialorder %v1857, 0.0
        %vm2293 = vcmp.ge.f32.partialorder %v2053, 0.0
        %vm2294 = vcmp.ge.f32.partialorder %v2249, 0.0
        %vm2295 = vcmp.ge.f32.partialorder %v1860, 0.0
        %vm2296 = vcmp.ge.f32.partialorder %v2056, 0.0
        %vm2297 = vcmp.ge.f32.partialorder %v2252, 0.0
        %vm2298 = vcmp.ge.f32.partialorder %v1862, 0.0
        %vm2299 = vcmp.ge.f32.partialorder %v2058, 0.0
        %vm2300 = vcmp.ge.f32.partialorder %v2254, 0.0
        %vm2301 = vcmp.ge.f32.partialorder %v1865, 0.0
        %vm2302 = vcmp.ge.f32.partialorder %v2061, 0.0
        %vm2303 = vcmp.ge.f32.partialorder %v2257, 0.0
        %vm2304 = vcmp.ge.f32.partialorder %v1867, 0.0
        %vm2305 = vcmp.ge.f32.partialorder %v2063, 0.0
        %vm2306 = vcmp.ge.f32.partialorder %v2259, 0.0
        %vm2307 = vcmp.ge.f32.partialorder %v1870, 0.0
        %vm2308 = vcmp.ge.f32.partialorder %v2066, 0.0
        %vm2309 = vcmp.ge.f32.partialorder %v2262, 0.0
        %vm2310 = vcmp.ge.f32.partialorder %v1872, 0.0
        %vm2311 = vcmp.ge.f32.partialorder %v2068, 0.0
        %vm2312 = vcmp.ge.f32.partialorder %v2264, 0.0
        %vm2313 = vcmp.ge.f32.partialorder %v1875, 0.0
        %vm2314 = vcmp.ge.f32.partialorder %v2071, 0.0
        %vm2315 = vcmp.ge.f32.partialorder %v2267, 0.0
        %vm2316 = vcmp.ge.f32.partialorder %v1877, 0.0
        %vm2317 = vcmp.ge.f32.partialorder %v2073, 0.0
        %vm2318 = vcmp.ge.f32.partialorder %v2269, 0.0
        %v2319 = vmul.f32 %v1840, 0.01
        %v2320 = vmul.f32 %v2036, 0.01
        %v2321 = vmul.f32 %v2232, 0.01
        %v2322 = vmul.f32 %v1842, 0.01
        %v2323 = vmul.f32 %v2038, 0.01
        %v2324 = vmul.f32 %v2234, 0.01
        %v2325 = vmul.f32 %v1845, 0.01
        %v2326 = vmul.f32 %v2041, 0.01
        %v2327 = vmul.f32 %v2237, 0.01
        %v2328 = vmul.f32 %v1847, 0.01
        %v2329 = vmul.f32 %v2043, 0.01
        %v2330 = vmul.f32 %v2239, 0.01
        %v2331 = vmul.f32 %v1850, 0.01
        %v2332 = vmul.f32 %v2046, 0.01
        %v2333 = vmul.f32 %v2242, 0.01
        %v2334 = vmul.f32 %v1852, 0.01
        %v2335 = vmul.f32 %v2048, 0.01
        %v2336 = vmul.f32 %v2244, 0.01
        %v2337 = vmul.f32 %v1855, 0.01
        %v2338 = vmul.f32 %v2051, 0.01
        %v2339 = vmul.f32 %v2247, 0.01
        %v2340 = vmul.f32 %v1857, 0.01
        %v2341 = vmul.f32 %v2053, 0.01
        %v2342 = vmul.f32 %v2249, 0.01
        %v2343 = vmul.f32 %v1860, 0.01
        %v2344 = vmul.f32 %v2056, 0.01
        %v2345 = vmul.f32 %v2252, 0.01
        %v2346 = vmul.f32 %v1862, 0.01
        %v2347 = vmul.f32 %v2058, 0.01
        %v2348 = vmul.f32 %v2254, 0.01
        %v2349 = vmul.f32 %v1865, 0.01
        %v2350 = vmul.f32 %v2061, 0.01
        %v2351 = vmul.f32 %v2257, 0.01
        %v2352 = vmul.f32 %v1867, 0.01
        %v2353 = vmul.f32 %v2063, 0.01
        %v2354 = vmul.f32 %v2259, 0.01
        %v2355 = vmul.f32 %v1870, 0.01
        %v2356 = vmul.f32 %v2066, 0.01
        %v2357 = vmul.f32 %v2262, 0.01
        %v2358 = vmul.f32 %v1872, 0.01
        %v2359 = vmul.f32 %v2068, 0.01
        %v2360 = vmul.f32 %v2264, 0.01
        %v2361 = vmul.f32 %v1875, 0.01
        %v2362 = vmul.f32 %v2071, 0.01
        %v2363 = vmul.f32 %v2267, 0.01
        %v2364 = vmul.f32 %v1877, 0.01
        %v2365 = vmul.f32 %v2073, 0.01
        %v2366 = vmul.f32 %v2269, 0.01
        %v2367 = vsel %vm2271, %v1840, %v2319
        %v2368 = vsel %vm2272, %v2036, %v2320
        %v2369 = vsel %vm2273, %v2232, %v2321
        %v2370 = vsel %vm2274, %v1842, %v2322
        %v2371 = vsel %vm2275, %v2038, %v2323
        %v2372 = vsel %vm2276, %v2234, %v2324
        %v2373 = vsel %vm2277, %v1845, %v2325
        %v2374 = vsel %vm2278, %v2041, %v2326
        %v2375 = vsel %vm2279, %v2237, %v2327
        %v2376 = vsel %vm2280, %v1847, %v2328
        %v2377 = vsel %vm2281, %v2043, %v2329
        %v2378 = vsel %vm2282, %v2239, %v2330
        %v2379 = vsel %vm2283, %v1850, %v2331
        %v2380 = vsel %vm2284, %v2046, %v2332
        %v2381 = vsel %vm2285, %v2242, %v2333
        %v2382 = vsel %vm2286, %v1852, %v2334
        %v2383 = vsel %vm2287, %v2048, %v2335
        %v2384 = vsel %vm2288, %v2244, %v2336
        %v2385 = vsel %vm2289, %v1855, %v2337
        %v2386 = vsel %vm2290, %v2051, %v2338
        %v2387 = vsel %vm2291, %v2247, %v2339
        %v2388 = vsel %vm2292, %v1857, %v2340
        %v2389 = vsel %vm2293, %v2053, %v2341
        %v2390 = vsel %vm2294, %v2249, %v2342
        %v2391 = vsel %vm2295, %v1860, %v2343
        %v2392 = vsel %vm2296, %v2056, %v2344
        %v2393 = vsel %vm2297, %v2252, %v2345
        %v2394 = vsel %vm2298, %v1862, %v2346
        %v2395 = vsel %vm2299, %v2058, %v2347
        %v2396 = vsel %vm2300, %v2254, %v2348
        %v2397 = vsel %vm2301, %v1865, %v2349
        %v2398 = vsel %vm2302, %v2061, %v2350
        %v2399 = vsel %vm2303, %v2257, %v2351
        %v2400 = vsel %vm2304, %v1867, %v2352
        %v2401 = vsel %vm2305, %v2063, %v2353
        %v2402 = vsel %vm2306, %v2259, %v2354
        %v2403 = vsel %vm2307, %v1870, %v2355
        %v2404 = vsel %vm2308, %v2066, %v2356
        %v2405 = vsel %vm2309, %v2262, %v2357
        %v2406 = vsel %vm2310, %v1872, %v2358
        %v2407 = vsel %vm2311, %v2068, %v2359
        %v2408 = vsel %vm2312, %v2264, %v2360
        %v2409 = vsel %vm2313, %v1875, %v2361
        %v2410 = vsel %vm2314, %v2071, %v2362
        %v2411 = vsel %vm2315, %v2267, %v2363
        %v2412 = vsel %vm2316, %v1877, %v2364
        %v2413 = vsel %vm2317, %v2073, %v2365
        %v2414 = vsel %vm2318, %v2269, %v2366
        %v2415 = vpack.c.bf16 %v2370, %v2367
        %v2416 = vpack.c.bf16 %v2371, %v2368
        %v2417 = vpack.c.bf16 %v2372, %v2369
        %v2418 = vpack.c.bf16 %v2376, %v2373
        %v2419 = vpack.c.bf16 %v2377, %v2374
        %v2420 = vpack.c.bf16 %v2378, %v2375
        %v2421 = vpack.c.bf16 %v2382, %v2379
        %v2422 = vpack.c.bf16 %v2383, %v2380
        %v2423 = vpack.c.bf16 %v2384, %v2381
        %v2424 = vpack.c.bf16 %v2388, %v2385
        %v2425 = vpack.c.bf16 %v2389, %v2386
        %v2426 = vpack.c.bf16 %v2390, %v2387
        %v2427 = vpack.c.bf16 %v2394, %v2391
        %v2428 = vpack.c.bf16 %v2395, %v2392
        %v2429 = vpack.c.bf16 %v2396, %v2393
        %v2430 = vpack.c.bf16 %v2400, %v2397
        %v2431 = vpack.c.bf16 %v2401, %v2398
        %v2432 = vpack.c.bf16 %v2402, %v2399
        %v2433 = vpack.c.bf16 %v2406, %v2403
        %v2434 = vpack.c.bf16 %v2407, %v2404
        %v2435 = vpack.c.bf16 %v2408, %v2405
        %v2436 = vpack.c.bf16 %v2412, %v2409
        %v2437 = vpack.c.bf16 %v2413, %v2410
        %v2438 = vpack.c.bf16 %v2414, %v2411
        %v2439 = vld [vmem:[%s3] sm:$0xf]
        %v2440 = vld [vmem:[%s3 + $0x4] sm:$0xf]
        %v2441 = vld [vmem:[%s3 + $0x8] sm:$0xf]
        %v2442 = vld [vmem:[%s3 + $0xc] sm:$0xf]
        %v2443 = vld [vmem:[%s3 + $0x10] sm:$0xf]
        %v2444 = vld [vmem:[%s3 + $0x14] sm:$0xf]
        %v2445 = vld [vmem:[%s3 + $0x18] sm:$0xf]
        %v2446 = vld [vmem:[%s3 + $0x1c] sm:$0xf]
        %v2447 = vld [vmem:[%s3 + $0x20] sm:$0xf]
        %v2448 = vld [vmem:[%s3 + $0x24] sm:$0xf]
        %v2449 = vld [vmem:[%s3 + $0x28] sm:$0xf]
        %v2450 = vld [vmem:[%s3 + $0x2c] sm:$0xf]
        %v2451 = vld [vmem:[%s3 + $0x30] sm:$0xf]
        %v2452 = vld [vmem:[%s3 + $0x34] sm:$0xf]
        %v2453 = vld [vmem:[%s3 + $0x38] sm:$0xf]
        %v2454 = vld [vmem:[%s3 + $0x3c] sm:$0xf]
        %v2455 = vld [vmem:[%s3 + $0x40] sm:$0xf]
        %v2456 = vld [vmem:[%s3 + $0x44] sm:$0xf]
        %v2457 = vld [vmem:[%s3 + $0x48] sm:$0xf]
        %v2458 = vld [vmem:[%s3 + $0x4c] sm:$0xf]
        %v2459 = vld [vmem:[%s3 + $0x50] sm:$0xf]
        %v2460 = vld [vmem:[%s3 + $0x54] sm:$0xf]
        %v2461 = vld [vmem:[%s3 + $0x58] sm:$0xf]
        %v2462 = vld [vmem:[%s3 + $0x5c] sm:$0xf]
        %v2463 = vld [vmem:[%s3 + $0x60] sm:$0xf]
        %v2464 = vld [vmem:[%s3 + $0x64] sm:$0xf]
        %v2465 = vld [vmem:[%s3 + $0x68] sm:$0xf]
        %v2466 = vld [vmem:[%s3 + $0x6c] sm:$0xf]
        %v2467 = vld [vmem:[%s3 + $0x70] sm:$0xf]
        %v2468 = vld [vmem:[%s3 + $0x74] sm:$0xf]
        %v2469 = vld [vmem:[%s3 + $0x78] sm:$0xf]
        %v2470 = vld [vmem:[%s3 + $0x7c] sm:$0xf]
        %v2471 = vld [vmem:[%s3 + $0x80] sm:$0xf]
        %v2472 = vld [vmem:[%s3 + $0x84] sm:$0xf]
        %v2473 = vld [vmem:[%s3 + $0x88] sm:$0xf]
        %v2474 = vld [vmem:[%s3 + $0x8c] sm:$0xf]
        %v2475 = vld [vmem:[%s3 + $0x90] sm:$0xf]
        %v2476 = vld [vmem:[%s3 + $0x94] sm:$0xf]
        %v2477 = vld [vmem:[%s3 + $0x98] sm:$0xf]
        %v2478 = vld [vmem:[%s3 + $0x9c] sm:$0xf]
        %v2479 = vld [vmem:[%s3 + $0xa0] sm:$0xf]
        %v2480 = vld [vmem:[%s3 + $0xa4] sm:$0xf]
        %v2481 = vld [vmem:[%s3 + $0xa8] sm:$0xf]
        %v2482 = vld [vmem:[%s3 + $0xac] sm:$0xf]
        %v2483 = vld [vmem:[%s3 + $0xb0] sm:$0xf]
        %v2484 = vld [vmem:[%s3 + $0xb4] sm:$0xf]
        %v2485 = vld [vmem:[%s3 + $0xb8] sm:$0xf]
        %v2486 = vld [vmem:[%s3 + $0xbc] sm:$0xf]
        %v2487 = vld [vmem:[%s4] sm:$0x1]
        %v2489 = vperm.slane %v2487, 0
        %v2539 = vunpack.c.l.b16 %v2439
        %v2540 = vunpack.c.l.b16 %v2440
        %v2541 = vunpack.c.l.b16 %v2441
        %v2542 = vunpack.c.l.b16 %v2442
        %v2543 = vunpack.c.l.b16 %v2443
        %v2544 = vunpack.c.l.b16 %v2444
        %v2545 = vunpack.c.l.b16 %v2445
        %v2546 = vunpack.c.l.b16 %v2446
        %v2547 = vunpack.c.l.b16 %v2447
        %v2548 = vunpack.c.l.b16 %v2448
        %v2549 = vunpack.c.l.b16 %v2449
        %v2550 = vunpack.c.l.b16 %v2450
        %v2551 = vunpack.c.l.b16 %v2451
        %v2552 = vunpack.c.l.b16 %v2452
        %v2553 = vunpack.c.l.b16 %v2453
        %v2554 = vunpack.c.l.b16 %v2454
        %v2555 = vunpack.c.l.b16 %v2455
        %v2556 = vunpack.c.l.b16 %v2456
        %v2557 = vunpack.c.l.b16 %v2457
        %v2558 = vunpack.c.l.b16 %v2458
        %v2559 = vunpack.c.l.b16 %v2459
        %v2560 = vunpack.c.l.b16 %v2460
        %v2561 = vunpack.c.l.b16 %v2461
        %v2562 = vunpack.c.l.b16 %v2462
        %v2563 = vunpack.c.l.b16 %v2463
        %v2564 = vunpack.c.l.b16 %v2464
        %v2565 = vunpack.c.l.b16 %v2465
        %v2566 = vunpack.c.l.b16 %v2466
        %v2567 = vunpack.c.l.b16 %v2467
        %v2568 = vunpack.c.l.b16 %v2468
        %v2569 = vunpack.c.l.b16 %v2469
        %v2570 = vunpack.c.l.b16 %v2470
        %v2571 = vunpack.c.l.b16 %v2471
        %v2572 = vunpack.c.l.b16 %v2472
        %v2573 = vunpack.c.l.b16 %v2473
        %v2574 = vunpack.c.l.b16 %v2474
        %v2575 = vunpack.c.l.b16 %v2475
        %v2576 = vunpack.c.l.b16 %v2476
        %v2577 = vunpack.c.l.b16 %v2477
        %v2578 = vunpack.c.l.b16 %v2478
        %v2579 = vunpack.c.l.b16 %v2479
        %v2580 = vunpack.c.l.b16 %v2480
        %v2581 = vunpack.c.l.b16 %v2481
        %v2582 = vunpack.c.l.b16 %v2482
        %v2583 = vunpack.c.l.b16 %v2483
        %v2584 = vunpack.c.l.b16 %v2484
        %v2585 = vunpack.c.l.b16 %v2485
        %v2586 = vunpack.c.l.b16 %v2486
        %v2587 = vpack.c.b16 %v2540, %v2539
        %v2588 = vpack.c.b16 %v2542, %v2541
        %v2589 = vpack.c.b16 %v2544, %v2543
        %v2590 = vpack.c.b16 %v2546, %v2545
        %v2591 = vpack.c.b16 %v2548, %v2547
        %v2592 = vpack.c.b16 %v2550, %v2549
        %v2593 = vpack.c.b16 %v2552, %v2551
        %v2594 = vpack.c.b16 %v2554, %v2553
        %v2595 = vpack.c.b16 %v2556, %v2555
        %v2596 = vpack.c.b16 %v2558, %v2557
        %v2597 = vpack.c.b16 %v2560, %v2559
        %v2598 = vpack.c.b16 %v2562, %v2561
        %v2599 = vpack.c.b16 %v2564, %v2563
        %v2600 = vpack.c.b16 %v2566, %v2565
        %v2601 = vpack.c.b16 %v2568, %v2567
        %v2602 = vpack.c.b16 %v2570, %v2569
        %v2603 = vpack.c.b16 %v2572, %v2571
        %v2604 = vpack.c.b16 %v2574, %v2573
        %v2605 = vpack.c.b16 %v2576, %v2575
        %v2606 = vpack.c.b16 %v2578, %v2577
        %v2607 = vpack.c.b16 %v2580, %v2579
        %v2608 = vpack.c.b16 %v2582, %v2581
        %v2609 = vpack.c.b16 %v2584, %v2583
        %v2610 = vpack.c.b16 %v2586, %v2585
        %2635 = vmatpush.bf16.msra.mxu0 %v2594
        %2636 = vmatpush.bf16.msra.mxu0 %v2593
        %2637 = vmatpush.bf16.msra.mxu0 %v2592
        %2638 = vmatpush.bf16.msra.mxu0 %v2591
        %2639 = vmatpush.bf16.msra.mxu0 %v2590
        %2640 = vmatpush.bf16.msra.mxu0 %v2589
        %2641 = vmatpush.bf16.msra.mxu0 %v2588
        %2642 = vmatpush.bf16.msra.mxu0 %v2587
        %2643 = vmatmul.bf16.gmra.mxu0 %v2415
        %v2644 = vpop.f32.mrf.mxu0
        %v2645 = vadd.f32 %v2489, %v2644
        %v2646 = vpop.f32.mrf.mxu0
        %v2647 = vadd.f32 %v2489, %v2646
        %2648 = vmatmul.bf16.gmra.mxu0 %v2418
        %v2649 = vpop.f32.mrf.mxu0
        %v2650 = vadd.f32 %v2489, %v2649
        %v2651 = vpop.f32.mrf.mxu0
        %v2652 = vadd.f32 %v2489, %v2651
        %2653 = vmatmul.bf16.gmra.mxu0 %v2421
        %v2654 = vpop.f32.mrf.mxu0
        %v2655 = vadd.f32 %v2489, %v2654
        %v2656 = vpop.f32.mrf.mxu0
        %v2657 = vadd.f32 %v2489, %v2656
        %2658 = vmatmul.bf16.gmra.mxu0 %v2424
        %v2659 = vpop.f32.mrf.mxu0
        %v2660 = vadd.f32 %v2489, %v2659
        %v2661 = vpop.f32.mrf.mxu0
        %v2662 = vadd.f32 %v2489, %v2661
        %2663 = vmatmul.bf16.gmra.mxu0 %v2427
        %v2664 = vpop.f32.mrf.mxu0
        %v2665 = vadd.f32 %v2489, %v2664
        %v2666 = vpop.f32.mrf.mxu0
        %v2667 = vadd.f32 %v2489, %v2666
        %2668 = vmatmul.bf16.gmra.mxu0 %v2430
        %v2669 = vpop.f32.mrf.mxu0
        %v2670 = vadd.f32 %v2489, %v2669
        %v2671 = vpop.f32.mrf.mxu0
        %v2672 = vadd.f32 %v2489, %v2671
        %2673 = vmatmul.bf16.gmra.mxu0 %v2433
        %v2674 = vpop.f32.mrf.mxu0
        %v2675 = vadd.f32 %v2489, %v2674
        %v2676 = vpop.f32.mrf.mxu0
        %v2677 = vadd.f32 %v2489, %v2676
        %2678 = vmatmul.bf16.gmra.mxu0 %v2436
        %v2679 = vpop.f32.mrf.mxu0
        %v2680 = vadd.f32 %v2489, %v2679
        %v2681 = vpop.f32.mrf.mxu0
        %v2682 = vadd.f32 %v2489, %v2681
        %2683 = vdwg.mxu0
        %2684 = vmatpush.bf16.msra.mxu0 %v2602
        %2685 = vmatpush.bf16.msra.mxu0 %v2601
        %2686 = vmatpush.bf16.msra.mxu0 %v2600
        %2687 = vmatpush.bf16.msra.mxu0 %v2599
        %2688 = vmatpush.bf16.msra.mxu0 %v2598
        %2689 = vmatpush.bf16.msra.mxu0 %v2597
        %2690 = vmatpush.bf16.msra.mxu0 %v2596
        %2691 = vmatpush.bf16.msra.mxu0 %v2595
        %2692 = vmatmul.bf16.gmra.mxu0 %v2416
        %v2693 = vpop.f32.mrf.mxu0
        %v2694 = vadd.f32 %v2645, %v2693
        %v2695 = vpop.f32.mrf.mxu0
        %v2696 = vadd.f32 %v2647, %v2695
        %2697 = vmatmul.bf16.gmra.mxu0 %v2419
        %v2698 = vpop.f32.mrf.mxu0
        %v2699 = vadd.f32 %v2650, %v2698
        %v2700 = vpop.f32.mrf.mxu0
        %v2701 = vadd.f32 %v2652, %v2700
        %2702 = vmatmul.bf16.gmra.mxu0 %v2422
        %v2703 = vpop.f32.mrf.mxu0
        %v2704 = vadd.f32 %v2655, %v2703
        %v2705 = vpop.f32.mrf.mxu0
        %v2706 = vadd.f32 %v2657, %v2705
        %2707 = vmatmul.bf16.gmra.mxu0 %v2425
        %v2708 = vpop.f32.mrf.mxu0
        %v2709 = vadd.f32 %v2660, %v2708
        %v2710 = vpop.f32.mrf.mxu0
        %v2711 = vadd.f32 %v2662, %v2710
        %2712 = vmatmul.bf16.gmra.mxu0 %v2428
        %v2713 = vpop.f32.mrf.mxu0
        %v2714 = vadd.f32 %v2665, %v2713
        %v2715 = vpop.f32.mrf.mxu0
        %v2716 = vadd.f32 %v2667, %v2715
        %2717 = vmatmul.bf16.gmra.mxu0 %v2431
        %v2718 = vpop.f32.mrf.mxu0
        %v2719 = vadd.f32 %v2670, %v2718
        %v2720 = vpop.f32.mrf.mxu0
        %v2721 = vadd.f32 %v2672, %v2720
        %2722 = vmatmul.bf16.gmra.mxu0 %v2434
        %v2723 = vpop.f32.mrf.mxu0
        %v2724 = vadd.f32 %v2675, %v2723
        %v2725 = vpop.f32.mrf.mxu0
        %v2726 = vadd.f32 %v2677, %v2725
        %2727 = vmatmul.bf16.gmra.mxu0 %v2437
        %v2728 = vpop.f32.mrf.mxu0
        %v2729 = vadd.f32 %v2680, %v2728
        %v2730 = vpop.f32.mrf.mxu0
        %v2731 = vadd.f32 %v2682, %v2730
        %2732 = vdwg.mxu0
        %2733 = vmatpush.bf16.msra.mxu0 %v2610
        %2734 = vmatpush.bf16.msra.mxu0 %v2609
        %2735 = vmatpush.bf16.msra.mxu0 %v2608
        %2736 = vmatpush.bf16.msra.mxu0 %v2607
        %2737 = vmatpush.bf16.msra.mxu0 %v2606
        %2738 = vmatpush.bf16.msra.mxu0 %v2605
        %2739 = vmatpush.bf16.msra.mxu0 %v2604
        %2740 = vmatpush.bf16.msra.mxu0 %v2603
        %2741 = vmatmul.bf16.gmra.mxu0 %v2417
        %v2742 = vpop.f32.mrf.mxu0
        %v2743 = vadd.f32 %v2694, %v2742
        %v2744 = vpop.f32.mrf.mxu0
        %v2745 = vadd.f32 %v2696, %v2744
        %2746 = vmatmul.bf16.gmra.mxu0 %v2420
        %v2747 = vpop.f32.mrf.mxu0
        %v2748 = vadd.f32 %v2699, %v2747
        %v2749 = vpop.f32.mrf.mxu0
        %v2750 = vadd.f32 %v2701, %v2749
        %2751 = vmatmul.bf16.gmra.mxu0 %v2423
        %v2752 = vpop.f32.mrf.mxu0
        %v2753 = vadd.f32 %v2704, %v2752
        %v2754 = vpop.f32.mrf.mxu0
        %v2755 = vadd.f32 %v2706, %v2754
        %2756 = vmatmul.bf16.gmra.mxu0 %v2426
        %v2757 = vpop.f32.mrf.mxu0
        %v2758 = vadd.f32 %v2709, %v2757
        %v2759 = vpop.f32.mrf.mxu0
        %v2760 = vadd.f32 %v2711, %v2759
        %2761 = vmatmul.bf16.gmra.mxu0 %v2429
        %v2762 = vpop.f32.mrf.mxu0
        %v2763 = vadd.f32 %v2714, %v2762
        %v2764 = vpop.f32.mrf.mxu0
        %v2765 = vadd.f32 %v2716, %v2764
        %2766 = vmatmul.bf16.gmra.mxu0 %v2432
        %v2767 = vpop.f32.mrf.mxu0
        %v2768 = vadd.f32 %v2719, %v2767
        %v2769 = vpop.f32.mrf.mxu0
        %v2770 = vadd.f32 %v2721, %v2769
        %2771 = vmatmul.bf16.gmra.mxu0 %v2435
        %v2772 = vpop.f32.mrf.mxu0
        %v2773 = vadd.f32 %v2724, %v2772
        %v2774 = vpop.f32.mrf.mxu0
        %v2775 = vadd.f32 %v2726, %v2774
        %2776 = vmatmul.bf16.gmra.mxu0 %v2438
        %v2777 = vpop.f32.mrf.mxu0
        %v2778 = vadd.f32 %v2729, %v2777
        %v2779 = vpop.f32.mrf.mxu0
        %v2780 = vadd.f32 %v2731, %v2779
        %2781 = vdwg.mxu0
        %vm2782 = vcmp.ge.f32.partialorder %v2743, 0.0
        %vm2783 = vcmp.ge.f32.partialorder %v2745, 0.0
        %vm2784 = vcmp.ge.f32.partialorder %v2748, 0.0
        %vm2785 = vcmp.ge.f32.partialorder %v2750, 0.0
        %vm2786 = vcmp.ge.f32.partialorder %v2753, 0.0
        %vm2787 = vcmp.ge.f32.partialorder %v2755, 0.0
        %vm2788 = vcmp.ge.f32.partialorder %v2758, 0.0
        %vm2789 = vcmp.ge.f32.partialorder %v2760, 0.0
        %vm2790 = vcmp.ge.f32.partialorder %v2763, 0.0
        %vm2791 = vcmp.ge.f32.partialorder %v2765, 0.0
        %vm2792 = vcmp.ge.f32.partialorder %v2768, 0.0
        %vm2793 = vcmp.ge.f32.partialorder %v2770, 0.0
        %vm2794 = vcmp.ge.f32.partialorder %v2773, 0.0
        %vm2795 = vcmp.ge.f32.partialorder %v2775, 0.0
        %vm2796 = vcmp.ge.f32.partialorder %v2778, 0.0
        %vm2797 = vcmp.ge.f32.partialorder %v2780, 0.0
        %v2798 = vmul.f32 %v2743, 0.01
        %v2799 = vmul.f32 %v2745, 0.01
        %v2800 = vmul.f32 %v2748, 0.01
        %v2801 = vmul.f32 %v2750, 0.01
        %v2802 = vmul.f32 %v2753, 0.01
        %v2803 = vmul.f32 %v2755, 0.01
        %v2804 = vmul.f32 %v2758, 0.01
        %v2805 = vmul.f32 %v2760, 0.01
        %v2806 = vmul.f32 %v2763, 0.01
        %v2807 = vmul.f32 %v2765, 0.01
        %v2808 = vmul.f32 %v2768, 0.01
        %v2809 = vmul.f32 %v2770, 0.01
        %v2810 = vmul.f32 %v2773, 0.01
        %v2811 = vmul.f32 %v2775, 0.01
        %v2812 = vmul.f32 %v2778, 0.01
        %v2813 = vmul.f32 %v2780, 0.01
        %v2814 = vsel %vm2782, %v2743, %v2798
        %v2815 = vsel %vm2783, %v2745, %v2799
        %v2816 = vsel %vm2784, %v2748, %v2800
        %v2817 = vsel %vm2785, %v2750, %v2801
        %v2818 = vsel %vm2786, %v2753, %v2802
        %v2819 = vsel %vm2787, %v2755, %v2803
        %v2820 = vsel %vm2788, %v2758, %v2804
        %v2821 = vsel %vm2789, %v2760, %v2805
        %v2822 = vsel %vm2790, %v2763, %v2806
        %v2823 = vsel %vm2791, %v2765, %v2807
        %v2824 = vsel %vm2792, %v2768, %v2808
        %v2825 = vsel %vm2793, %v2770, %v2809
        %v2826 = vsel %vm2794, %v2773, %v2810
        %v2827 = vsel %vm2795, %v2775, %v2811
        %v2828 = vsel %vm2796, %v2778, %v2812
        %v2829 = vsel %vm2797, %v2780, %v2813
        %v2830 = vpack.c.bf16 %v2815, %v2814
        %v2831 = vpack.c.bf16 %v2817, %v2816
        %v2832 = vpack.c.bf16 %v2819, %v2818
        %v2833 = vpack.c.bf16 %v2821, %v2820
        %v2834 = vpack.c.bf16 %v2823, %v2822
        %v2835 = vpack.c.bf16 %v2825, %v2824
        %v2836 = vpack.c.bf16 %v2827, %v2826
        %v2837 = vpack.c.bf16 %v2829, %v2828
        %v2838 = vld [vmem:[%s5] sm:$0xf]
        %v2839 = vld [vmem:[%s5 + $0x4] sm:$0xf]
        %v2840 = vld [vmem:[%s5 + $0x8] sm:$0xf]
        %v2841 = vld [vmem:[%s5 + $0xc] sm:$0xf]
        %v2842 = vld [vmem:[%s5 + $0x10] sm:$0xf]
        %v2843 = vld [vmem:[%s5 + $0x14] sm:$0xf]
        %v2844 = vld [vmem:[%s5 + $0x18] sm:$0xf]
        %v2845 = vld [vmem:[%s5 + $0x1c] sm:$0xf]
        %v2846 = vld [vmem:[%s5 + $0x20] sm:$0xf]
        %v2847 = vld [vmem:[%s5 + $0x24] sm:$0xf]
        %v2848 = vld [vmem:[%s5 + $0x28] sm:$0xf]
        %v2849 = vld [vmem:[%s5 + $0x2c] sm:$0xf]
        %v2850 = vld [vmem:[%s5 + $0x30] sm:$0xf]
        %v2851 = vld [vmem:[%s5 + $0x34] sm:$0xf]
        %v2852 = vld [vmem:[%s5 + $0x38] sm:$0xf]
        %v2853 = vld [vmem:[%s5 + $0x3c] sm:$0xf]
        %v2854 = vld [vmem:[%s6] sm:$0x1]
        %v2856 = vperm.slane %v2854, 0
        %v2874 = vunpack.c.l.b16 %v2838
        %v2875 = vunpack.c.l.b16 %v2839
        %v2876 = vunpack.c.l.b16 %v2840
        %v2877 = vunpack.c.l.b16 %v2841
        %v2878 = vunpack.c.l.b16 %v2842
        %v2879 = vunpack.c.l.b16 %v2843
        %v2880 = vunpack.c.l.b16 %v2844
        %v2881 = vunpack.c.l.b16 %v2845
        %v2882 = vunpack.c.l.b16 %v2846
        %v2883 = vunpack.c.l.b16 %v2847
        %v2884 = vunpack.c.l.b16 %v2848
        %v2885 = vunpack.c.l.b16 %v2849
        %v2886 = vunpack.c.l.b16 %v2850
        %v2887 = vunpack.c.l.b16 %v2851
        %v2888 = vunpack.c.l.b16 %v2852
        %v2889 = vunpack.c.l.b16 %v2853
        %v2890 = vpack.c.b16 %v2875, %v2874
        %v2891 = vpack.c.b16 %v2877, %v2876
        %v2892 = vpack.c.b16 %v2879, %v2878
        %v2893 = vpack.c.b16 %v2881, %v2880
        %v2894 = vpack.c.b16 %v2883, %v2882
        %v2895 = vpack.c.b16 %v2885, %v2884
        %v2896 = vpack.c.b16 %v2887, %v2886
        %v2897 = vpack.c.b16 %v2889, %v2888
        %2906 = vmatpush.bf16.msra.mxu0 %v2897
        %2907 = vmatpush.bf16.msra.mxu0 %v2896
        %2908 = vmatpush.bf16.msra.mxu0 %v2895
        %2909 = vmatpush.bf16.msra.mxu0 %v2894
        %2910 = vmatpush.bf16.msra.mxu0 %v2893
        %2911 = vmatpush.bf16.msra.mxu0 %v2892
        %2912 = vmatpush.bf16.msra.mxu0 %v2891
        %2913 = vmatpush.bf16.msra.mxu0 %v2890
        %2914 = vmatmul.bf16.gmra.mxu0 %v2830
        %v2915 = vpop.f32.mrf.mxu0
        %v2916 = vadd.f32 %v2856, %v2915
        %v2917 = vpop.f32.mrf.mxu0
        %v2918 = vadd.f32 %v2856, %v2917
        %2919 = vmatmul.bf16.gmra.mxu0 %v2831
        %v2920 = vpop.f32.mrf.mxu0
        %v2921 = vadd.f32 %v2856, %v2920
        %v2922 = vpop.f32.mrf.mxu0
        %v2923 = vadd.f32 %v2856, %v2922
        %2924 = vmatmul.bf16.gmra.mxu0 %v2832
        %v2925 = vpop.f32.mrf.mxu0
        %v2926 = vadd.f32 %v2856, %v2925
        %v2927 = vpop.f32.mrf.mxu0
        %v2928 = vadd.f32 %v2856, %v2927
        %2929 = vmatmul.bf16.gmra.mxu0 %v2833
        %v2930 = vpop.f32.mrf.mxu0
        %v2931 = vadd.f32 %v2856, %v2930
        %v2932 = vpop.f32.mrf.mxu0
        %v2933 = vadd.f32 %v2856, %v2932
        %2934 = vmatmul.bf16.gmra.mxu0 %v2834
        %v2935 = vpop.f32.mrf.mxu0
        %v2936 = vadd.f32 %v2856, %v2935
        %v2937 = vpop.f32.mrf.mxu0
        %v2938 = vadd.f32 %v2856, %v2937
        %2939 = vmatmul.bf16.gmra.mxu0 %v2835
        %v2940 = vpop.f32.mrf.mxu0
        %v2941 = vadd.f32 %v2856, %v2940
        %v2942 = vpop.f32.mrf.mxu0
        %v2943 = vadd.f32 %v2856, %v2942
        %2944 = vmatmul.bf16.gmra.mxu0 %v2836
        %v2945 = vpop.f32.mrf.mxu0
        %v2946 = vadd.f32 %v2856, %v2945
        %v2947 = vpop.f32.mrf.mxu0
        %v2948 = vadd.f32 %v2856, %v2947
        %2949 = vmatmul.bf16.gmra.mxu0 %v2837
        %v2950 = vpop.f32.mrf.mxu0
        %v2951 = vadd.f32 %v2856, %v2950
        %v2952 = vpop.f32.mrf.mxu0
        %v2953 = vadd.f32 %v2856, %v2952
        %2954 = vdwg.mxu0
        %v2955 = vsel %vm317, %v2916, -inf
        %v2956 = vsel %vm317, %v2918, -inf
        %v2957 = vsel %vm317, %v2921, -inf
        %v2958 = vsel %vm317, %v2923, -inf
        %v2959 = vsel %vm317, %v2926, -inf
        %v2960 = vsel %vm317, %v2928, -inf
        %v2961 = vsel %vm317, %v2931, -inf
        %v2962 = vsel %vm317, %v2933, -inf
        %v2963 = vsel %vm317, %v2936, -inf
        %v2964 = vsel %vm317, %v2938, -inf
        %v2965 = vsel %vm317, %v2941, -inf
        %v2966 = vsel %vm317, %v2943, -inf
        %v2967 = vsel %vm317, %v2946, -inf
        %v2968 = vsel %vm317, %v2948, -inf
        %v2969 = vsel %vm317, %v2951, -inf
        %v2970 = vsel %vm317, %v2953, -inf
        %2971 = vmax.xlane.f32.xlu0 %v2955
        %v2972 = vpop.xlane.xlu0 %2971
        %2973 = vmax.xlane.f32.xlu0 %v2956
        %v2974 = vpop.xlane.xlu0 %2973
        %2975 = vmax.xlane.f32.xlu0 %v2957
        %v2976 = vpop.xlane.xlu0 %2975
        %2977 = vmax.xlane.f32.xlu0 %v2958
        %v2978 = vpop.xlane.xlu0 %2977
        %2979 = vmax.xlane.f32.xlu0 %v2959
        %v2980 = vpop.xlane.xlu0 %2979
        %2981 = vmax.xlane.f32.xlu0 %v2960
        %v2982 = vpop.xlane.xlu0 %2981
        %2983 = vmax.xlane.f32.xlu0 %v2961
        %v2984 = vpop.xlane.xlu0 %2983
        %2985 = vmax.xlane.f32.xlu0 %v2962
        %v2986 = vpop.xlane.xlu0 %2985
        %2987 = vmax.xlane.f32.xlu0 %v2963
        %v2988 = vpop.xlane.xlu0 %2987
        %2989 = vmax.xlane.f32.xlu0 %v2964
        %v2990 = vpop.xlane.xlu0 %2989
        %2991 = vmax.xlane.f32.xlu0 %v2965
        %v2992 = vpop.xlane.xlu0 %2991
        %2993 = vmax.xlane.f32.xlu0 %v2966
        %v2994 = vpop.xlane.xlu0 %2993
        %2995 = vmax.xlane.f32.xlu0 %v2967
        %v2996 = vpop.xlane.xlu0 %2995
        %2997 = vmax.xlane.f32.xlu0 %v2968
        %v2998 = vpop.xlane.xlu0 %2997
        %2999 = vmax.xlane.f32.xlu0 %v2969
        %v3000 = vpop.xlane.xlu0 %2999
        %3001 = vmax.xlane.f32.xlu0 %v2970
        %v3002 = vpop.xlane.xlu0 %3001
        %v3003 = vsub.f32 %v2916, %v2972
        %v3004 = vsub.f32 %v2918, %v2974
        %v3005 = vsub.f32 %v2921, %v2976
        %v3006 = vsub.f32 %v2923, %v2978
        %v3007 = vsub.f32 %v2926, %v2980
        %v3008 = vsub.f32 %v2928, %v2982
        %v3009 = vsub.f32 %v2931, %v2984
        %v3010 = vsub.f32 %v2933, %v2986
        %v3011 = vsub.f32 %v2936, %v2988
        %v3012 = vsub.f32 %v2938, %v2990
        %v3013 = vsub.f32 %v2941, %v2992
        %v3014 = vsub.f32 %v2943, %v2994
        %v3015 = vsub.f32 %v2946, %v2996
        %v3016 = vsub.f32 %v2948, %v2998
        %v3017 = vsub.f32 %v2951, %v3000
        %v3018 = vsub.f32 %v2953, %v3002
        %v3019 = vsel %vm366, %v3003, -inf
        %v3020 = vsel %vm367, %v3004, -inf
        %v3021 = vsel %vm368, %v3005, -inf
        %v3022 = vsel %vm369, %v3006, -inf
        %v3023 = vsel %vm370, %v3007, -inf
        %v3024 = vsel %vm371, %v3008, -inf
        %v3025 = vsel %vm372, %v3009, -inf
        %v3026 = vsel %vm373, %v3010, -inf
        %v3027 = vsel %vm374, %v3011, -inf
        %v3028 = vsel %vm375, %v3012, -inf
        %v3029 = vsel %vm376, %v3013, -inf
        %v3030 = vsel %vm377, %v3014, -inf
        %v3031 = vsel %vm378, %v3015, -inf
        %v3032 = vsel %vm379, %v3016, -inf
        %v3033 = vsel %vm380, %v3017, -inf
        %v3034 = vsel %vm381, %v3018, -inf
        %v3035 = vmul.f32 %v3019, 1.442695
        %v3036 = vpow.pop %v3035
        %v3037 = vmul.f32 %v3020, 1.442695
        %v3038 = vpow.pop %v3037
        %v3039 = vmul.f32 %v3021, 1.442695
        %v3040 = vpow.pop %v3039
        %v3041 = vmul.f32 %v3022, 1.442695
        %v3042 = vpow.pop %v3041
        %v3043 = vmul.f32 %v3023, 1.442695
        %v3044 = vpow.pop %v3043
        %v3045 = vmul.f32 %v3024, 1.442695
        %v3046 = vpow.pop %v3045
        %v3047 = vmul.f32 %v3025, 1.442695
        %v3048 = vpow.pop %v3047
        %v3049 = vmul.f32 %v3026, 1.442695
        %v3050 = vpow.pop %v3049
        %v3051 = vmul.f32 %v3027, 1.442695
        %v3052 = vpow.pop %v3051
        %v3053 = vmul.f32 %v3028, 1.442695
        %v3054 = vpow.pop %v3053
        %v3055 = vmul.f32 %v3029, 1.442695
        %v3056 = vpow.pop %v3055
        %v3057 = vmul.f32 %v3030, 1.442695
        %v3058 = vpow.pop %v3057
        %v3059 = vmul.f32 %v3031, 1.442695
        %v3060 = vpow.pop %v3059
        %v3061 = vmul.f32 %v3032, 1.442695
        %v3062 = vpow.pop %v3061
        %v3063 = vmul.f32 %v3033, 1.442695
        %v3064 = vpow.pop %v3063
        %v3065 = vmul.f32 %v3034, 1.442695
        %v3066 = vpow.pop %v3065
        %3067 = vadd.xlane.f32.xlu0 %v3036
        %v3068 = vpop.xlane.xlu0 %3067
        %3069 = vadd.xlane.f32.xlu0 %v3038
        %v3070 = vpop.xlane.xlu0 %3069
        %3071 = vadd.xlane.f32.xlu0 %v3040
        %v3072 = vpop.xlane.xlu0 %3071
        %3073 = vadd.xlane.f32.xlu0 %v3042
        %v3074 = vpop.xlane.xlu0 %3073
        %3075 = vadd.xlane.f32.xlu0 %v3044
        %v3076 = vpop.xlane.xlu0 %3075
        %3077 = vadd.xlane.f32.xlu0 %v3046
        %v3078 = vpop.xlane.xlu0 %3077
        %3079 = vadd.xlane.f32.xlu0 %v3048
        %v3080 = vpop.xlane.xlu0 %3079
        %3081 = vadd.xlane.f32.xlu0 %v3050
        %v3082 = vpop.xlane.xlu0 %3081
        %3083 = vadd.xlane.f32.xlu0 %v3052
        %v3084 = vpop.xlane.xlu0 %3083
        %3085 = vadd.xlane.f32.xlu0 %v3054
        %v3086 = vpop.xlane.xlu0 %3085
        %3087 = vadd.xlane.f32.xlu0 %v3056
        %v3088 = vpop.xlane.xlu0 %3087
        %3089 = vadd.xlane.f32.xlu0 %v3058
        %v3090 = vpop.xlane.xlu0 %3089
        %3091 = vadd.xlane.f32.xlu0 %v3060
        %v3092 = vpop.xlane.xlu0 %3091
        %3093 = vadd.xlane.f32.xlu0 %v3062
        %v3094 = vpop.xlane.xlu0 %3093
        %3095 = vadd.xlane.f32.xlu0 %v3064
        %v3096 = vpop.xlane.xlu0 %3095
        %3097 = vadd.xlane.f32.xlu0 %v3066
        %v3098 = vpop.xlane.xlu0 %3097
        %v3099 = vadd.f32 %v3068, 1e-30
        %v3100 = vadd.f32 %v3070, 1e-30
        %v3101 = vadd.f32 %v3072, 1e-30
        %v3102 = vadd.f32 %v3074, 1e-30
        %v3103 = vadd.f32 %v3076, 1e-30
        %v3104 = vadd.f32 %v3078, 1e-30
        %v3105 = vadd.f32 %v3080, 1e-30
        %v3106 = vadd.f32 %v3082, 1e-30
        %v3107 = vadd.f32 %v3084, 1e-30
        %v3108 = vadd.f32 %v3086, 1e-30
        %v3109 = vadd.f32 %v3088, 1e-30
        %v3110 = vadd.f32 %v3090, 1e-30
        %v3111 = vadd.f32 %v3092, 1e-30
        %v3112 = vadd.f32 %v3094, 1e-30
        %v3113 = vadd.f32 %v3096, 1e-30
        %v3114 = vadd.f32 %v3098, 1e-30
        %v3115 = vrcp.pop %v3099
        %v3116 = vmul.f32 %v3099, %v3115
        %v3117 = vsub.f32 1.0, %v3116
        %v3118 = vmul.f32 %v3115, %v3117
        %v3119 = vadd.f32 %v3115, %v3118
        %vm3120 = vweird.f32 %v3099
        %vm3121 = vweird.f32 %v3115
        %vm3122 = vmor %vm3120, %vm3121
        %v3123 = vsel %vm3122, %v3115, %v3119
        %v3124 = vand.u32 2147483647, %v3099
        %vm3125 = vcmp.eq.f32.partialorder %v3124, 8.507059e+37
        %v3126 = vand.u32 %v3099, 2147483648
        %v3127 = vor.u32 1.1754944e-38, %v3126
        %v3128 = vsel %vm3125, %v3127, %v3123
        %v3129 = vrcp.pop %v3100
        %v3130 = vmul.f32 %v3100, %v3129
        %v3131 = vsub.f32 1.0, %v3130
        %v3132 = vmul.f32 %v3129, %v3131
        %v3133 = vadd.f32 %v3129, %v3132
        %vm3134 = vweird.f32 %v3100
        %vm3135 = vweird.f32 %v3129
        %vm3136 = vmor %vm3134, %vm3135
        %v3137 = vsel %vm3136, %v3129, %v3133
        %v3138 = vand.u32 2147483647, %v3100
        %vm3139 = vcmp.eq.f32.partialorder %v3138, 8.507059e+37
        %v3140 = vand.u32 %v3100, 2147483648
        %v3141 = vor.u32 1.1754944e-38, %v3140
        %v3142 = vsel %vm3139, %v3141, %v3137
        %v3143 = vrcp.pop %v3101
        %v3144 = vmul.f32 %v3101, %v3143
        %v3145 = vsub.f32 1.0, %v3144
        %v3146 = vmul.f32 %v3143, %v3145
        %v3147 = vadd.f32 %v3143, %v3146
        %vm3148 = vweird.f32 %v3101
        %vm3149 = vweird.f32 %v3143
        %vm3150 = vmor %vm3148, %vm3149
        %v3151 = vsel %vm3150, %v3143, %v3147
        %v3152 = vand.u32 2147483647, %v3101
        %vm3153 = vcmp.eq.f32.partialorder %v3152, 8.507059e+37
        %v3154 = vand.u32 %v3101, 2147483648
        %v3155 = vor.u32 1.1754944e-38, %v3154
        %v3156 = vsel %vm3153, %v3155, %v3151
        %v3157 = vrcp.pop %v3102
        %v3158 = vmul.f32 %v3102, %v3157
        %v3159 = vsub.f32 1.0, %v3158
        %v3160 = vmul.f32 %v3157, %v3159
        %v3161 = vadd.f32 %v3157, %v3160
        %vm3162 = vweird.f32 %v3102
        %vm3163 = vweird.f32 %v3157
        %vm3164 = vmor %vm3162, %vm3163
        %v3165 = vsel %vm3164, %v3157, %v3161
        %v3166 = vand.u32 2147483647, %v3102
        %vm3167 = vcmp.eq.f32.partialorder %v3166, 8.507059e+37
        %v3168 = vand.u32 %v3102, 2147483648
        %v3169 = vor.u32 1.1754944e-38, %v3168
        %v3170 = vsel %vm3167, %v3169, %v3165
        %v3171 = vrcp.pop %v3103
        %v3172 = vmul.f32 %v3103, %v3171
        %v3173 = vsub.f32 1.0, %v3172
        %v3174 = vmul.f32 %v3171, %v3173
        %v3175 = vadd.f32 %v3171, %v3174
        %vm3176 = vweird.f32 %v3103
        %vm3177 = vweird.f32 %v3171
        %vm3178 = vmor %vm3176, %vm3177
        %v3179 = vsel %vm3178, %v3171, %v3175
        %v3180 = vand.u32 2147483647, %v3103
        %vm3181 = vcmp.eq.f32.partialorder %v3180, 8.507059e+37
        %v3182 = vand.u32 %v3103, 2147483648
        %v3183 = vor.u32 1.1754944e-38, %v3182
        %v3184 = vsel %vm3181, %v3183, %v3179
        %v3185 = vrcp.pop %v3104
        %v3186 = vmul.f32 %v3104, %v3185
        %v3187 = vsub.f32 1.0, %v3186
        %v3188 = vmul.f32 %v3185, %v3187
        %v3189 = vadd.f32 %v3185, %v3188
        %vm3190 = vweird.f32 %v3104
        %vm3191 = vweird.f32 %v3185
        %vm3192 = vmor %vm3190, %vm3191
        %v3193 = vsel %vm3192, %v3185, %v3189
        %v3194 = vand.u32 2147483647, %v3104
        %vm3195 = vcmp.eq.f32.partialorder %v3194, 8.507059e+37
        %v3196 = vand.u32 %v3104, 2147483648
        %v3197 = vor.u32 1.1754944e-38, %v3196
        %v3198 = vsel %vm3195, %v3197, %v3193
        %v3199 = vrcp.pop %v3105
        %v3200 = vmul.f32 %v3105, %v3199
        %v3201 = vsub.f32 1.0, %v3200
        %v3202 = vmul.f32 %v3199, %v3201
        %v3203 = vadd.f32 %v3199, %v3202
        %vm3204 = vweird.f32 %v3105
        %vm3205 = vweird.f32 %v3199
        %vm3206 = vmor %vm3204, %vm3205
        %v3207 = vsel %vm3206, %v3199, %v3203
        %v3208 = vand.u32 2147483647, %v3105
        %vm3209 = vcmp.eq.f32.partialorder %v3208, 8.507059e+37
        %v3210 = vand.u32 %v3105, 2147483648
        %v3211 = vor.u32 1.1754944e-38, %v3210
        %v3212 = vsel %vm3209, %v3211, %v3207
        %v3213 = vrcp.pop %v3106
        %v3214 = vmul.f32 %v3106, %v3213
        %v3215 = vsub.f32 1.0, %v3214
        %v3216 = vmul.f32 %v3213, %v3215
        %v3217 = vadd.f32 %v3213, %v3216
        %vm3218 = vweird.f32 %v3106
        %vm3219 = vweird.f32 %v3213
        %vm3220 = vmor %vm3218, %vm3219
        %v3221 = vsel %vm3220, %v3213, %v3217
        %v3222 = vand.u32 2147483647, %v3106
        %vm3223 = vcmp.eq.f32.partialorder %v3222, 8.507059e+37
        %v3224 = vand.u32 %v3106, 2147483648
        %v3225 = vor.u32 1.1754944e-38, %v3224
        %v3226 = vsel %vm3223, %v3225, %v3221
        %v3227 = vrcp.pop %v3107
        %v3228 = vmul.f32 %v3107, %v3227
        %v3229 = vsub.f32 1.0, %v3228
        %v3230 = vmul.f32 %v3227, %v3229
        %v3231 = vadd.f32 %v3227, %v3230
        %vm3232 = vweird.f32 %v3107
        %vm3233 = vweird.f32 %v3227
        %vm3234 = vmor %vm3232, %vm3233
        %v3235 = vsel %vm3234, %v3227, %v3231
        %v3236 = vand.u32 2147483647, %v3107
        %vm3237 = vcmp.eq.f32.partialorder %v3236, 8.507059e+37
        %v3238 = vand.u32 %v3107, 2147483648
        %v3239 = vor.u32 1.1754944e-38, %v3238
        %v3240 = vsel %vm3237, %v3239, %v3235
        %v3241 = vrcp.pop %v3108
        %v3242 = vmul.f32 %v3108, %v3241
        %v3243 = vsub.f32 1.0, %v3242
        %v3244 = vmul.f32 %v3241, %v3243
        %v3245 = vadd.f32 %v3241, %v3244
        %vm3246 = vweird.f32 %v3108
        %vm3247 = vweird.f32 %v3241
        %vm3248 = vmor %vm3246, %vm3247
        %v3249 = vsel %vm3248, %v3241, %v3245
        %v3250 = vand.u32 2147483647, %v3108
        %vm3251 = vcmp.eq.f32.partialorder %v3250, 8.507059e+37
        %v3252 = vand.u32 %v3108, 2147483648
        %v3253 = vor.u32 1.1754944e-38, %v3252
        %v3254 = vsel %vm3251, %v3253, %v3249
        %v3255 = vrcp.pop %v3109
        %v3256 = vmul.f32 %v3109, %v3255
        %v3257 = vsub.f32 1.0, %v3256
        %v3258 = vmul.f32 %v3255, %v3257
        %v3259 = vadd.f32 %v3255, %v3258
        %vm3260 = vweird.f32 %v3109
        %vm3261 = vweird.f32 %v3255
        %vm3262 = vmor %vm3260, %vm3261
        %v3263 = vsel %vm3262, %v3255, %v3259
        %v3264 = vand.u32 2147483647, %v3109
        %vm3265 = vcmp.eq.f32.partialorder %v3264, 8.507059e+37
        %v3266 = vand.u32 %v3109, 2147483648
        %v3267 = vor.u32 1.1754944e-38, %v3266
        %v3268 = vsel %vm3265, %v3267, %v3263
        %v3269 = vrcp.pop %v3110
        %v3270 = vmul.f32 %v3110, %v3269
        %v3271 = vsub.f32 1.0, %v3270
        %v3272 = vmul.f32 %v3269, %v3271
        %v3273 = vadd.f32 %v3269, %v3272
        %vm3274 = vweird.f32 %v3110
        %vm3275 = vweird.f32 %v3269
        %vm3276 = vmor %vm3274, %vm3275
        %v3277 = vsel %vm3276, %v3269, %v3273
        %v3278 = vand.u32 2147483647, %v3110
        %vm3279 = vcmp.eq.f32.partialorder %v3278, 8.507059e+37
        %v3280 = vand.u32 %v3110, 2147483648
        %v3281 = vor.u32 1.1754944e-38, %v3280
        %v3282 = vsel %vm3279, %v3281, %v3277
        %v3283 = vrcp.pop %v3111
        %v3284 = vmul.f32 %v3111, %v3283
        %v3285 = vsub.f32 1.0, %v3284
        %v3286 = vmul.f32 %v3283, %v3285
        %v3287 = vadd.f32 %v3283, %v3286
        %vm3288 = vweird.f32 %v3111
        %vm3289 = vweird.f32 %v3283
        %vm3290 = vmor %vm3288, %vm3289
        %v3291 = vsel %vm3290, %v3283, %v3287
        %v3292 = vand.u32 2147483647, %v3111
        %vm3293 = vcmp.eq.f32.partialorder %v3292, 8.507059e+37
        %v3294 = vand.u32 %v3111, 2147483648
        %v3295 = vor.u32 1.1754944e-38, %v3294
        %v3296 = vsel %vm3293, %v3295, %v3291
        %v3297 = vrcp.pop %v3112
        %v3298 = vmul.f32 %v3112, %v3297
        %v3299 = vsub.f32 1.0, %v3298
        %v3300 = vmul.f32 %v3297, %v3299
        %v3301 = vadd.f32 %v3297, %v3300
        %vm3302 = vweird.f32 %v3112
        %vm3303 = vweird.f32 %v3297
        %vm3304 = vmor %vm3302, %vm3303
        %v3305 = vsel %vm3304, %v3297, %v3301
        %v3306 = vand.u32 2147483647, %v3112
        %vm3307 = vcmp.eq.f32.partialorder %v3306, 8.507059e+37
        %v3308 = vand.u32 %v3112, 2147483648
        %v3309 = vor.u32 1.1754944e-38, %v3308
        %v3310 = vsel %vm3307, %v3309, %v3305
        %v3311 = vrcp.pop %v3113
        %v3312 = vmul.f32 %v3113, %v3311
        %v3313 = vsub.f32 1.0, %v3312
        %v3314 = vmul.f32 %v3311, %v3313
        %v3315 = vadd.f32 %v3311, %v3314
        %vm3316 = vweird.f32 %v3113
        %vm3317 = vweird.f32 %v3311
        %vm3318 = vmor %vm3316, %vm3317
        %v3319 = vsel %vm3318, %v3311, %v3315
        %v3320 = vand.u32 2147483647, %v3113
        %vm3321 = vcmp.eq.f32.partialorder %v3320, 8.507059e+37
        %v3322 = vand.u32 %v3113, 2147483648
        %v3323 = vor.u32 1.1754944e-38, %v3322
        %v3324 = vsel %vm3321, %v3323, %v3319
        %v3325 = vrcp.pop %v3114
        %v3326 = vmul.f32 %v3114, %v3325
        %v3327 = vsub.f32 1.0, %v3326
        %v3328 = vmul.f32 %v3325, %v3327
        %v3329 = vadd.f32 %v3325, %v3328
        %vm3330 = vweird.f32 %v3114
        %vm3331 = vweird.f32 %v3325
        %vm3332 = vmor %vm3330, %vm3331
        %v3333 = vsel %vm3332, %v3325, %v3329
        %v3334 = vand.u32 2147483647, %v3114
        %vm3335 = vcmp.eq.f32.partialorder %v3334, 8.507059e+37
        %v3336 = vand.u32 %v3114, 2147483648
        %v3337 = vor.u32 1.1754944e-38, %v3336
        %v3338 = vsel %vm3335, %v3337, %v3333
        %v3339 = vmul.f32 %v3036, %v3128
        %v3340 = vmul.f32 %v3038, %v3142
        %v3341 = vmul.f32 %v3040, %v3156
        %v3342 = vmul.f32 %v3042, %v3170
        %v3343 = vmul.f32 %v3044, %v3184
        %v3344 = vmul.f32 %v3046, %v3198
        %v3345 = vmul.f32 %v3048, %v3212
        %v3346 = vmul.f32 %v3050, %v3226
        %v3347 = vmul.f32 %v3052, %v3240
        %v3348 = vmul.f32 %v3054, %v3254
        %v3349 = vmul.f32 %v3056, %v3268
        %v3350 = vmul.f32 %v3058, %v3282
        %v3351 = vmul.f32 %v3060, %v3296
        %v3352 = vmul.f32 %v3062, %v3310
        %v3353 = vmul.f32 %v3064, %v3324
        %v3354 = vmul.f32 %v3066, %v3338
        %v3355 = vsel %vm382, %v2916, %v3339
        %v3356 = vsel %vm382, %v2918, %v3340
        %v3357 = vsel %vm382, %v2921, %v3341
        %v3358 = vsel %vm382, %v2923, %v3342
        %v3359 = vsel %vm382, %v2926, %v3343
        %v3360 = vsel %vm382, %v2928, %v3344
        %v3361 = vsel %vm382, %v2931, %v3345
        %v3362 = vsel %vm382, %v2933, %v3346
        %v3363 = vsel %vm382, %v2936, %v3347
        %v3364 = vsel %vm382, %v2938, %v3348
        %v3365 = vsel %vm382, %v2941, %v3349
        %v3366 = vsel %vm382, %v2943, %v3350
        %v3367 = vsel %vm382, %v2946, %v3351
        %v3368 = vsel %vm382, %v2948, %v3352
        %v3369 = vsel %vm382, %v2951, %v3353
        %v3370 = vsel %vm382, %v2953, %v3354
        %3371 = vst [vmem:[%s297] sm:$0xff] %v3355
        %3372 = vst [vmem:[%s297 + $0x8] sm:$0xff] %v3356
        %3373 = vst [vmem:[%s297 + $0x10] sm:$0xff] %v3357
        %3374 = vst [vmem:[%s297 + $0x18] sm:$0xff] %v3358
        %3375 = vst [vmem:[%s297 + $0x20] sm:$0xff] %v3359
        %3376 = vst [vmem:[%s297 + $0x28] sm:$0xff] %v3360
        %3377 = vst [vmem:[%s297 + $0x30] sm:$0xff] %v3361
        %3378 = vst [vmem:[%s297 + $0x38] sm:$0xff] %v3362
        %3379 = vst [vmem:[%s297 + $0x40] sm:$0xff] %v3363
        %3380 = vst [vmem:[%s297 + $0x48] sm:$0xff] %v3364
        %3381 = vst [vmem:[%s297 + $0x50] sm:$0xff] %v3365
        %3382 = vst [vmem:[%s297 + $0x58] sm:$0xff] %v3366
        %3383 = vst [vmem:[%s297 + $0x60] sm:$0xff] %v3367
        %3384 = vst [vmem:[%s297 + $0x68] sm:$0xff] %v3368
        %3385 = vst [vmem:[%s297 + $0x70] sm:$0xff] %v3369
        %3386 = vst [vmem:[%s297 + $0x78] sm:$0xff] %v3370
        %s3387 = smul.u32 16, %s19
        %p3388 = scmp.lt.s32.totalorder %s3387, 31
        %s3389 = scalar_select %p3388, %s3387, 31
        %s3390 = smul.addr %s3389, 8
        %s3391 = scalar_lea.vmem %s7, %s3390
        // Predicated region
        $region53: #{policy_forward.1} parent=47 // pred_check
          %p3392 = pneg %p189
        $region54: #{policy_forward.1} parent=47 // pred_check_branch
          %3394 = sbr.rel (%p3392) target = $region56
        $region55: #{policy_forward.1} parent=47 // pred_region
          %s3395 = smul.u32 16, %s19
        $region56: #{policy_forward.1} parent=47 // pred_fallthru
          _
      $region48: #{policy_forward.1} parent=5 // pred_fallthru
        _
      %p3396 = scmp.le.s32.totalorder 2, %s14
      // Predicated region
      $region57: #{policy_forward.1} parent=5 // pred_check
        %p3397 = pneg %p3396
      $region58: #{policy_forward.1} parent=5 // pred_check_branch
        %3399 = sbr.rel (%p3397) target = $region60
      $region59: #{policy_forward.1} parent=5 // pred_region
        %s3400 = ssub.s32 %s14, 2
        // Predicated region
        $region61: #{policy_forward.1} parent=59 // pred_check
          %p3401 = pneg %p195
        $region62: #{policy_forward.1} parent=59 // pred_check_branch
          %3403 = sbr.rel (%p3401) target = $region64
        $region63: #{policy_forward.1} parent=59 // pred_region
          %s3404 = smul.u32 16, %s20
          %p3405 = scmp.lt.s32.totalorder %s3404, 31
          %s3406 = scalar_select %p3405, %s3404, 31
          %s3407 = smul.addr %s3406, 8
          %s3408 = scalar_lea.vmem %s7, %s3407
        $region64: #{policy_forward.1} parent=59 // pred_fallthru
          _
      $region60: #{policy_forward.1} parent=5 // pred_fallthru
        _
    $region6: #{policy_forward.1} parent=1 // loop_footer
      %s18 = sadd.s32 1, %s14
    $region7: #{policy_forward.1} parent=1 // loop_footer_branch
      %13 = sbr.rel target = $region3
    $region8: #{policy_forward.1} parent=1 // loop_exit
      _
    %3409 = vsyncpa [#allocation3], 1
    %s3410 = scalar_lea.sflag [#allocation3], 1
    %3411 = vsyncpa %s3410, 1

</llo_original>
